<compile_context>
chip_gen: v7x
topology: tpu7x:2x2x1
jax: 0.10.0
libtpu: 0.0.40
codegen_flags: <defaults>
</compile_context>

<pallas_src>
import functools

import jax
import jax.numpy as jnp
from jax.experimental import pallas as pl
from jax.experimental.pallas import tpu as pltpu

LANE = 128


def _round_up(n: int, m: int) -> int:
    return ((n + m - 1) // m) * m


def linear_ae_kernel(x_ref, w1_ref, b1_ref, w2_ref, b2_ref,
                     w3_ref, b3_ref, w4_ref, b4_ref, out_ref):
    # Encoder layer 1: (TB, 896)bf16 @ (896, 512)bf16 -> f32 acc
    h1 = jnp.dot(x_ref[...], w1_ref[...], preferred_element_type=jnp.float32)
    h1 = jnp.maximum(h1 + b1_ref[...], 0.0)                       # relu in f32
    # Encoder layer 2: (TB, 512) @ (512, 128pad) -> latent (zero-padded lanes)
    z = jnp.dot(h1.astype(jnp.bfloat16), w2_ref[...],
                preferred_element_type=jnp.float32) + b2_ref[...]
    # Decoder layer 1: (TB, 128pad) @ (128pad, 512)
    h2 = jnp.dot(z.astype(jnp.bfloat16), w3_ref[...],
                 preferred_element_type=jnp.float32)
    h2 = jnp.maximum(h2 + b3_ref[...], 0.0)
    # Decoder layer 2: (TB, 512) @ (512, 896pad), sigmoid in f32
    y = jnp.dot(h2.astype(jnp.bfloat16), w4_ref[...],
                preferred_element_type=jnp.float32) + b4_ref[...]
    out_ref[...] = jax.nn.sigmoid(y).astype(out_ref.dtype)


def prepare_params(params):
    """One-time prep: transpose to (in, out), lane-pad, cast weights to bf16.

    params: ((w1, b1), (w2, b2), (w3, b3), (w4, b4)) in PyTorch (out, in)
            weight convention.
    Returns a flat tuple of kernel-ready arrays.
    """
    (w1, b1), (w2, b2), (w3, b3), (w4, b4) = params
    in_features = w1.shape[1]          # 784
    hidden = w1.shape[0]               # 512 (already a multiple of 128)
    latent = w2.shape[0]               # e.g. 32
    in_pad = _round_up(in_features, LANE)   # 896
    lat_pad = _round_up(latent, LANE)       # 128

    def padded(a, rows, cols):
        out = jnp.zeros((rows, cols), jnp.float32)
        return out.at[:a.shape[0], :a.shape[1]].set(a)

    w1p = padded(w1.T, in_pad, hidden).astype(jnp.bfloat16)    # (896, 512)
    w2p = padded(w2.T, hidden, lat_pad).astype(jnp.bfloat16)   # (512, 128)
    w3p = padded(w3.T, lat_pad, hidden).astype(jnp.bfloat16)   # (128, 512)
    w4p = padded(w4.T, hidden, in_pad).astype(jnp.bfloat16)    # (512, 896)

    b1p = b1.reshape(1, -1).astype(jnp.float32)                # (1, 512)
    b2p = padded(b2.reshape(1, -1), 1, lat_pad)                # (1, 128)
    b3p = b3.reshape(1, -1).astype(jnp.float32)                # (1, 512)
    b4p = padded(b4.reshape(1, -1), 1, in_pad)                 # (1, 896)
    return (w1p, b1p, w2p, b2p, w3p, b3p, w4p, b4p)


def linear_ae_forward(x_nchw, prepped, *, batch_tile=256):
    """x_nchw: (B, C, H, W) float32.  Returns (B, C, H, W) float32."""
    B, C, H, W = x_nchw.shape
    in_features = C * H * W
    w1p, b1p, w2p, b2p, w3p, b3p, w4p, b4p = prepped
    in_pad = w1p.shape[0]

    # Flatten (== torch.flatten(x, start_dim=1)), pad features to 896 lanes,
    # cast to bf16 for the MXU (halves the x DMA too).
    x = x_nchw.reshape(B, in_features)
    if in_pad != in_features:
        x = jnp.pad(x, ((0, 0), (0, in_pad - in_features)))
    x = x.astype(jnp.bfloat16)

    # Batch tile: 256 rows keeps double-buffered x/out tiles + f32
    # intermediates well under the 32 MiB default scoped-VMEM limit (v7x-safe).
    tb = batch_tile if B >= batch_tile else B
    grid = (pl.cdiv(B, tb),)

    row_spec_in = pl.BlockSpec((tb, in_pad), lambda i: (i, 0))
    row_spec_out = pl.BlockSpec((tb, in_pad), lambda i: (i, 0))

    def const_spec(shape):
        # Constant block index -> weights/biases fetched once, stay resident.
        return pl.BlockSpec(shape, lambda i: (0, 0))

    out_flat = pl.pallas_call(
        linear_ae_kernel,
        out_shape=jax.ShapeDtypeStruct((B, in_pad), jnp.float32),
        grid=grid,
        in_specs=[
            row_spec_in,
            const_spec(w1p.shape), const_spec(b1p.shape),
            const_spec(w2p.shape), const_spec(b2p.shape),
            const_spec(w3p.shape), const_spec(b3p.shape),
            const_spec(w4p.shape), const_spec(b4p.shape),
        ],
        out_specs=row_spec_out,
        compiler_params=pltpu.CompilerParams(
            dimension_semantics=("parallel",)),
    )(x, w1p, b1p, w2p, b2p, w3p, b3p, w4p, b4p)

    # Drop the padded lanes and restore image layout.
    return out_flat[:, :in_features].reshape(B, C, H, W)


linear_ae_forward_jit = jax.jit(linear_ae_forward,
                                static_argnames=("batch_tile",))


def init_params(key, latent_dims, input_dim=(1, 28, 28)):
    """Deterministic init matching nn.Linear shapes (weight: (out, in))."""
    in_features = input_dim[1] * input_dim[2]  # 784

    def linear_init(k, fan_in, fan_out):
        kw, kb = jax.random.split(k)
        bound = 1.0 / jnp.sqrt(fan_in)
        w = jax.random.uniform(kw, (fan_out, fan_in), jnp.float32, -bound, bound)
        b = jax.random.uniform(kb, (fan_out,), jnp.float32, -bound, bound)
        return w, b

    k1, k2, k3, k4 = jax.random.split(key, 4)
    enc_l1 = linear_init(k1, in_features, 512)     # Encoder.linear1
    enc_l2 = linear_init(k2, 512, latent_dims)     # Encoder.linear2
    dec_l1 = linear_init(k3, latent_dims, 512)     # Decoder.linear1
    dec_l2 = linear_init(k4, 512, in_features)     # Decoder.linear2
    return (enc_l1, enc_l2, dec_l1, dec_l2)


def reference_forward(x_nchw, params):
    """Pure-JAX f32 reference with identical semantics to the PyTorch module."""
    B, C, H, W = x_nchw.shape
    (w1, b1), (w2, b2), (w3, b3), (w4, b4) = params
    x = x_nchw.reshape(B, C * H * W)
    h = jax.nn.relu(x @ w1.T + b1)
    z = h @ w2.T + b2
    d = jax.nn.relu(z @ w3.T + b3)
    y = jax.nn.sigmoid(d @ w4.T + b4)
    return y.reshape(B, C, H, W)


if __name__ == "__main__":
    latent_dims = 32
    input_dim = (1, 28, 28)

    key = jax.random.PRNGKey(0)
    kx, kp = jax.random.split(key)

    x = jax.random.normal(kx, (2, *input_dim), dtype=jnp.float32)
    params = init_params(kp, latent_dims, input_dim)
    prepped = prepare_params(params)   # transpose/pad/cast once, not per call

    out = linear_ae_forward_jit(x, prepped)
    out = jax.block_until_ready(out)

    ref = reference_forward(x, params)
    assert out.shape == (2, 1, 28, 28)
    # bf16 weights/activations with f32 accumulation -> relaxed tolerance
    # vs. the f32 reference (outputs live in (0, 1) after sigmoid).
    assert jnp.allclose(out, ref, atol=3e-2, rtol=0.0), "mismatch vs reference"

    print("KERNEL_OK")
</pallas_src>

<mosaic_0001>
module attributes {stable_mosaic.version = 11 : i64} {
  func.func @linear_ae_kernel(%arg0: i32, %arg1: memref<2x896xbf16, #tpu.memory_space<vmem>>, %arg2: memref<896x512xbf16, #tpu.memory_space<vmem>>, %arg3: memref<1x512xf32, #tpu.memory_space<vmem>>, %arg4: memref<512x128xbf16, #tpu.memory_space<vmem>>, %arg5: memref<1x128xf32, #tpu.memory_space<vmem>>, %arg6: memref<128x512xbf16, #tpu.memory_space<vmem>>, %arg7: memref<1x512xf32, #tpu.memory_space<vmem>>, %arg8: memref<512x896xbf16, #tpu.memory_space<vmem>>, %arg9: memref<1x896xf32, #tpu.memory_space<vmem>>, %arg10: memref<2x896xf32, #tpu.memory_space<vmem>>) attributes {dimension_semantics = [#tpu.dimension_semantics<parallel>], iteration_bounds = array<i64: 1>, scalar_prefetch = 0 : i64, scratch_operands = 0 : i64, tpu.core_type = #tpu.core_type<tc>, window_params = [{transform_indices = @transform_0, window_bounds = array<i64: 2, 896>}, {pipeline_mode = #tpu.pipeline_mode<synchronous>, transform_indices = @transform_1, window_bounds = array<i64: 896, 512>}, {pipeline_mode = #tpu.pipeline_mode<synchronous>, transform_indices = @transform_2, window_bounds = array<i64: 1, 512>}, {pipeline_mode = #tpu.pipeline_mode<synchronous>, transform_indices = @transform_3, window_bounds = array<i64: 512, 128>}, {pipeline_mode = #tpu.pipeline_mode<synchronous>, transform_indices = @transform_4, window_bounds = array<i64: 1, 128>}, {pipeline_mode = #tpu.pipeline_mode<synchronous>, transform_indices = @transform_5, window_bounds = array<i64: 128, 512>}, {pipeline_mode = #tpu.pipeline_mode<synchronous>, transform_indices = @transform_6, window_bounds = array<i64: 1, 512>}, {pipeline_mode = #tpu.pipeline_mode<synchronous>, transform_indices = @transform_7, window_bounds = array<i64: 512, 896>}, {pipeline_mode = #tpu.pipeline_mode<synchronous>, transform_indices = @transform_8, window_bounds = array<i64: 1, 896>}, {transform_indices = @transform_9, window_bounds = array<i64: 2, 896>}]} {
    %c0 = arith.constant 0 : index
    %c0_0 = arith.constant 0 : index
    %0 = vector.load %arg1[%c0, %c0_0] : memref<2x896xbf16, #tpu.memory_space<vmem>>, vector<2x896xbf16>
    %c0_1 = arith.constant 0 : index
    %c0_2 = arith.constant 0 : index
    %1 = vector.load %arg2[%c0_1, %c0_2] : memref<896x512xbf16, #tpu.memory_space<vmem>>, vector<896x512xbf16>
    %cst = arith.constant dense<0.000000e+00> : vector<2x512xf32>
    %2 = tpu.matmul %0, %1, %cst {dimension_numbers = #tpu.dot_dimension_numbers<[1], [0], [0], [1], [0, 0, 1, 1], [], []>} : vector<2x896xbf16>, vector<896x512xbf16>, vector<2x512xf32> -> vector<2x512xf32>
    %c0_3 = arith.constant 0 : index
    %c0_4 = arith.constant 0 : index
    %3 = vector.load %arg3[%c0_3, %c0_4] : memref<1x512xf32, #tpu.memory_space<vmem>>, vector<1x512xf32>
    %4 = vector.broadcast %3 : vector<1x512xf32> to vector<2x512xf32>
    %5 = arith.addf %2, %4 : vector<2x512xf32>
    %cst_5 = arith.constant 0.000000e+00 : f32
    %6 = vector.broadcast %cst_5 : f32 to vector<2x512xf32>
    %7 = arith.maximumf %5, %6 : vector<2x512xf32>
    %8 = arith.truncf %7 : vector<2x512xf32> to vector<2x512xbf16>
    %c0_6 = arith.constant 0 : index
    %c0_7 = arith.constant 0 : index
    %9 = vector.load %arg4[%c0_6, %c0_7] : memref<512x128xbf16, #tpu.memory_space<vmem>>, vector<512x128xbf16>
    %cst_8 = arith.constant dense<0.000000e+00> : vector<2x128xf32>
    %10 = tpu.matmul %8, %9, %cst_8 {dimension_numbers = #tpu.dot_dimension_numbers<[1], [0], [0], [1], [0, 0, 1, 1], [], []>} : vector<2x512xbf16>, vector<512x128xbf16>, vector<2x128xf32> -> vector<2x128xf32>
    %c0_9 = arith.constant 0 : index
    %c0_10 = arith.constant 0 : index
    %11 = vector.load %arg5[%c0_9, %c0_10] : memref<1x128xf32, #tpu.memory_space<vmem>>, vector<1x128xf32>
    %12 = vector.broadcast %11 : vector<1x128xf32> to vector<2x128xf32>
    %13 = arith.addf %10, %12 : vector<2x128xf32>
    %14 = arith.truncf %13 : vector<2x128xf32> to vector<2x128xbf16>
    %c0_11 = arith.constant 0 : index
    %c0_12 = arith.constant 0 : index
    %15 = vector.load %arg6[%c0_11, %c0_12] : memref<128x512xbf16, #tpu.memory_space<vmem>>, vector<128x512xbf16>
    %cst_13 = arith.constant dense<0.000000e+00> : vector<2x512xf32>
    %16 = tpu.matmul %14, %15, %cst_13 {dimension_numbers = #tpu.dot_dimension_numbers<[1], [0], [0], [1], [0, 0, 1, 1], [], []>} : vector<2x128xbf16>, vector<128x512xbf16>, vector<2x512xf32> -> vector<2x512xf32>
    %c0_14 = arith.constant 0 : index
    %c0_15 = arith.constant 0 : index
    %17 = vector.load %arg7[%c0_14, %c0_15] : memref<1x512xf32, #tpu.memory_space<vmem>>, vector<1x512xf32>
    %18 = vector.broadcast %17 : vector<1x512xf32> to vector<2x512xf32>
    %19 = arith.addf %16, %18 : vector<2x512xf32>
    %cst_16 = arith.constant 0.000000e+00 : f32
    %20 = vector.broadcast %cst_16 : f32 to vector<2x512xf32>
    %21 = arith.maximumf %19, %20 : vector<2x512xf32>
    %22 = arith.truncf %21 : vector<2x512xf32> to vector<2x512xbf16>
    %c0_17 = arith.constant 0 : index
    %c0_18 = arith.constant 0 : index
    %23 = vector.load %arg8[%c0_17, %c0_18] : memref<512x896xbf16, #tpu.memory_space<vmem>>, vector<512x896xbf16>
    %cst_19 = arith.constant dense<0.000000e+00> : vector<2x896xf32>
    %24 = tpu.matmul %22, %23, %cst_19 {dimension_numbers = #tpu.dot_dimension_numbers<[1], [0], [0], [1], [0, 0, 1, 1], [], []>} : vector<2x512xbf16>, vector<512x896xbf16>, vector<2x896xf32> -> vector<2x896xf32>
    %c0_20 = arith.constant 0 : index
    %c0_21 = arith.constant 0 : index
    %25 = vector.load %arg9[%c0_20, %c0_21] : memref<1x896xf32, #tpu.memory_space<vmem>>, vector<1x896xf32>
    %26 = vector.broadcast %25 : vector<1x896xf32> to vector<2x896xf32>
    %27 = arith.addf %24, %26 : vector<2x896xf32>
    %28 = arith.negf %27 : vector<2x896xf32>
    %29 = math.exp %28 : vector<2x896xf32>
    %cst_22 = arith.constant 1.000000e+00 : f32
    %30 = vector.broadcast %cst_22 : f32 to vector<2x896xf32>
    %31 = arith.addf %30, %29 : vector<2x896xf32>
    %32 = arith.divf %30, %31 : vector<2x896xf32>
    %c0_23 = arith.constant 0 : index
    %c0_24 = arith.constant 0 : index
    %33 = vector.load %arg10[%c0_23, %c0_24] : memref<2x896xf32, #tpu.memory_space<vmem>>, vector<2x896xf32>
    tpu.vector_store %arg10[%c0_23, %c0_24], %32 {strides = array<i32>} : memref<2x896xf32, #tpu.memory_space<vmem>>, vector<2x896xf32>,
    return
  }
  func.func @transform_0(%arg0: i32) -> (i32, i32) {
    %c0_i32 = arith.constant 0 : i32
    %c0_i32_0 = arith.constant 0 : i32
    return %arg0, %c0_i32 : i32, i32
  }
  func.func @transform_1(%arg0: i32) -> (i32, i32) {
    %c0_i32 = arith.constant 0 : i32
    %c0_i32_0 = arith.constant 0 : i32
    %c0_i32_1 = arith.constant 0 : i32
    return %c0_i32, %c0_i32_0 : i32, i32
  }
  func.func @transform_2(%arg0: i32) -> (i32, i32) {
    %c0_i32 = arith.constant 0 : i32
    %c0_i32_0 = arith.constant 0 : i32
    %c0_i32_1 = arith.constant 0 : i32
    return %c0_i32, %c0_i32_0 : i32, i32
  }
  func.func @transform_3(%arg0: i32) -> (i32, i32) {
    %c0_i32 = arith.constant 0 : i32
    %c0_i32_0 = arith.constant 0 : i32
    %c0_i32_1 = arith.constant 0 : i32
    return %c0_i32, %c0_i32_0 : i32, i32
  }
  func.func @transform_4(%arg0: i32) -> (i32, i32) {
    %c0_i32 = arith.constant 0 : i32
    %c0_i32_0 = arith.constant 0 : i32
    %c0_i32_1 = arith.constant 0 : i32
    return %c0_i32, %c0_i32_0 : i32, i32
  }
  func.func @transform_5(%arg0: i32) -> (i32, i32) {
    %c0_i32 = arith.constant 0 : i32
    %c0_i32_0 = arith.constant 0 : i32
    %c0_i32_1 = arith.constant 0 : i32
    return %c0_i32, %c0_i32_0 : i32, i32
  }
  func.func @transform_6(%arg0: i32) -> (i32, i32) {
    %c0_i32 = arith.constant 0 : i32
    %c0_i32_0 = arith.constant 0 : i32
    %c0_i32_1 = arith.constant 0 : i32
    return %c0_i32, %c0_i32_0 : i32, i32
  }
  func.func @transform_7(%arg0: i32) -> (i32, i32) {
    %c0_i32 = arith.constant 0 : i32
    %c0_i32_0 = arith.constant 0 : i32
    %c0_i32_1 = arith.constant 0 : i32
    return %c0_i32, %c0_i32_0 : i32, i32
  }
  func.func @transform_8(%arg0: i32) -> (i32, i32) {
    %c0_i32 = arith.constant 0 : i32
    %c0_i32_0 = arith.constant 0 : i32
    %c0_i32_1 = arith.constant 0 : i32
    return %c0_i32, %c0_i32_0 : i32, i32
  }
  func.func @transform_9(%arg0: i32) -> (i32, i32) {
    %c0_i32 = arith.constant 0 : i32
    %c0_i32_0 = arith.constant 0 : i32
    return %arg0, %c0_i32 : i32, i32
  }
}

</mosaic_0001>

<llo_original>
// kernel: linear_ae_forward.1
$region0: #{linear_ae_forward.1}
  #allocation0 [shape = 'u32[]', space=smem, size = 0x4, offset = 0x4, fixed_abs, tag = 'smem constant byte address 0x4 - core index']
  #allocation1 [shape = 'u32[144,128]{1,0:T(1,128)}', space=vmem, size = 0x12000, scoped, tag = 'internal scratch']
  %s0 = inlined_call_operand.vmem [shape: bf16[2,896], index: 0, kind: input, shape index: {}]
  %s1 = inlined_call_operand.hbm [shape: bf16[896,512], index: 1, kind: input, shape index: {}]
  %s2 = inlined_call_operand.vmem [shape: f32[1,512], index: 2, kind: input, shape index: {}]
  %s3 = inlined_call_operand.hbm [shape: bf16[512,128], index: 3, kind: input, shape index: {}]
  %s4 = inlined_call_operand.vmem [shape: f32[1,128], index: 4, kind: input, shape index: {}]
  %s5 = inlined_call_operand.hbm [shape: bf16[128,512], index: 5, kind: input, shape index: {}]
  %s6 = inlined_call_operand.vmem [shape: f32[1,512], index: 6, kind: input, shape index: {}]
  %s7 = inlined_call_operand.hbm [shape: bf16[512,896], index: 7, kind: input, shape index: {}]
  %s8 = inlined_call_operand.vmem [shape: f32[1,896], index: 8, kind: input, shape index: {}]
  %s9 = inlined_call_operand.vmem [shape: f32[2,896], index: 9, kind: output, shape index: {}]
  %s10 = sld [smem:[#allocation0]]
  $region62: #{linear_ae_forward.1} parent=0
    _
  %s12 = ssub.s32 1, %s10
  %s13 = scalar_select 0, %s12, %s10
  $region1: #{linear_ae_forward.1} parent=0
    #allocation2 [shape = 'u8[917504]{0}', space=vmem, size = 0xe0000, scoped, tag = 'input window, operand 1, single buffered']
    #allocation3 [shape = 's32[1]{0}', space=sflag, size = 0x4, scoped, tag = 'scoped memory for linear_ae_forward.1']
    #allocation4 [shape = 'u8[131072]{0}', space=vmem, size = 0x20000, scoped, tag = 'input window, operand 3, single buffered']
    #allocation5 [shape = 's32[1]{0}', space=sflag, size = 0x4, scoped, tag = 'scoped memory for linear_ae_forward.1']
    #allocation6 [shape = 'u8[131072]{0}', space=vmem, size = 0x20000, scoped, tag = 'input window, operand 5, single buffered']
    #allocation7 [shape = 'u8[917504]{0}', space=vmem, size = 0xe0000, scoped, tag = 'input window, operand 7, single buffered']
    #allocation8 [shape = 's32[1]{0}', space=sflag, size = 0x4, scoped, tag = 'scoped memory for linear_ae_forward.1']
    %14 = vsyncpa [#allocation3], 0
    %15 = vsyncpa [#allocation5], 0
    %16 = vsyncpa [#allocation8], 0
    // Predicated region
    $region2: #{linear_ae_forward.1} parent=1 // pred_check
      _
    $region3: #{linear_ae_forward.1} parent=1 // pred_check_branch
      %18 = sbr.rel (0) target = $region5
    $region4: #{linear_ae_forward.1} parent=1 // pred_region
      _
    $region5: #{linear_ae_forward.1} parent=1 // pred_fallthru
      _
    // Predicated region
    $region6: #{linear_ae_forward.1} parent=1 // pred_check
      _
    $region7: #{linear_ae_forward.1} parent=1 // pred_check_branch
      %20 = sbr.rel (0) target = $region9
    $region8: #{linear_ae_forward.1} parent=1 // pred_region
      %s22 = ssub.s32 28672, 28672
      %23 = vsyncadd [#allocation3], %s22
      %s24 = sshll.u32 [#allocation2], 4
      %s25 = int_to_ptr.vmem [resolvable:$true] %s24
      %30 = dma.hbm_to_vmem [thread:$0]  %s1, 28672, %s25, [#allocation3], 256, 256, 16
    $region9: #{linear_ae_forward.1} parent=1 // pred_fallthru
      _
    // Predicated region
    $region10: #{linear_ae_forward.1} parent=1 // pred_check
      _
    $region11: #{linear_ae_forward.1} parent=1 // pred_check_branch
      %32 = sbr.rel (0) target = $region13
    $region12: #{linear_ae_forward.1} parent=1 // pred_region
      _
    $region13: #{linear_ae_forward.1} parent=1 // pred_fallthru
      _
    // Predicated region
    $region14: #{linear_ae_forward.1} parent=1 // pred_check
      _
    $region15: #{linear_ae_forward.1} parent=1 // pred_check_branch
      %34 = sbr.rel (0) target = $region17
    $region16: #{linear_ae_forward.1} parent=1 // pred_region
      %s36 = ssub.s32 4096, 4096
      %37 = vsyncadd [#allocation5], %s36
      %s38 = sshll.u32 [#allocation4], 4
      %s39 = int_to_ptr.vmem [resolvable:$true] %s38
      %44 = dma.hbm_to_vmem [thread:$0]  %s3, 4096, %s39, [#allocation5], 64, 64, 4
    $region17: #{linear_ae_forward.1} parent=1 // pred_fallthru
      _
    // Predicated region
    $region18: #{linear_ae_forward.1} parent=1 // pred_check
      _
    $region19: #{linear_ae_forward.1} parent=1 // pred_check_branch
      %46 = sbr.rel (0) target = $region21
    $region20: #{linear_ae_forward.1} parent=1 // pred_region
      _
    $region21: #{linear_ae_forward.1} parent=1 // pred_fallthru
      _
    // Predicated region
    $region22: #{linear_ae_forward.1} parent=1 // pred_check
      _
    $region23: #{linear_ae_forward.1} parent=1 // pred_check_branch
      %48 = sbr.rel (0) target = $region25
    $region24: #{linear_ae_forward.1} parent=1 // pred_region
      %s50 = ssub.s32 4096, 4096
      %51 = vsyncadd [#allocation5], %s50
      %s52 = sshll.u32 [#allocation6], 4
      %s53 = int_to_ptr.vmem [resolvable:$true] %s52
      %58 = dma.hbm_to_vmem [thread:$0]  %s5, 4096, %s53, [#allocation5], 256, 256, 16
    $region25: #{linear_ae_forward.1} parent=1 // pred_fallthru
      _
    // Predicated region
    $region26: #{linear_ae_forward.1} parent=1 // pred_check
      _
    $region27: #{linear_ae_forward.1} parent=1 // pred_check_branch
      %60 = sbr.rel (0) target = $region29
    $region28: #{linear_ae_forward.1} parent=1 // pred_region
      _
    $region29: #{linear_ae_forward.1} parent=1 // pred_fallthru
      _
    // Predicated region
    $region30: #{linear_ae_forward.1} parent=1 // pred_check
      _
    $region31: #{linear_ae_forward.1} parent=1 // pred_check_branch
      %62 = sbr.rel (0) target = $region33
    $region32: #{linear_ae_forward.1} parent=1 // pred_region
      %s64 = ssub.s32 28672, 28672
      %65 = vsyncadd [#allocation8], %s64
      %s66 = sshll.u32 [#allocation7], 4
      %s67 = int_to_ptr.vmem [resolvable:$true] %s66
      %72 = dma.hbm_to_vmem [thread:$0]  %s7, 28672, %s67, [#allocation8], 448, 448, 28
    $region33: #{linear_ae_forward.1} parent=1 // pred_fallthru
      _
    // Predicated region
    $region34: #{linear_ae_forward.1} parent=1 // pred_check
      _
    $region35: #{linear_ae_forward.1} parent=1 // pred_check_branch
      %74 = sbr.rel (0) target = $region37
    $region36: #{linear_ae_forward.1} parent=1 // pred_region
      _
    $region37: #{linear_ae_forward.1} parent=1 // pred_fallthru
      _
    // Predicated region
    $region38: #{linear_ae_forward.1} parent=1 // pred_check
      _
    $region39: #{linear_ae_forward.1} parent=1 // pred_check_branch
      %76 = sbr.rel (0) target = $region41
    $region40: #{linear_ae_forward.1} parent=1 // pred_region
      %77 = dma.done [#allocation3], 28672
    $region41: #{linear_ae_forward.1} parent=1 // pred_fallthru
      _
    // Predicated region
    $region42: #{linear_ae_forward.1} parent=1 // pred_check
      _
    $region43: #{linear_ae_forward.1} parent=1 // pred_check_branch
      %79 = sbr.rel (0) target = $region45
    $region44: #{linear_ae_forward.1} parent=1 // pred_region
      %80 = dma.done [#allocation5], 4096
    $region45: #{linear_ae_forward.1} parent=1 // pred_fallthru
      _
    // Predicated region
    $region46: #{linear_ae_forward.1} parent=1 // pred_check
      _
    $region47: #{linear_ae_forward.1} parent=1 // pred_check_branch
      %82 = sbr.rel (0) target = $region49
    $region48: #{linear_ae_forward.1} parent=1 // pred_region
      %83 = dma.done [#allocation5], 4096
    $region49: #{linear_ae_forward.1} parent=1 // pred_fallthru
      _
    // Predicated region
    $region50: #{linear_ae_forward.1} parent=1 // pred_check
      _
    $region51: #{linear_ae_forward.1} parent=1 // pred_check_branch
      %85 = sbr.rel (0) target = $region53
    $region52: #{linear_ae_forward.1} parent=1 // pred_region
      %86 = dma.done [#allocation8], 28672
    $region53: #{linear_ae_forward.1} parent=1 // pred_fallthru
      _
    %v88 = vld [vmem:[%s0] sm:$0x7f]
    %v89 = vld [vmem:[#allocation2] sm:$0xff]
    %v90 = vld [vmem:[#allocation2 + $0x8] sm:$0xff]
    %v91 = vld [vmem:[#allocation2 + $0x10] sm:$0xff]
    %v92 = vld [vmem:[#allocation2 + $0x18] sm:$0xff]
    %v93 = vld [vmem:[#allocation2 + $0x20] sm:$0xff]
    %v94 = vld [vmem:[#allocation2 + $0x28] sm:$0xff]
    %v95 = vld [vmem:[#allocation2 + $0x30] sm:$0xff]
    %v96 = vld [vmem:[#allocation2 + $0x38] sm:$0xff]
    %v97 = vld [vmem:[#allocation2 + $0x40] sm:$0xff]
    %v98 = vld [vmem:[#allocation2 + $0x48] sm:$0xff]
    %v99 = vld [vmem:[#allocation2 + $0x50] sm:$0xff]
    %v100 = vld [vmem:[#allocation2 + $0x58] sm:$0xff]
    %v101 = vld [vmem:[#allocation2 + $0x60] sm:$0xff]
    %v102 = vld [vmem:[#allocation2 + $0x68] sm:$0xff]
    %v103 = vld [vmem:[#allocation2 + $0x70] sm:$0xff]
    %v104 = vld [vmem:[#allocation2 + $0x78] sm:$0xff]
    %v105 = vld [vmem:[#allocation2 + $0x80] sm:$0xff]
    %v106 = vld [vmem:[#allocation2 + $0x88] sm:$0xff]
    %v107 = vld [vmem:[#allocation2 + $0x90] sm:$0xff]
    %v108 = vld [vmem:[#allocation2 + $0x98] sm:$0xff]
    %v109 = vld [vmem:[#allocation2 + $0xa0] sm:$0xff]
    %v110 = vld [vmem:[#allocation2 + $0xa8] sm:$0xff]
    %v111 = vld [vmem:[#allocation2 + $0xb0] sm:$0xff]
    %v112 = vld [vmem:[#allocation2 + $0xb8] sm:$0xff]
    %v113 = vld [vmem:[#allocation2 + $0xc0] sm:$0xff]
    %v114 = vld [vmem:[#allocation2 + $0xc8] sm:$0xff]
    %v115 = vld [vmem:[#allocation2 + $0xd0] sm:$0xff]
    %v116 = vld [vmem:[#allocation2 + $0xd8] sm:$0xff]
    %v117 = vld [vmem:[#allocation2 + $0xe0] sm:$0xff]
    %v118 = vld [vmem:[#allocation2 + $0xe8] sm:$0xff]
    %v119 = vld [vmem:[#allocation2 + $0xf0] sm:$0xff]
    %v120 = vld [vmem:[#allocation2 + $0xf8] sm:$0xff]
    %v121 = vld [vmem:[#allocation2 + $0x100] sm:$0xff]
    %v122 = vld [vmem:[#allocation2 + $0x108] sm:$0xff]
    %v123 = vld [vmem:[#allocation2 + $0x110] sm:$0xff]
    %v124 = vld [vmem:[#allocation2 + $0x118] sm:$0xff]
    %v125 = vld [vmem:[#allocation2 + $0x120] sm:$0xff]
    %v126 = vld [vmem:[#allocation2 + $0x128] sm:$0xff]
    %v127 = vld [vmem:[#allocation2 + $0x130] sm:$0xff]
    %v128 = vld [vmem:[#allocation2 + $0x138] sm:$0xff]
    %v129 = vld [vmem:[#allocation2 + $0x140] sm:$0xff]
    %v130 = vld [vmem:[#allocation2 + $0x148] sm:$0xff]
    %v131 = vld [vmem:[#allocation2 + $0x150] sm:$0xff]
    %v132 = vld [vmem:[#allocation2 + $0x158] sm:$0xff]
    %v133 = vld [vmem:[#allocation2 + $0x160] sm:$0xff]
    %v134 = vld [vmem:[#allocation2 + $0x168] sm:$0xff]
    %v135 = vld [vmem:[#allocation2 + $0x170] sm:$0xff]
    %v136 = vld [vmem:[#allocation2 + $0x178] sm:$0xff]
    %v137 = vld [vmem:[#allocation2 + $0x180] sm:$0xff]
    %v138 = vld [vmem:[#allocation2 + $0x188] sm:$0xff]
    %v139 = vld [vmem:[#allocation2 + $0x190] sm:$0xff]
    %v140 = vld [vmem:[#allocation2 + $0x198] sm:$0xff]
    %v141 = vld [vmem:[#allocation2 + $0x1a0] sm:$0xff]
    %v142 = vld [vmem:[#allocation2 + $0x1a8] sm:$0xff]
    %v143 = vld [vmem:[#allocation2 + $0x1b0] sm:$0xff]
    %v144 = vld [vmem:[#allocation2 + $0x1b8] sm:$0xff]
    %v145 = vld [vmem:[#allocation2 + $0x1c0] sm:$0xff]
    %v146 = vld [vmem:[#allocation2 + $0x1c8] sm:$0xff]
    %v147 = vld [vmem:[#allocation2 + $0x1d0] sm:$0xff]
    %v148 = vld [vmem:[#allocation2 + $0x1d8] sm:$0xff]
    %v149 = vld [vmem:[#allocation2 + $0x1e0] sm:$0xff]
    %v150 = vld [vmem:[#allocation2 + $0x1e8] sm:$0xff]
    %v151 = vld [vmem:[#allocation2 + $0x1f0] sm:$0xff]
    %v152 = vld [vmem:[#allocation2 + $0x1f8] sm:$0xff]
    %v153 = vld [vmem:[#allocation2 + $0x200] sm:$0xff]
    %v154 = vld [vmem:[#allocation2 + $0x208] sm:$0xff]
    %v155 = vld [vmem:[#allocation2 + $0x210] sm:$0xff]
    %v156 = vld [vmem:[#allocation2 + $0x218] sm:$0xff]
    %v157 = vld [vmem:[#allocation2 + $0x220] sm:$0xff]
    %v158 = vld [vmem:[#allocation2 + $0x228] sm:$0xff]
    %v159 = vld [vmem:[#allocation2 + $0x230] sm:$0xff]
    %v160 = vld [vmem:[#allocation2 + $0x238] sm:$0xff]
    %v161 = vld [vmem:[#allocation2 + $0x240] sm:$0xff]
    %v162 = vld [vmem:[#allocation2 + $0x248] sm:$0xff]
    %v163 = vld [vmem:[#allocation2 + $0x250] sm:$0xff]
    %v164 = vld [vmem:[#allocation2 + $0x258] sm:$0xff]
    %v165 = vld [vmem:[#allocation2 + $0x260] sm:$0xff]
    %v166 = vld [vmem:[#allocation2 + $0x268] sm:$0xff]
    %v167 = vld [vmem:[#allocation2 + $0x270] sm:$0xff]
    %v168 = vld [vmem:[#allocation2 + $0x278] sm:$0xff]
    %v169 = vld [vmem:[#allocation2 + $0x280] sm:$0xff]
    %v170 = vld [vmem:[#allocation2 + $0x288] sm:$0xff]
    %v171 = vld [vmem:[#allocation2 + $0x290] sm:$0xff]
    %v172 = vld [vmem:[#allocation2 + $0x298] sm:$0xff]
    %v173 = vld [vmem:[#allocation2 + $0x2a0] sm:$0xff]
    %v174 = vld [vmem:[#allocation2 + $0x2a8] sm:$0xff]
    %v175 = vld [vmem:[#allocation2 + $0x2b0] sm:$0xff]
    %v176 = vld [vmem:[#allocation2 + $0x2b8] sm:$0xff]
    %v177 = vld [vmem:[#allocation2 + $0x2c0] sm:$0xff]
    %v178 = vld [vmem:[#allocation2 + $0x2c8] sm:$0xff]
    %v179 = vld [vmem:[#allocation2 + $0x2d0] sm:$0xff]
    %v180 = vld [vmem:[#allocation2 + $0x2d8] sm:$0xff]
    %v181 = vld [vmem:[#allocation2 + $0x2e0] sm:$0xff]
    %v182 = vld [vmem:[#allocation2 + $0x2e8] sm:$0xff]
    %v183 = vld [vmem:[#allocation2 + $0x2f0] sm:$0xff]
    %v184 = vld [vmem:[#allocation2 + $0x2f8] sm:$0xff]
    %v185 = vld [vmem:[#allocation2 + $0x300] sm:$0xff]
    %v186 = vld [vmem:[#allocation2 + $0x308] sm:$0xff]
    %v187 = vld [vmem:[#allocation2 + $0x310] sm:$0xff]
    %v188 = vld [vmem:[#allocation2 + $0x318] sm:$0xff]
    %v189 = vld [vmem:[#allocation2 + $0x320] sm:$0xff]
    %v190 = vld [vmem:[#allocation2 + $0x328] sm:$0xff]
    %v191 = vld [vmem:[#allocation2 + $0x330] sm:$0xff]
    %v192 = vld [vmem:[#allocation2 + $0x338] sm:$0xff]
    %v193 = vld [vmem:[#allocation2 + $0x340] sm:$0xff]
    %v194 = vld [vmem:[#allocation2 + $0x348] sm:$0xff]
    %v195 = vld [vmem:[#allocation2 + $0x350] sm:$0xff]
    %v196 = vld [vmem:[#allocation2 + $0x358] sm:$0xff]
    %v197 = vld [vmem:[#allocation2 + $0x360] sm:$0xff]
    %v198 = vld [vmem:[#allocation2 + $0x368] sm:$0xff]
    %v199 = vld [vmem:[#allocation2 + $0x370] sm:$0xff]
    %v200 = vld [vmem:[#allocation2 + $0x378] sm:$0xff]
    %v201 = vld [vmem:[#allocation2 + $0x380] sm:$0xff]
    %v202 = vld [vmem:[#allocation2 + $0x388] sm:$0xff]
    %v203 = vld [vmem:[#allocation2 + $0x390] sm:$0xff]
    %v204 = vld [vmem:[#allocation2 + $0x398] sm:$0xff]
    %v205 = vld [vmem:[#allocation2 + $0x3a0] sm:$0xff]
    %v206 = vld [vmem:[#allocation2 + $0x3a8] sm:$0xff]
    %v207 = vld [vmem:[#allocation2 + $0x3b0] sm:$0xff]
    %v208 = vld [vmem:[#allocation2 + $0x3b8] sm:$0xff]
    %v209 = vld [vmem:[#allocation2 + $0x3c0] sm:$0xff]
    %v210 = vld [vmem:[#allocation2 + $0x3c8] sm:$0xff]
    %v211 = vld [vmem:[#allocation2 + $0x3d0] sm:$0xff]
    %v212 = vld [vmem:[#allocation2 + $0x3d8] sm:$0xff]
    %v213 = vld [vmem:[#allocation2 + $0x3e0] sm:$0xff]
    %v214 = vld [vmem:[#allocation2 + $0x3e8] sm:$0xff]
    %v215 = vld [vmem:[#allocation2 + $0x3f0] sm:$0xff]
    %v216 = vld [vmem:[#allocation2 + $0x3f8] sm:$0xff]
    %v217 = vld [vmem:[#allocation2 + $0x400] sm:$0xff]
    %v218 = vld [vmem:[#allocation2 + $0x408] sm:$0xff]
    %v219 = vld [vmem:[#allocation2 + $0x410] sm:$0xff]
    %v220 = vld [vmem:[#allocation2 + $0x418] sm:$0xff]
    %v221 = vld [vmem:[#allocation2 + $0x420] sm:$0xff]
    %v222 = vld [vmem:[#allocation2 + $0x428] sm:$0xff]
    %v223 = vld [vmem:[#allocation2 + $0x430] sm:$0xff]
    %v224 = vld [vmem:[#allocation2 + $0x438] sm:$0xff]
    %v225 = vld [vmem:[#allocation2 + $0x440] sm:$0xff]
    %v226 = vld [vmem:[#allocation2 + $0x448] sm:$0xff]
    %v227 = vld [vmem:[#allocation2 + $0x450] sm:$0xff]
    %v228 = vld [vmem:[#allocation2 + $0x458] sm:$0xff]
    %v229 = vld [vmem:[#allocation2 + $0x460] sm:$0xff]
    %v230 = vld [vmem:[#allocation2 + $0x468] sm:$0xff]
    %v231 = vld [vmem:[#allocation2 + $0x470] sm:$0xff]
    %v232 = vld [vmem:[#allocation2 + $0x478] sm:$0xff]
    %v233 = vld [vmem:[#allocation2 + $0x480] sm:$0xff]
    %v234 = vld [vmem:[#allocation2 + $0x488] sm:$0xff]
    %v235 = vld [vmem:[#allocation2 + $0x490] sm:$0xff]
    %v236 = vld [vmem:[#allocation2 + $0x498] sm:$0xff]
    %v237 = vld [vmem:[#allocation2 + $0x4a0] sm:$0xff]
    %v238 = vld [vmem:[#allocation2 + $0x4a8] sm:$0xff]
    %v239 = vld [vmem:[#allocation2 + $0x4b0] sm:$0xff]
    %v240 = vld [vmem:[#allocation2 + $0x4b8] sm:$0xff]
    %v241 = vld [vmem:[#allocation2 + $0x4c0] sm:$0xff]
    %v242 = vld [vmem:[#allocation2 + $0x4c8] sm:$0xff]
    %v243 = vld [vmem:[#allocation2 + $0x4d0] sm:$0xff]
    %v244 = vld [vmem:[#allocation2 + $0x4d8] sm:$0xff]
    %v245 = vld [vmem:[#allocation2 + $0x4e0] sm:$0xff]
    %v246 = vld [vmem:[#allocation2 + $0x4e8] sm:$0xff]
    %v247 = vld [vmem:[#allocation2 + $0x4f0] sm:$0xff]
    %v248 = vld [vmem:[#allocation2 + $0x4f8] sm:$0xff]
    %v249 = vld [vmem:[#allocation2 + $0x500] sm:$0xff]
    %v250 = vld [vmem:[#allocation2 + $0x508] sm:$0xff]
    %v251 = vld [vmem:[#allocation2 + $0x510] sm:$0xff]
    %v252 = vld [vmem:[#allocation2 + $0x518] sm:$0xff]
    %v253 = vld [vmem:[#allocation2 + $0x520] sm:$0xff]
    %v254 = vld [vmem:[#allocation2 + $0x528] sm:$0xff]
    %v255 = vld [vmem:[#allocation2 + $0x530] sm:$0xff]
    %v256 = vld [vmem:[#allocation2 + $0x538] sm:$0xff]
    %v257 = vld [vmem:[#allocation2 + $0x540] sm:$0xff]
    %v258 = vld [vmem:[#allocation2 + $0x548] sm:$0xff]
    %v259 = vld [vmem:[#allocation2 + $0x550] sm:$0xff]
    %v260 = vld [vmem:[#allocation2 + $0x558] sm:$0xff]
    %v261 = vld [vmem:[#allocation2 + $0x560] sm:$0xff]
    %v262 = vld [vmem:[#allocation2 + $0x568] sm:$0xff]
    %v263 = vld [vmem:[#allocation2 + $0x570] sm:$0xff]
    %v264 = vld [vmem:[#allocation2 + $0x578] sm:$0xff]
    %v265 = vld [vmem:[#allocation2 + $0x580] sm:$0xff]
    %v266 = vld [vmem:[#allocation2 + $0x588] sm:$0xff]
    %v267 = vld [vmem:[#allocation2 + $0x590] sm:$0xff]
    %v268 = vld [vmem:[#allocation2 + $0x598] sm:$0xff]
    %v269 = vld [vmem:[#allocation2 + $0x5a0] sm:$0xff]
    %v270 = vld [vmem:[#allocation2 + $0x5a8] sm:$0xff]
    %v271 = vld [vmem:[#allocation2 + $0x5b0] sm:$0xff]
    %v272 = vld [vmem:[#allocation2 + $0x5b8] sm:$0xff]
    %v273 = vld [vmem:[#allocation2 + $0x5c0] sm:$0xff]
    %v274 = vld [vmem:[#allocation2 + $0x5c8] sm:$0xff]
    %v275 = vld [vmem:[#allocation2 + $0x5d0] sm:$0xff]
    %v276 = vld [vmem:[#allocation2 + $0x5d8] sm:$0xff]
    %v277 = vld [vmem:[#allocation2 + $0x5e0] sm:$0xff]
    %v278 = vld [vmem:[#allocation2 + $0x5e8] sm:$0xff]
    %v279 = vld [vmem:[#allocation2 + $0x5f0] sm:$0xff]
    %v280 = vld [vmem:[#allocation2 + $0x5f8] sm:$0xff]
    %v281 = vld [vmem:[#allocation2 + $0x600] sm:$0xff]
    %v282 = vld [vmem:[#allocation2 + $0x608] sm:$0xff]
    %v283 = vld [vmem:[#allocation2 + $0x610] sm:$0xff]
    %v284 = vld [vmem:[#allocation2 + $0x618] sm:$0xff]
    %v285 = vld [vmem:[#allocation2 + $0x620] sm:$0xff]
    %v286 = vld [vmem:[#allocation2 + $0x628] sm:$0xff]
    %v287 = vld [vmem:[#allocation2 + $0x630] sm:$0xff]
    %v288 = vld [vmem:[#allocation2 + $0x638] sm:$0xff]
    %v289 = vld [vmem:[#allocation2 + $0x640] sm:$0xff]
    %v290 = vld [vmem:[#allocation2 + $0x648] sm:$0xff]
    %v291 = vld [vmem:[#allocation2 + $0x650] sm:$0xff]
    %v292 = vld [vmem:[#allocation2 + $0x658] sm:$0xff]
    %v293 = vld [vmem:[#allocation2 + $0x660] sm:$0xff]
    %v294 = vld [vmem:[#allocation2 + $0x668] sm:$0xff]
    %v295 = vld [vmem:[#allocation2 + $0x670] sm:$0xff]
    %v296 = vld [vmem:[#allocation2 + $0x678] sm:$0xff]
    %v297 = vld [vmem:[#allocation2 + $0x680] sm:$0xff]
    %v298 = vld [vmem:[#allocation2 + $0x688] sm:$0xff]
    %v299 = vld [vmem:[#allocation2 + $0x690] sm:$0xff]
    %v300 = vld [vmem:[#allocation2 + $0x698] sm:$0xff]
    %v301 = vld [vmem:[#allocation2 + $0x6a0] sm:$0xff]
    %v302 = vld [vmem:[#allocation2 + $0x6a8] sm:$0xff]
    %v303 = vld [vmem:[#allocation2 + $0x6b0] sm:$0xff]
    %v304 = vld [vmem:[#allocation2 + $0x6b8] sm:$0xff]
    %v305 = vld [vmem:[#allocation2 + $0x6c0] sm:$0xff]
    %v306 = vld [vmem:[#allocation2 + $0x6c8] sm:$0xff]
    %v307 = vld [vmem:[#allocation2 + $0x6d0] sm:$0xff]
    %v308 = vld [vmem:[#allocation2 + $0x6d8] sm:$0xff]
    %v309 = vld [vmem:[#allocation2 + $0x6e0] sm:$0xff]
    %v310 = vld [vmem:[#allocation2 + $0x6e8] sm:$0xff]
    %v311 = vld [vmem:[#allocation2 + $0x6f0] sm:$0xff]
    %v312 = vld [vmem:[#allocation2 + $0x6f8] sm:$0xff]
    %v313 = vld [vmem:[%s2] sm:$0xf]
    %v315 = vlaneseq
    %v316 = vshrl.u32 %v315, 7
    %v317 = vsub.s32 0, %v316
    %v318 = vrot.slane %v313, %v317
    %v319 = vlaneseq
    %v320 = vshrl.u32 %v319, 7
    %v321 = vsub.s32 1, %v320
    %v322 = vrot.slane %v313, %v321
    %v323 = vlaneseq
    %v324 = vshrl.u32 %v323, 7
    %v325 = vsub.s32 2, %v324
    %v326 = vrot.slane %v313, %v325
    %v327 = vlaneseq
    %v328 = vshrl.u32 %v327, 7
    %v329 = vsub.s32 3, %v328
    %v330 = vrot.slane %v313, %v329
    %v336 = vcombine.high %v88, %v88
    %v338 = vunpack.c.l.s4 1966171168
    %v339 = vunpack.c.0.s8 %v338
    %v340 = vlaneseq
    %v341 = vshrl.u32 %v340, 7
    %v342 = vsub.s32 %v339, %v341
    %v343 = vrot.slane %v88, %v342
    %v345 = vunpack.c.l.s4 1966171168
    %v346 = vunpack.c.0.s8 %v345
    %v347 = vlaneseq
    %v348 = vshrl.u32 %v347, 7
    %v349 = vsub.s32 %v346, %v348
    %v350 = vrot.slane %v336, %v349
    %v351 = vcombine.high %v343, %v343
    %v352 = vcombine.high %v350, %v350
    %v354 = vunpack.c.l.s4 1966171168
    %v355 = vunpack.c.0.s8 %v354
    %v356 = vlaneseq
    %v357 = vshrl.u32 %v356, 7
    %v358 = vsub.s32 %v355, %v357
    %v359 = vrot.slane %v343, %v358
    %v361 = vunpack.c.l.s4 1966171168
    %v362 = vunpack.c.0.s8 %v361
    %v363 = vlaneseq
    %v364 = vshrl.u32 %v363, 7
    %v365 = vsub.s32 %v362, %v364
    %v366 = vrot.slane %v350, %v365
    %v368 = vunpack.c.l.s4 1966171168
    %v369 = vunpack.c.0.s8 %v368
    %v370 = vlaneseq
    %v371 = vshrl.u32 %v370, 7
    %v372 = vsub.s32 %v369, %v371
    %v373 = vrot.slane %v351, %v372
    %v375 = vunpack.c.l.s4 1966171168
    %v376 = vunpack.c.0.s8 %v375
    %v377 = vlaneseq
    %v378 = vshrl.u32 %v377, 7
    %v379 = vsub.s32 %v376, %v378
    %v380 = vrot.slane %v352, %v379
    %v381 = vcombine.high %v359, %v359
    %v382 = vcombine.high %v366, %v366
    %v383 = vcombine.high %v373, %v373
    %v615 = vunpack.c.l.b16 %v89
    %v616 = vunpack.c.h.b16 %v89
    %v617 = vunpack.c.l.b16 %v90
    %v618 = vunpack.c.h.b16 %v90
    %v619 = vunpack.c.l.b16 %v91
    %v620 = vunpack.c.h.b16 %v91
    %v621 = vunpack.c.l.b16 %v92
    %v622 = vunpack.c.h.b16 %v92
    %v623 = vunpack.c.l.b16 %v93
    %v624 = vunpack.c.h.b16 %v93
    %v625 = vunpack.c.l.b16 %v94
    %v626 = vunpack.c.h.b16 %v94
    %v627 = vunpack.c.l.b16 %v95
    %v628 = vunpack.c.h.b16 %v95
    %v629 = vunpack.c.l.b16 %v96
    %v630 = vunpack.c.h.b16 %v96
    %v631 = vunpack.c.l.b16 %v97
    %v632 = vunpack.c.h.b16 %v97
    %v633 = vunpack.c.l.b16 %v98
    %v634 = vunpack.c.h.b16 %v98
    %v635 = vunpack.c.l.b16 %v99
    %v636 = vunpack.c.h.b16 %v99
    %v637 = vunpack.c.l.b16 %v100
    %v638 = vunpack.c.h.b16 %v100
    %v639 = vunpack.c.l.b16 %v101
    %v640 = vunpack.c.h.b16 %v101
    %v641 = vunpack.c.l.b16 %v102
    %v642 = vunpack.c.h.b16 %v102
    %v643 = vunpack.c.l.b16 %v103
    %v644 = vunpack.c.h.b16 %v103
    %v645 = vunpack.c.l.b16 %v104
    %v646 = vunpack.c.h.b16 %v104
    %v647 = vunpack.c.l.b16 %v105
    %v648 = vunpack.c.h.b16 %v105
    %v649 = vunpack.c.l.b16 %v106
    %v650 = vunpack.c.h.b16 %v106
    %v651 = vunpack.c.l.b16 %v107
    %v652 = vunpack.c.h.b16 %v107
    %v653 = vunpack.c.l.b16 %v108
    %v654 = vunpack.c.h.b16 %v108
    %v655 = vunpack.c.l.b16 %v109
    %v656 = vunpack.c.h.b16 %v109
    %v657 = vunpack.c.l.b16 %v110
    %v658 = vunpack.c.h.b16 %v110
    %v659 = vunpack.c.l.b16 %v111
    %v660 = vunpack.c.h.b16 %v111
    %v661 = vunpack.c.l.b16 %v112
    %v662 = vunpack.c.h.b16 %v112
    %v663 = vunpack.c.l.b16 %v113
    %v664 = vunpack.c.h.b16 %v113
    %v665 = vunpack.c.l.b16 %v114
    %v666 = vunpack.c.h.b16 %v114
    %v667 = vunpack.c.l.b16 %v115
    %v668 = vunpack.c.h.b16 %v115
    %v669 = vunpack.c.l.b16 %v116
    %v670 = vunpack.c.h.b16 %v116
    %v671 = vunpack.c.l.b16 %v117
    %v672 = vunpack.c.h.b16 %v117
    %v673 = vunpack.c.l.b16 %v118
    %v674 = vunpack.c.h.b16 %v118
    %v675 = vunpack.c.l.b16 %v119
    %v676 = vunpack.c.h.b16 %v119
    %v677 = vunpack.c.l.b16 %v120
    %v678 = vunpack.c.h.b16 %v120
    %v679 = vunpack.c.l.b16 %v121
    %v680 = vunpack.c.h.b16 %v121
    %v681 = vunpack.c.l.b16 %v122
    %v682 = vunpack.c.h.b16 %v122
    %v683 = vunpack.c.l.b16 %v123
    %v684 = vunpack.c.h.b16 %v123
    %v685 = vunpack.c.l.b16 %v124
    %v686 = vunpack.c.h.b16 %v124
    %v687 = vunpack.c.l.b16 %v125
    %v688 = vunpack.c.h.b16 %v125
    %v689 = vunpack.c.l.b16 %v126
    %v690 = vunpack.c.h.b16 %v126
    %v691 = vunpack.c.l.b16 %v127
    %v692 = vunpack.c.h.b16 %v127
    %v693 = vunpack.c.l.b16 %v128
    %v694 = vunpack.c.h.b16 %v128
    %v695 = vunpack.c.l.b16 %v129
    %v696 = vunpack.c.h.b16 %v129
    %v697 = vunpack.c.l.b16 %v130
    %v698 = vunpack.c.h.b16 %v130
    %v699 = vunpack.c.l.b16 %v131
    %v700 = vunpack.c.h.b16 %v131
    %v701 = vunpack.c.l.b16 %v132
    %v702 = vunpack.c.h.b16 %v132
    %v703 = vunpack.c.l.b16 %v133
    %v704 = vunpack.c.h.b16 %v133
    %v705 = vunpack.c.l.b16 %v134
    %v706 = vunpack.c.h.b16 %v134
    %v707 = vunpack.c.l.b16 %v135
    %v708 = vunpack.c.h.b16 %v135
    %v709 = vunpack.c.l.b16 %v136
    %v710 = vunpack.c.h.b16 %v136
    %v711 = vunpack.c.l.b16 %v137
    %v712 = vunpack.c.h.b16 %v137
    %v713 = vunpack.c.l.b16 %v138
    %v714 = vunpack.c.h.b16 %v138
    %v715 = vunpack.c.l.b16 %v139
    %v716 = vunpack.c.h.b16 %v139
    %v717 = vunpack.c.l.b16 %v140
    %v718 = vunpack.c.h.b16 %v140
    %v719 = vunpack.c.l.b16 %v141
    %v720 = vunpack.c.h.b16 %v141
    %v721 = vunpack.c.l.b16 %v142
    %v722 = vunpack.c.h.b16 %v142
    %v723 = vunpack.c.l.b16 %v143
    %v724 = vunpack.c.h.b16 %v143
    %v725 = vunpack.c.l.b16 %v144
    %v726 = vunpack.c.h.b16 %v144
    %v727 = vunpack.c.l.b16 %v145
    %v728 = vunpack.c.h.b16 %v145
    %v729 = vunpack.c.l.b16 %v146
    %v730 = vunpack.c.h.b16 %v146
    %v731 = vunpack.c.l.b16 %v147
    %v732 = vunpack.c.h.b16 %v147
    %v733 = vunpack.c.l.b16 %v148
    %v734 = vunpack.c.h.b16 %v148
    %v735 = vunpack.c.l.b16 %v149
    %v736 = vunpack.c.h.b16 %v149
    %v737 = vunpack.c.l.b16 %v150
    %v738 = vunpack.c.h.b16 %v150
    %v739 = vunpack.c.l.b16 %v151
    %v740 = vunpack.c.h.b16 %v151
    %v741 = vunpack.c.l.b16 %v152
    %v742 = vunpack.c.h.b16 %v152
    %v743 = vunpack.c.l.b16 %v153
    %v744 = vunpack.c.h.b16 %v153
    %v745 = vunpack.c.l.b16 %v154
    %v746 = vunpack.c.h.b16 %v154
    %v747 = vunpack.c.l.b16 %v155
    %v748 = vunpack.c.h.b16 %v155
    %v749 = vunpack.c.l.b16 %v156
    %v750 = vunpack.c.h.b16 %v156
    %v751 = vunpack.c.l.b16 %v157
    %v752 = vunpack.c.h.b16 %v157
    %v753 = vunpack.c.l.b16 %v158
    %v754 = vunpack.c.h.b16 %v158
    %v755 = vunpack.c.l.b16 %v159
    %v756 = vunpack.c.h.b16 %v159
    %v757 = vunpack.c.l.b16 %v160
    %v758 = vunpack.c.h.b16 %v160
    %v759 = vunpack.c.l.b16 %v161
    %v760 = vunpack.c.h.b16 %v161
    %v761 = vunpack.c.l.b16 %v162
    %v762 = vunpack.c.h.b16 %v162
    %v763 = vunpack.c.l.b16 %v163
    %v764 = vunpack.c.h.b16 %v163
    %v765 = vunpack.c.l.b16 %v164
    %v766 = vunpack.c.h.b16 %v164
    %v767 = vunpack.c.l.b16 %v165
    %v768 = vunpack.c.h.b16 %v165
    %v769 = vunpack.c.l.b16 %v166
    %v770 = vunpack.c.h.b16 %v166
    %v771 = vunpack.c.l.b16 %v167
    %v772 = vunpack.c.h.b16 %v167
    %v773 = vunpack.c.l.b16 %v168
    %v774 = vunpack.c.h.b16 %v168
    %v775 = vunpack.c.l.b16 %v169
    %v776 = vunpack.c.h.b16 %v169
    %v777 = vunpack.c.l.b16 %v170
    %v778 = vunpack.c.h.b16 %v170
    %v779 = vunpack.c.l.b16 %v171
    %v780 = vunpack.c.h.b16 %v171
    %v781 = vunpack.c.l.b16 %v172
    %v782 = vunpack.c.h.b16 %v172
    %v783 = vunpack.c.l.b16 %v173
    %v784 = vunpack.c.h.b16 %v173
    %v785 = vunpack.c.l.b16 %v174
    %v786 = vunpack.c.h.b16 %v174
    %v787 = vunpack.c.l.b16 %v175
    %v788 = vunpack.c.h.b16 %v175
    %v789 = vunpack.c.l.b16 %v176
    %v790 = vunpack.c.h.b16 %v176
    %v791 = vunpack.c.l.b16 %v177
    %v792 = vunpack.c.h.b16 %v177
    %v793 = vunpack.c.l.b16 %v178
    %v794 = vunpack.c.h.b16 %v178
    %v795 = vunpack.c.l.b16 %v179
    %v796 = vunpack.c.h.b16 %v179
    %v797 = vunpack.c.l.b16 %v180
    %v798 = vunpack.c.h.b16 %v180
    %v799 = vunpack.c.l.b16 %v181
    %v800 = vunpack.c.h.b16 %v181
    %v801 = vunpack.c.l.b16 %v182
    %v802 = vunpack.c.h.b16 %v182
    %v803 = vunpack.c.l.b16 %v183
    %v804 = vunpack.c.h.b16 %v183
    %v805 = vunpack.c.l.b16 %v184
    %v806 = vunpack.c.h.b16 %v184
    %v807 = vunpack.c.l.b16 %v185
    %v808 = vunpack.c.h.b16 %v185
    %v809 = vunpack.c.l.b16 %v186
    %v810 = vunpack.c.h.b16 %v186
    %v811 = vunpack.c.l.b16 %v187
    %v812 = vunpack.c.h.b16 %v187
    %v813 = vunpack.c.l.b16 %v188
    %v814 = vunpack.c.h.b16 %v188
    %v815 = vunpack.c.l.b16 %v189
    %v816 = vunpack.c.h.b16 %v189
    %v817 = vunpack.c.l.b16 %v190
    %v818 = vunpack.c.h.b16 %v190
    %v819 = vunpack.c.l.b16 %v191
    %v820 = vunpack.c.h.b16 %v191
    %v821 = vunpack.c.l.b16 %v192
    %v822 = vunpack.c.h.b16 %v192
    %v823 = vunpack.c.l.b16 %v193
    %v824 = vunpack.c.h.b16 %v193
    %v825 = vunpack.c.l.b16 %v194
    %v826 = vunpack.c.h.b16 %v194
    %v827 = vunpack.c.l.b16 %v195
    %v828 = vunpack.c.h.b16 %v195
    %v829 = vunpack.c.l.b16 %v196
    %v830 = vunpack.c.h.b16 %v196
    %v831 = vunpack.c.l.b16 %v197
    %v832 = vunpack.c.h.b16 %v197
    %v833 = vunpack.c.l.b16 %v198
    %v834 = vunpack.c.h.b16 %v198
    %v835 = vunpack.c.l.b16 %v199
    %v836 = vunpack.c.h.b16 %v199
    %v837 = vunpack.c.l.b16 %v200
    %v838 = vunpack.c.h.b16 %v200
    %v839 = vunpack.c.l.b16 %v201
    %v840 = vunpack.c.h.b16 %v201
    %v841 = vunpack.c.l.b16 %v202
    %v842 = vunpack.c.h.b16 %v202
    %v843 = vunpack.c.l.b16 %v203
    %v844 = vunpack.c.h.b16 %v203
    %v845 = vunpack.c.l.b16 %v204
    %v846 = vunpack.c.h.b16 %v204
    %v847 = vunpack.c.l.b16 %v205
    %v848 = vunpack.c.h.b16 %v205
    %v849 = vunpack.c.l.b16 %v206
    %v850 = vunpack.c.h.b16 %v206
    %v851 = vunpack.c.l.b16 %v207
    %v852 = vunpack.c.h.b16 %v207
    %v853 = vunpack.c.l.b16 %v208
    %v854 = vunpack.c.h.b16 %v208
    %v855 = vunpack.c.l.b16 %v209
    %v856 = vunpack.c.h.b16 %v209
    %v857 = vunpack.c.l.b16 %v210
    %v858 = vunpack.c.h.b16 %v210
    %v859 = vunpack.c.l.b16 %v211
    %v860 = vunpack.c.h.b16 %v211
    %v861 = vunpack.c.l.b16 %v212
    %v862 = vunpack.c.h.b16 %v212
    %v863 = vunpack.c.l.b16 %v213
    %v864 = vunpack.c.h.b16 %v213
    %v865 = vunpack.c.l.b16 %v214
    %v866 = vunpack.c.h.b16 %v214
    %v867 = vunpack.c.l.b16 %v215
    %v868 = vunpack.c.h.b16 %v215
    %v869 = vunpack.c.l.b16 %v216
    %v870 = vunpack.c.h.b16 %v216
    %v871 = vunpack.c.l.b16 %v217
    %v872 = vunpack.c.h.b16 %v217
    %v873 = vunpack.c.l.b16 %v218
    %v874 = vunpack.c.h.b16 %v218
    %v875 = vunpack.c.l.b16 %v219
    %v876 = vunpack.c.h.b16 %v219
    %v877 = vunpack.c.l.b16 %v220
    %v878 = vunpack.c.h.b16 %v220
    %v879 = vunpack.c.l.b16 %v221
    %v880 = vunpack.c.h.b16 %v221
    %v881 = vunpack.c.l.b16 %v222
    %v882 = vunpack.c.h.b16 %v222
    %v883 = vunpack.c.l.b16 %v223
    %v884 = vunpack.c.h.b16 %v223
    %v885 = vunpack.c.l.b16 %v224
    %v886 = vunpack.c.h.b16 %v224
    %v887 = vunpack.c.l.b16 %v225
    %v888 = vunpack.c.h.b16 %v225
    %v889 = vunpack.c.l.b16 %v226
    %v890 = vunpack.c.h.b16 %v226
    %v891 = vunpack.c.l.b16 %v227
    %v892 = vunpack.c.h.b16 %v227
    %v893 = vunpack.c.l.b16 %v228
    %v894 = vunpack.c.h.b16 %v228
    %v895 = vunpack.c.l.b16 %v229
    %v896 = vunpack.c.h.b16 %v229
    %v897 = vunpack.c.l.b16 %v230
    %v898 = vunpack.c.h.b16 %v230
    %v899 = vunpack.c.l.b16 %v231
    %v900 = vunpack.c.h.b16 %v231
    %v901 = vunpack.c.l.b16 %v232
    %v902 = vunpack.c.h.b16 %v232
    %v903 = vunpack.c.l.b16 %v233
    %v904 = vunpack.c.h.b16 %v233
    %v905 = vunpack.c.l.b16 %v234
    %v906 = vunpack.c.h.b16 %v234
    %v907 = vunpack.c.l.b16 %v235
    %v908 = vunpack.c.h.b16 %v235
    %v909 = vunpack.c.l.b16 %v236
    %v910 = vunpack.c.h.b16 %v236
    %v911 = vunpack.c.l.b16 %v237
    %v912 = vunpack.c.h.b16 %v237
    %v913 = vunpack.c.l.b16 %v238
    %v914 = vunpack.c.h.b16 %v238
    %v915 = vunpack.c.l.b16 %v239
    %v916 = vunpack.c.h.b16 %v239
    %v917 = vunpack.c.l.b16 %v240
    %v918 = vunpack.c.h.b16 %v240
    %v919 = vunpack.c.l.b16 %v241
    %v920 = vunpack.c.h.b16 %v241
    %v921 = vunpack.c.l.b16 %v242
    %v922 = vunpack.c.h.b16 %v242
    %v923 = vunpack.c.l.b16 %v243
    %v924 = vunpack.c.h.b16 %v243
    %v925 = vunpack.c.l.b16 %v244
    %v926 = vunpack.c.h.b16 %v244
    %v927 = vunpack.c.l.b16 %v245
    %v928 = vunpack.c.h.b16 %v245
    %v929 = vunpack.c.l.b16 %v246
    %v930 = vunpack.c.h.b16 %v246
    %v931 = vunpack.c.l.b16 %v247
    %v932 = vunpack.c.h.b16 %v247
    %v933 = vunpack.c.l.b16 %v248
    %v934 = vunpack.c.h.b16 %v248
    %v935 = vunpack.c.l.b16 %v249
    %v936 = vunpack.c.h.b16 %v249
    %v937 = vunpack.c.l.b16 %v250
    %v938 = vunpack.c.h.b16 %v250
    %v939 = vunpack.c.l.b16 %v251
    %v940 = vunpack.c.h.b16 %v251
    %v941 = vunpack.c.l.b16 %v252
    %v942 = vunpack.c.h.b16 %v252
    %v943 = vunpack.c.l.b16 %v253
    %v944 = vunpack.c.h.b16 %v253
    %v945 = vunpack.c.l.b16 %v254
    %v946 = vunpack.c.h.b16 %v254
    %v947 = vunpack.c.l.b16 %v255
    %v948 = vunpack.c.h.b16 %v255
    %v949 = vunpack.c.l.b16 %v256
    %v950 = vunpack.c.h.b16 %v256
    %v951 = vunpack.c.l.b16 %v257
    %v952 = vunpack.c.h.b16 %v257
    %v953 = vunpack.c.l.b16 %v258
    %v954 = vunpack.c.h.b16 %v258
    %v955 = vunpack.c.l.b16 %v259
    %v956 = vunpack.c.h.b16 %v259
    %v957 = vunpack.c.l.b16 %v260
    %v958 = vunpack.c.h.b16 %v260
    %v959 = vunpack.c.l.b16 %v261
    %v960 = vunpack.c.h.b16 %v261
    %v961 = vunpack.c.l.b16 %v262
    %v962 = vunpack.c.h.b16 %v262
    %v963 = vunpack.c.l.b16 %v263
    %v964 = vunpack.c.h.b16 %v263
    %v965 = vunpack.c.l.b16 %v264
    %v966 = vunpack.c.h.b16 %v264
    %v967 = vunpack.c.l.b16 %v265
    %v968 = vunpack.c.h.b16 %v265
    %v969 = vunpack.c.l.b16 %v266
    %v970 = vunpack.c.h.b16 %v266
    %v971 = vunpack.c.l.b16 %v267
    %v972 = vunpack.c.h.b16 %v267
    %v973 = vunpack.c.l.b16 %v268
    %v974 = vunpack.c.h.b16 %v268
    %v975 = vunpack.c.l.b16 %v269
    %v976 = vunpack.c.h.b16 %v269
    %v977 = vunpack.c.l.b16 %v270
    %v978 = vunpack.c.h.b16 %v270
    %v979 = vunpack.c.l.b16 %v271
    %v980 = vunpack.c.h.b16 %v271
    %v981 = vunpack.c.l.b16 %v272
    %v982 = vunpack.c.h.b16 %v272
    %v983 = vunpack.c.l.b16 %v273
    %v984 = vunpack.c.h.b16 %v273
    %v985 = vunpack.c.l.b16 %v274
    %v986 = vunpack.c.h.b16 %v274
    %v987 = vunpack.c.l.b16 %v275
    %v988 = vunpack.c.h.b16 %v275
    %v989 = vunpack.c.l.b16 %v276
    %v990 = vunpack.c.h.b16 %v276
    %v991 = vunpack.c.l.b16 %v277
    %v992 = vunpack.c.h.b16 %v277
    %v993 = vunpack.c.l.b16 %v278
    %v994 = vunpack.c.h.b16 %v278
    %v995 = vunpack.c.l.b16 %v279
    %v996 = vunpack.c.h.b16 %v279
    %v997 = vunpack.c.l.b16 %v280
    %v998 = vunpack.c.h.b16 %v280
    %v999 = vunpack.c.l.b16 %v281
    %v1000 = vunpack.c.h.b16 %v281
    %v1001 = vunpack.c.l.b16 %v282
    %v1002 = vunpack.c.h.b16 %v282
    %v1003 = vunpack.c.l.b16 %v283
    %v1004 = vunpack.c.h.b16 %v283
    %v1005 = vunpack.c.l.b16 %v284
    %v1006 = vunpack.c.h.b16 %v284
    %v1007 = vunpack.c.l.b16 %v285
    %v1008 = vunpack.c.h.b16 %v285
    %v1009 = vunpack.c.l.b16 %v286
    %v1010 = vunpack.c.h.b16 %v286
    %v1011 = vunpack.c.l.b16 %v287
    %v1012 = vunpack.c.h.b16 %v287
    %v1013 = vunpack.c.l.b16 %v288
    %v1014 = vunpack.c.h.b16 %v288
    %v1015 = vunpack.c.l.b16 %v289
    %v1016 = vunpack.c.h.b16 %v289
    %v1017 = vunpack.c.l.b16 %v290
    %v1018 = vunpack.c.h.b16 %v290
    %v1019 = vunpack.c.l.b16 %v291
    %v1020 = vunpack.c.h.b16 %v291
    %v1021 = vunpack.c.l.b16 %v292
    %v1022 = vunpack.c.h.b16 %v292
    %v1023 = vunpack.c.l.b16 %v293
    %v1024 = vunpack.c.h.b16 %v293
    %v1025 = vunpack.c.l.b16 %v294
    %v1026 = vunpack.c.h.b16 %v294
    %v1027 = vunpack.c.l.b16 %v295
    %v1028 = vunpack.c.h.b16 %v295
    %v1029 = vunpack.c.l.b16 %v296
    %v1030 = vunpack.c.h.b16 %v296
    %v1031 = vunpack.c.l.b16 %v297
    %v1032 = vunpack.c.h.b16 %v297
    %v1033 = vunpack.c.l.b16 %v298
    %v1034 = vunpack.c.h.b16 %v298
    %v1035 = vunpack.c.l.b16 %v299
    %v1036 = vunpack.c.h.b16 %v299
    %v1037 = vunpack.c.l.b16 %v300
    %v1038 = vunpack.c.h.b16 %v300
    %v1039 = vunpack.c.l.b16 %v301
    %v1040 = vunpack.c.h.b16 %v301
    %v1041 = vunpack.c.l.b16 %v302
    %v1042 = vunpack.c.h.b16 %v302
    %v1043 = vunpack.c.l.b16 %v303
    %v1044 = vunpack.c.h.b16 %v303
    %v1045 = vunpack.c.l.b16 %v304
    %v1046 = vunpack.c.h.b16 %v304
    %v1047 = vunpack.c.l.b16 %v305
    %v1048 = vunpack.c.h.b16 %v305
    %v1049 = vunpack.c.l.b16 %v306
    %v1050 = vunpack.c.h.b16 %v306
    %v1051 = vunpack.c.l.b16 %v307
    %v1052 = vunpack.c.h.b16 %v307
    %v1053 = vunpack.c.l.b16 %v308
    %v1054 = vunpack.c.h.b16 %v308
    %v1055 = vunpack.c.l.b16 %v309
    %v1056 = vunpack.c.h.b16 %v309
    %v1057 = vunpack.c.l.b16 %v310
    %v1058 = vunpack.c.h.b16 %v310
    %v1059 = vunpack.c.l.b16 %v311
    %v1060 = vunpack.c.h.b16 %v311
    %v1061 = vunpack.c.l.b16 %v312
    %v1062 = vunpack.c.h.b16 %v312
    %v1063 = vpack.c.b16 %v619, %v615
    %v1064 = vpack.c.b16 %v620, %v616
    %v1065 = vpack.c.b16 %v621, %v617
    %v1066 = vpack.c.b16 %v622, %v618
    %v1067 = vpack.c.b16 %v627, %v623
    %v1068 = vpack.c.b16 %v628, %v624
    %v1069 = vpack.c.b16 %v629, %v625
    %v1070 = vpack.c.b16 %v630, %v626
    %v1071 = vpack.c.b16 %v635, %v631
    %v1072 = vpack.c.b16 %v636, %v632
    %v1073 = vpack.c.b16 %v637, %v633
    %v1074 = vpack.c.b16 %v638, %v634
    %v1075 = vpack.c.b16 %v643, %v639
    %v1076 = vpack.c.b16 %v644, %v640
    %v1077 = vpack.c.b16 %v645, %v641
    %v1078 = vpack.c.b16 %v646, %v642
    %v1079 = vpack.c.b16 %v651, %v647
    %v1080 = vpack.c.b16 %v652, %v648
    %v1081 = vpack.c.b16 %v653, %v649
    %v1082 = vpack.c.b16 %v654, %v650
    %v1083 = vpack.c.b16 %v659, %v655
    %v1084 = vpack.c.b16 %v660, %v656
    %v1085 = vpack.c.b16 %v661, %v657
    %v1086 = vpack.c.b16 %v662, %v658
    %v1087 = vpack.c.b16 %v667, %v663
    %v1088 = vpack.c.b16 %v668, %v664
    %v1089 = vpack.c.b16 %v669, %v665
    %v1090 = vpack.c.b16 %v670, %v666
    %v1091 = vpack.c.b16 %v675, %v671
    %v1092 = vpack.c.b16 %v676, %v672
    %v1093 = vpack.c.b16 %v677, %v673
    %v1094 = vpack.c.b16 %v678, %v674
    %v1095 = vpack.c.b16 %v683, %v679
    %v1096 = vpack.c.b16 %v684, %v680
    %v1097 = vpack.c.b16 %v685, %v681
    %v1098 = vpack.c.b16 %v686, %v682
    %v1099 = vpack.c.b16 %v691, %v687
    %v1100 = vpack.c.b16 %v692, %v688
    %v1101 = vpack.c.b16 %v693, %v689
    %v1102 = vpack.c.b16 %v694, %v690
    %v1103 = vpack.c.b16 %v699, %v695
    %v1104 = vpack.c.b16 %v700, %v696
    %v1105 = vpack.c.b16 %v701, %v697
    %v1106 = vpack.c.b16 %v702, %v698
    %v1107 = vpack.c.b16 %v707, %v703
    %v1108 = vpack.c.b16 %v708, %v704
    %v1109 = vpack.c.b16 %v709, %v705
    %v1110 = vpack.c.b16 %v710, %v706
    %v1111 = vpack.c.b16 %v715, %v711
    %v1112 = vpack.c.b16 %v716, %v712
    %v1113 = vpack.c.b16 %v717, %v713
    %v1114 = vpack.c.b16 %v718, %v714
    %v1115 = vpack.c.b16 %v723, %v719
    %v1116 = vpack.c.b16 %v724, %v720
    %v1117 = vpack.c.b16 %v725, %v721
    %v1118 = vpack.c.b16 %v726, %v722
    %v1119 = vpack.c.b16 %v731, %v727
    %v1120 = vpack.c.b16 %v732, %v728
    %v1121 = vpack.c.b16 %v733, %v729
    %v1122 = vpack.c.b16 %v734, %v730
    %v1123 = vpack.c.b16 %v739, %v735
    %v1124 = vpack.c.b16 %v740, %v736
    %v1125 = vpack.c.b16 %v741, %v737
    %v1126 = vpack.c.b16 %v742, %v738
    %v1127 = vpack.c.b16 %v747, %v743
    %v1128 = vpack.c.b16 %v748, %v744
    %v1129 = vpack.c.b16 %v749, %v745
    %v1130 = vpack.c.b16 %v750, %v746
    %v1131 = vpack.c.b16 %v755, %v751
    %v1132 = vpack.c.b16 %v756, %v752
    %v1133 = vpack.c.b16 %v757, %v753
    %v1134 = vpack.c.b16 %v758, %v754
    %v1135 = vpack.c.b16 %v763, %v759
    %v1136 = vpack.c.b16 %v764, %v760
    %v1137 = vpack.c.b16 %v765, %v761
    %v1138 = vpack.c.b16 %v766, %v762
    %v1139 = vpack.c.b16 %v771, %v767
    %v1140 = vpack.c.b16 %v772, %v768
    %v1141 = vpack.c.b16 %v773, %v769
    %v1142 = vpack.c.b16 %v774, %v770
    %v1143 = vpack.c.b16 %v779, %v775
    %v1144 = vpack.c.b16 %v780, %v776
    %v1145 = vpack.c.b16 %v781, %v777
    %v1146 = vpack.c.b16 %v782, %v778
    %v1147 = vpack.c.b16 %v787, %v783
    %v1148 = vpack.c.b16 %v788, %v784
    %v1149 = vpack.c.b16 %v789, %v785
    %v1150 = vpack.c.b16 %v790, %v786
    %v1151 = vpack.c.b16 %v795, %v791
    %v1152 = vpack.c.b16 %v796, %v792
    %v1153 = vpack.c.b16 %v797, %v793
    %v1154 = vpack.c.b16 %v798, %v794
    %v1155 = vpack.c.b16 %v803, %v799
    %v1156 = vpack.c.b16 %v804, %v800
    %v1157 = vpack.c.b16 %v805, %v801
    %v1158 = vpack.c.b16 %v806, %v802
    %v1159 = vpack.c.b16 %v811, %v807
    %v1160 = vpack.c.b16 %v812, %v808
    %v1161 = vpack.c.b16 %v813, %v809
    %v1162 = vpack.c.b16 %v814, %v810
    %v1163 = vpack.c.b16 %v819, %v815
    %v1164 = vpack.c.b16 %v820, %v816
    %v1165 = vpack.c.b16 %v821, %v817
    %v1166 = vpack.c.b16 %v822, %v818
    %v1167 = vpack.c.b16 %v827, %v823
    %v1168 = vpack.c.b16 %v828, %v824
    %v1169 = vpack.c.b16 %v829, %v825
    %v1170 = vpack.c.b16 %v830, %v826
    %v1171 = vpack.c.b16 %v835, %v831
    %v1172 = vpack.c.b16 %v836, %v832
    %v1173 = vpack.c.b16 %v837, %v833
    %v1174 = vpack.c.b16 %v838, %v834
    %v1175 = vpack.c.b16 %v843, %v839
    %v1176 = vpack.c.b16 %v844, %v840
    %v1177 = vpack.c.b16 %v845, %v841
    %v1178 = vpack.c.b16 %v846, %v842
    %v1179 = vpack.c.b16 %v851, %v847
    %v1180 = vpack.c.b16 %v852, %v848
    %v1181 = vpack.c.b16 %v853, %v849
    %v1182 = vpack.c.b16 %v854, %v850
    %v1183 = vpack.c.b16 %v859, %v855
    %v1184 = vpack.c.b16 %v860, %v856
    %v1185 = vpack.c.b16 %v861, %v857
    %v1186 = vpack.c.b16 %v862, %v858
    %v1187 = vpack.c.b16 %v867, %v863
    %v1188 = vpack.c.b16 %v868, %v864
    %v1189 = vpack.c.b16 %v869, %v865
    %v1190 = vpack.c.b16 %v870, %v866
    %v1191 = vpack.c.b16 %v875, %v871
    %v1192 = vpack.c.b16 %v876, %v872
    %v1193 = vpack.c.b16 %v877, %v873
    %v1194 = vpack.c.b16 %v878, %v874
    %v1195 = vpack.c.b16 %v883, %v879
    %v1196 = vpack.c.b16 %v884, %v880
    %v1197 = vpack.c.b16 %v885, %v881
    %v1198 = vpack.c.b16 %v886, %v882
    %v1199 = vpack.c.b16 %v891, %v887
    %v1200 = vpack.c.b16 %v892, %v888
    %v1201 = vpack.c.b16 %v893, %v889
    %v1202 = vpack.c.b16 %v894, %v890
    %v1203 = vpack.c.b16 %v899, %v895
    %v1204 = vpack.c.b16 %v900, %v896
    %v1205 = vpack.c.b16 %v901, %v897
    %v1206 = vpack.c.b16 %v902, %v898
    %v1207 = vpack.c.b16 %v907, %v903
    %v1208 = vpack.c.b16 %v908, %v904
    %v1209 = vpack.c.b16 %v909, %v905
    %v1210 = vpack.c.b16 %v910, %v906
    %v1211 = vpack.c.b16 %v915, %v911
    %v1212 = vpack.c.b16 %v916, %v912
    %v1213 = vpack.c.b16 %v917, %v913
    %v1214 = vpack.c.b16 %v918, %v914
    %v1215 = vpack.c.b16 %v923, %v919
    %v1216 = vpack.c.b16 %v924, %v920
    %v1217 = vpack.c.b16 %v925, %v921
    %v1218 = vpack.c.b16 %v926, %v922
    %v1219 = vpack.c.b16 %v931, %v927
    %v1220 = vpack.c.b16 %v932, %v928
    %v1221 = vpack.c.b16 %v933, %v929
    %v1222 = vpack.c.b16 %v934, %v930
    %v1223 = vpack.c.b16 %v939, %v935
    %v1224 = vpack.c.b16 %v940, %v936
    %v1225 = vpack.c.b16 %v941, %v937
    %v1226 = vpack.c.b16 %v942, %v938
    %v1227 = vpack.c.b16 %v947, %v943
    %v1228 = vpack.c.b16 %v948, %v944
    %v1229 = vpack.c.b16 %v949, %v945
    %v1230 = vpack.c.b16 %v950, %v946
    %v1231 = vpack.c.b16 %v955, %v951
    %v1232 = vpack.c.b16 %v956, %v952
    %v1233 = vpack.c.b16 %v957, %v953
    %v1234 = vpack.c.b16 %v958, %v954
    %v1235 = vpack.c.b16 %v963, %v959
    %v1236 = vpack.c.b16 %v964, %v960
    %v1237 = vpack.c.b16 %v965, %v961
    %v1238 = vpack.c.b16 %v966, %v962
    %v1239 = vpack.c.b16 %v971, %v967
    %v1240 = vpack.c.b16 %v972, %v968
    %v1241 = vpack.c.b16 %v973, %v969
    %v1242 = vpack.c.b16 %v974, %v970
    %v1243 = vpack.c.b16 %v979, %v975
    %v1244 = vpack.c.b16 %v980, %v976
    %v1245 = vpack.c.b16 %v981, %v977
    %v1246 = vpack.c.b16 %v982, %v978
    %v1247 = vpack.c.b16 %v987, %v983
    %v1248 = vpack.c.b16 %v988, %v984
    %v1249 = vpack.c.b16 %v989, %v985
    %v1250 = vpack.c.b16 %v990, %v986
    %v1251 = vpack.c.b16 %v995, %v991
    %v1252 = vpack.c.b16 %v996, %v992
    %v1253 = vpack.c.b16 %v997, %v993
    %v1254 = vpack.c.b16 %v998, %v994
    %v1255 = vpack.c.b16 %v1003, %v999
    %v1256 = vpack.c.b16 %v1004, %v1000
    %v1257 = vpack.c.b16 %v1005, %v1001
    %v1258 = vpack.c.b16 %v1006, %v1002
    %v1259 = vpack.c.b16 %v1011, %v1007
    %v1260 = vpack.c.b16 %v1012, %v1008
    %v1261 = vpack.c.b16 %v1013, %v1009
    %v1262 = vpack.c.b16 %v1014, %v1010
    %v1263 = vpack.c.b16 %v1019, %v1015
    %v1264 = vpack.c.b16 %v1020, %v1016
    %v1265 = vpack.c.b16 %v1021, %v1017
    %v1266 = vpack.c.b16 %v1022, %v1018
    %v1267 = vpack.c.b16 %v1027, %v1023
    %v1268 = vpack.c.b16 %v1028, %v1024
    %v1269 = vpack.c.b16 %v1029, %v1025
    %v1270 = vpack.c.b16 %v1030, %v1026
    %v1271 = vpack.c.b16 %v1035, %v1031
    %v1272 = vpack.c.b16 %v1036, %v1032
    %v1273 = vpack.c.b16 %v1037, %v1033
    %v1274 = vpack.c.b16 %v1038, %v1034
    %v1275 = vpack.c.b16 %v1043, %v1039
    %v1276 = vpack.c.b16 %v1044, %v1040
    %v1277 = vpack.c.b16 %v1045, %v1041
    %v1278 = vpack.c.b16 %v1046, %v1042
    %v1279 = vpack.c.b16 %v1051, %v1047
    %v1280 = vpack.c.b16 %v1052, %v1048
    %v1281 = vpack.c.b16 %v1053, %v1049
    %v1282 = vpack.c.b16 %v1054, %v1050
    %v1283 = vpack.c.b16 %v1059, %v1055
    %v1284 = vpack.c.b16 %v1060, %v1056
    %v1285 = vpack.c.b16 %v1061, %v1057
    %v1286 = vpack.c.b16 %v1062, %v1058
    %1511 = vmatprep.subr.bf16.mxu0 %v1064
    %1512 = vmatpush1.bf16.msra.mxu0 %v1063
    %1513 = vmatprep.subr.bf16.mxu0 %v1068
    %1514 = vmatpush1.bf16.msra.mxu0 %v1067
    %1515 = vmatprep.subr.bf16.mxu0 %v1072
    %1516 = vmatpush1.bf16.msra.mxu0 %v1071
    %1517 = vmatprep.subr.bf16.mxu0 %v1076
    %1518 = vmatpush1.bf16.msra.mxu0 %v1075
    %1519 = vmatprep.subr.bf16.mxu0 %v1080
    %1520 = vmatpush1.bf16.msra.mxu0 %v1079
    %1521 = vmatprep.subr.bf16.mxu0 %v1084
    %1522 = vmatpush1.bf16.msra.mxu0 %v1083
    %1523 = vmatprep.subr.bf16.mxu0 %v1088
    %1524 = vmatpush1.bf16.msra.mxu0 %v1087
    %1525 = vmatprep.subr.bf16.mxu0 %v1092
    %1526 = vmatpush1.bf16.msra.mxu0 %v1091
    %1527 = vmatprep.subr.bf16.mxu0 %v1096
    %1528 = vmatpush1.bf16.msra.mxu0 %v1095
    %1529 = vmatprep.subr.bf16.mxu0 %v1100
    %1530 = vmatpush1.bf16.msra.mxu0 %v1099
    %1531 = vmatprep.subr.bf16.mxu0 %v1104
    %1532 = vmatpush1.bf16.msra.mxu0 %v1103
    %1533 = vmatprep.subr.bf16.mxu0 %v1108
    %1534 = vmatpush1.bf16.msra.mxu0 %v1107
    %1535 = vmatprep.subr.bf16.mxu0 %v1112
    %1536 = vmatpush1.bf16.msra.mxu0 %v1111
    %1537 = vmatprep.subr.bf16.mxu0 %v1116
    %1538 = vmatpush1.bf16.msra.mxu0 %v1115
    %1539 = vmatprep.subr.bf16.mxu0 %v1120
    %1540 = vmatpush1.bf16.msra.mxu0 %v1119
    %1541 = vmatprep.subr.bf16.mxu0 %v1124
    %1542 = vmatpush1.bf16.msra.mxu0 %v1123
    %1543 = vmatprep.mubr.bf16.mxu0 %v373
    %1544 = vmatmul.mubr.bf16.gmra.mrb[0].mxu0 %v359
    %v1545 = vpop.f32.mrb[0].mxu0
    %v1546 = vadd.f32 %v318, %v1545
    %v1547 = vpop.f32.mrb[0].mxu0
    %v1548 = vadd.f32 %v322, %v1547
    %v1549 = vpop.f32.mrb[0].mxu0
    %v1550 = vpop.f32.mrb[0].mxu0
    %1551 = vdwg.mxu0
    %1552 = vmatprep.subr.bf16.mxu0 %v1128
    %1553 = vmatpush1.bf16.msra.mxu0 %v1127
    %1554 = vmatprep.subr.bf16.mxu0 %v1132
    %1555 = vmatpush1.bf16.msra.mxu0 %v1131
    %1556 = vmatprep.subr.bf16.mxu0 %v1136
    %1557 = vmatpush1.bf16.msra.mxu0 %v1135
    %1558 = vmatprep.subr.bf16.mxu0 %v1140
    %1559 = vmatpush1.bf16.msra.mxu0 %v1139
    %1560 = vmatprep.subr.bf16.mxu0 %v1144
    %1561 = vmatpush1.bf16.msra.mxu0 %v1143
    %1562 = vmatprep.subr.bf16.mxu0 %v1148
    %1563 = vmatpush1.bf16.msra.mxu0 %v1147
    %1564 = vmatprep.subr.bf16.mxu0 %v1152
    %1565 = vmatpush1.bf16.msra.mxu0 %v1151
    %1566 = vmatprep.subr.bf16.mxu0 %v1156
    %1567 = vmatpush1.bf16.msra.mxu0 %v1155
    %1568 = vmatprep.subr.bf16.mxu0 %v1160
    %1569 = vmatpush1.bf16.msra.mxu0 %v1159
    %1570 = vmatprep.subr.bf16.mxu0 %v1164
    %1571 = vmatpush1.bf16.msra.mxu0 %v1163
    %1572 = vmatprep.subr.bf16.mxu0 %v1168
    %1573 = vmatpush1.bf16.msra.mxu0 %v1167
    %1574 = vmatprep.subr.bf16.mxu0 %v1172
    %1575 = vmatpush1.bf16.msra.mxu0 %v1171
    %1576 = vmatprep.subr.bf16.mxu0 %v1176
    %1577 = vmatpush1.bf16.msra.mxu0 %v1175
    %1578 = vmatprep.subr.bf16.mxu0 %v1180
    %1579 = vmatpush1.bf16.msra.mxu0 %v1179
    %1580 = vmatprep.subr.bf16.mxu0 %v1184
    %1581 = vmatpush1.bf16.msra.mxu0 %v1183
    %1582 = vmatprep.subr.bf16.mxu0 %v1188
    %1583 = vmatpush1.bf16.msra.mxu0 %v1187
    %1584 = vmatprep.mubr.bf16.mxu0 %v383
    %1585 = vmatmul.mubr.bf16.gmra.mrb[0].mxu0 %v381
    %v1586 = vpop.f32.mrb[0].mxu0
    %v1587 = vadd.f32 %v1546, %v1586
    %v1588 = vpop.f32.mrb[0].mxu0
    %v1589 = vadd.f32 %v1548, %v1588
    %v1590 = vpop.f32.mrb[0].mxu0
    %v1591 = vpop.f32.mrb[0].mxu0
    %1592 = vdwg.mxu0
    %1593 = vmatprep.subr.bf16.mxu0 %v1192
    %1594 = vmatpush1.bf16.msra.mxu0 %v1191
    %1595 = vmatprep.subr.bf16.mxu0 %v1196
    %1596 = vmatpush1.bf16.msra.mxu0 %v1195
    %1597 = vmatprep.subr.bf16.mxu0 %v1200
    %1598 = vmatpush1.bf16.msra.mxu0 %v1199
    %1599 = vmatprep.subr.bf16.mxu0 %v1204
    %1600 = vmatpush1.bf16.msra.mxu0 %v1203
    %1601 = vmatprep.subr.bf16.mxu0 %v1208
    %1602 = vmatpush1.bf16.msra.mxu0 %v1207
    %1603 = vmatprep.subr.bf16.mxu0 %v1212
    %1604 = vmatpush1.bf16.msra.mxu0 %v1211
    %1605 = vmatprep.subr.bf16.mxu0 %v1216
    %1606 = vmatpush1.bf16.msra.mxu0 %v1215
    %1607 = vmatprep.subr.bf16.mxu0 %v1220
    %1608 = vmatpush1.bf16.msra.mxu0 %v1219
    %1609 = vmatprep.subr.bf16.mxu0 %v1224
    %1610 = vmatpush1.bf16.msra.mxu0 %v1223
    %1611 = vmatprep.subr.bf16.mxu0 %v1228
    %1612 = vmatpush1.bf16.msra.mxu0 %v1227
    %1613 = vmatprep.subr.bf16.mxu0 %v1232
    %1614 = vmatpush1.bf16.msra.mxu0 %v1231
    %1615 = vmatprep.subr.bf16.mxu0 %v1236
    %1616 = vmatpush1.bf16.msra.mxu0 %v1235
    %1617 = vmatprep.subr.bf16.mxu0 %v1240
    %1618 = vmatpush1.bf16.msra.mxu0 %v1239
    %1619 = vmatprep.subr.bf16.mxu0 %v1244
    %1620 = vmatpush1.bf16.msra.mxu0 %v1243
    %1621 = vmatprep.subr.bf16.mxu0 %v1248
    %1622 = vmatpush1.bf16.msra.mxu0 %v1247
    %1623 = vmatprep.subr.bf16.mxu0 %v1252
    %1624 = vmatpush1.bf16.msra.mxu0 %v1251
    %1625 = vmatprep.mubr.bf16.mxu0 %v380
    %1626 = vmatmul.mubr.bf16.gmra.mrb[0].mxu0 %v366
    %v1627 = vpop.f32.mrb[0].mxu0
    %v1628 = vadd.f32 %v1587, %v1627
    %v1629 = vpop.f32.mrb[0].mxu0
    %v1630 = vadd.f32 %v1589, %v1629
    %v1631 = vpop.f32.mrb[0].mxu0
    %v1632 = vpop.f32.mrb[0].mxu0
    %1633 = vdwg.mxu0
    %1634 = vmatprep.subr.bf16.mxu0 %v1256
    %1635 = vmatpush1.bf16.msra.mxu0 %v1255
    %1636 = vmatprep.subr.bf16.mxu0 %v1260
    %1637 = vmatpush1.bf16.msra.mxu0 %v1259
    %1638 = vmatprep.subr.bf16.mxu0 %v1264
    %1639 = vmatpush1.bf16.msra.mxu0 %v1263
    %1640 = vmatprep.subr.bf16.mxu0 %v1268
    %1641 = vmatpush1.bf16.msra.mxu0 %v1267
    %1642 = vmatprep.subr.bf16.mxu0 %v1272
    %1643 = vmatpush1.bf16.msra.mxu0 %v1271
    %1644 = vmatprep.subr.bf16.mxu0 %v1276
    %1645 = vmatpush1.bf16.msra.mxu0 %v1275
    %1646 = vmatprep.subr.bf16.mxu0 %v1280
    %1647 = vmatpush1.bf16.msra.mxu0 %v1279
    %1648 = vmatprep.subr.bf16.mxu0 %v1284
    %1649 = vmatpush1.bf16.msra.mxu0 %v1283
    %1650 = vmatprep.subr.bf16.mxu0 0
    %1651 = vmatpush1.bf16.msra.mxu0 0
    %1652 = vmatprep.subr.bf16.mxu0 0
    %1653 = vmatpush1.bf16.msra.mxu0 0
    %1654 = vmatprep.subr.bf16.mxu0 0
    %1655 = vmatpush1.bf16.msra.mxu0 0
    %1656 = vmatprep.subr.bf16.mxu0 0
    %1657 = vmatpush1.bf16.msra.mxu0 0
    %1658 = vmatprep.subr.bf16.mxu0 0
    %1659 = vmatpush1.bf16.msra.mxu0 0
    %1660 = vmatprep.subr.bf16.mxu0 0
    %1661 = vmatpush1.bf16.msra.mxu0 0
    %1662 = vmatprep.subr.bf16.mxu0 0
    %1663 = vmatpush1.bf16.msra.mxu0 0
    %1664 = vmatprep.subr.bf16.mxu0 0
    %1665 = vmatpush1.bf16.msra.mxu0 0
    %1666 = vmatprep.mubr.bf16.mxu0 0
    %1667 = vmatmul.mubr.bf16.gmra.mrb[0].mxu0 %v382
    %v1668 = vpop.f32.mrb[0].mxu0
    %v1669 = vadd.f32 %v1628, %v1668
    %v1670 = vpop.f32.mrb[0].mxu0
    %v1671 = vadd.f32 %v1630, %v1670
    %v1672 = vpop.f32.mrb[0].mxu0
    %v1673 = vpop.f32.mrb[0].mxu0
    %1674 = vdwg.mxu0
    %1675 = vmatprep.subr.bf16.mxu0 %v1066
    %1676 = vmatpush1.bf16.msra.mxu0 %v1065
    %1677 = vmatprep.subr.bf16.mxu0 %v1070
    %1678 = vmatpush1.bf16.msra.mxu0 %v1069
    %1679 = vmatprep.subr.bf16.mxu0 %v1074
    %1680 = vmatpush1.bf16.msra.mxu0 %v1073
    %1681 = vmatprep.subr.bf16.mxu0 %v1078
    %1682 = vmatpush1.bf16.msra.mxu0 %v1077
    %1683 = vmatprep.subr.bf16.mxu0 %v1082
    %1684 = vmatpush1.bf16.msra.mxu0 %v1081
    %1685 = vmatprep.subr.bf16.mxu0 %v1086
    %1686 = vmatpush1.bf16.msra.mxu0 %v1085
    %1687 = vmatprep.subr.bf16.mxu0 %v1090
    %1688 = vmatpush1.bf16.msra.mxu0 %v1089
    %1689 = vmatprep.subr.bf16.mxu0 %v1094
    %1690 = vmatpush1.bf16.msra.mxu0 %v1093
    %1691 = vmatprep.subr.bf16.mxu0 %v1098
    %1692 = vmatpush1.bf16.msra.mxu0 %v1097
    %1693 = vmatprep.subr.bf16.mxu0 %v1102
    %1694 = vmatpush1.bf16.msra.mxu0 %v1101
    %1695 = vmatprep.subr.bf16.mxu0 %v1106
    %1696 = vmatpush1.bf16.msra.mxu0 %v1105
    %1697 = vmatprep.subr.bf16.mxu0 %v1110
    %1698 = vmatpush1.bf16.msra.mxu0 %v1109
    %1699 = vmatprep.subr.bf16.mxu0 %v1114
    %1700 = vmatpush1.bf16.msra.mxu0 %v1113
    %1701 = vmatprep.subr.bf16.mxu0 %v1118
    %1702 = vmatpush1.bf16.msra.mxu0 %v1117
    %1703 = vmatprep.subr.bf16.mxu0 %v1122
    %1704 = vmatpush1.bf16.msra.mxu0 %v1121
    %1705 = vmatprep.subr.bf16.mxu0 %v1126
    %1706 = vmatpush1.bf16.msra.mxu0 %v1125
    %1707 = vmatprep.mubr.bf16.mxu0 %v373
    %1708 = vmatmul.mubr.bf16.gmra.mrb[0].mxu0 %v359
    %v1709 = vpop.f32.mrb[0].mxu0
    %v1710 = vadd.f32 %v326, %v1709
    %v1711 = vpop.f32.mrb[0].mxu0
    %v1712 = vadd.f32 %v330, %v1711
    %v1713 = vpop.f32.mrb[0].mxu0
    %v1714 = vpop.f32.mrb[0].mxu0
    %1715 = vdwg.mxu0
    %1716 = vmatprep.subr.bf16.mxu0 %v1130
    %1717 = vmatpush1.bf16.msra.mxu0 %v1129
    %1718 = vmatprep.subr.bf16.mxu0 %v1134
    %1719 = vmatpush1.bf16.msra.mxu0 %v1133
    %1720 = vmatprep.subr.bf16.mxu0 %v1138
    %1721 = vmatpush1.bf16.msra.mxu0 %v1137
    %1722 = vmatprep.subr.bf16.mxu0 %v1142
    %1723 = vmatpush1.bf16.msra.mxu0 %v1141
    %1724 = vmatprep.subr.bf16.mxu0 %v1146
    %1725 = vmatpush1.bf16.msra.mxu0 %v1145
    %1726 = vmatprep.subr.bf16.mxu0 %v1150
    %1727 = vmatpush1.bf16.msra.mxu0 %v1149
    %1728 = vmatprep.subr.bf16.mxu0 %v1154
    %1729 = vmatpush1.bf16.msra.mxu0 %v1153
    %1730 = vmatprep.subr.bf16.mxu0 %v1158
    %1731 = vmatpush1.bf16.msra.mxu0 %v1157
    %1732 = vmatprep.subr.bf16.mxu0 %v1162
    %1733 = vmatpush1.bf16.msra.mxu0 %v1161
    %1734 = vmatprep.subr.bf16.mxu0 %v1166
    %1735 = vmatpush1.bf16.msra.mxu0 %v1165
    %1736 = vmatprep.subr.bf16.mxu0 %v1170
    %1737 = vmatpush1.bf16.msra.mxu0 %v1169
    %1738 = vmatprep.subr.bf16.mxu0 %v1174
    %1739 = vmatpush1.bf16.msra.mxu0 %v1173
    %1740 = vmatprep.subr.bf16.mxu0 %v1178
    %1741 = vmatpush1.bf16.msra.mxu0 %v1177
    %1742 = vmatprep.subr.bf16.mxu0 %v1182
    %1743 = vmatpush1.bf16.msra.mxu0 %v1181
    %1744 = vmatprep.subr.bf16.mxu0 %v1186
    %1745 = vmatpush1.bf16.msra.mxu0 %v1185
    %1746 = vmatprep.subr.bf16.mxu0 %v1190
    %1747 = vmatpush1.bf16.msra.mxu0 %v1189
    %1748 = vmatprep.mubr.bf16.mxu0 %v383
    %1749 = vmatmul.mubr.bf16.gmra.mrb[0].mxu0 %v381
    %v1750 = vpop.f32.mrb[0].mxu0
    %v1751 = vadd.f32 %v1710, %v1750
    %v1752 = vpop.f32.mrb[0].mxu0
    %v1753 = vadd.f32 %v1712, %v1752
    %v1754 = vpop.f32.mrb[0].mxu0
    %v1755 = vpop.f32.mrb[0].mxu0
    %1756 = vdwg.mxu0
    %1757 = vmatprep.subr.bf16.mxu0 %v1194
    %1758 = vmatpush1.bf16.msra.mxu0 %v1193
    %1759 = vmatprep.subr.bf16.mxu0 %v1198
    %1760 = vmatpush1.bf16.msra.mxu0 %v1197
    %1761 = vmatprep.subr.bf16.mxu0 %v1202
    %1762 = vmatpush1.bf16.msra.mxu0 %v1201
    %1763 = vmatprep.subr.bf16.mxu0 %v1206
    %1764 = vmatpush1.bf16.msra.mxu0 %v1205
    %1765 = vmatprep.subr.bf16.mxu0 %v1210
    %1766 = vmatpush1.bf16.msra.mxu0 %v1209
    %1767 = vmatprep.subr.bf16.mxu0 %v1214
    %1768 = vmatpush1.bf16.msra.mxu0 %v1213
    %1769 = vmatprep.subr.bf16.mxu0 %v1218
    %1770 = vmatpush1.bf16.msra.mxu0 %v1217
    %1771 = vmatprep.subr.bf16.mxu0 %v1222
    %1772 = vmatpush1.bf16.msra.mxu0 %v1221
    %1773 = vmatprep.subr.bf16.mxu0 %v1226
    %1774 = vmatpush1.bf16.msra.mxu0 %v1225
    %1775 = vmatprep.subr.bf16.mxu0 %v1230
    %1776 = vmatpush1.bf16.msra.mxu0 %v1229
    %1777 = vmatprep.subr.bf16.mxu0 %v1234
    %1778 = vmatpush1.bf16.msra.mxu0 %v1233
    %1779 = vmatprep.subr.bf16.mxu0 %v1238
    %1780 = vmatpush1.bf16.msra.mxu0 %v1237
    %1781 = vmatprep.subr.bf16.mxu0 %v1242
    %1782 = vmatpush1.bf16.msra.mxu0 %v1241
    %1783 = vmatprep.subr.bf16.mxu0 %v1246
    %1784 = vmatpush1.bf16.msra.mxu0 %v1245
    %1785 = vmatprep.subr.bf16.mxu0 %v1250
    %1786 = vmatpush1.bf16.msra.mxu0 %v1249
    %1787 = vmatprep.subr.bf16.mxu0 %v1254
    %1788 = vmatpush1.bf16.msra.mxu0 %v1253
    %1789 = vmatprep.mubr.bf16.mxu0 %v380
    %1790 = vmatmul.mubr.bf16.gmra.mrb[0].mxu0 %v366
    %v1791 = vpop.f32.mrb[0].mxu0
    %v1792 = vadd.f32 %v1751, %v1791
    %v1793 = vpop.f32.mrb[0].mxu0
    %v1794 = vadd.f32 %v1753, %v1793
    %v1795 = vpop.f32.mrb[0].mxu0
    %v1796 = vpop.f32.mrb[0].mxu0
    %1797 = vdwg.mxu0
    %1798 = vmatprep.subr.bf16.mxu0 %v1258
    %1799 = vmatpush1.bf16.msra.mxu0 %v1257
    %1800 = vmatprep.subr.bf16.mxu0 %v1262
    %1801 = vmatpush1.bf16.msra.mxu0 %v1261
    %1802 = vmatprep.subr.bf16.mxu0 %v1266
    %1803 = vmatpush1.bf16.msra.mxu0 %v1265
    %1804 = vmatprep.subr.bf16.mxu0 %v1270
    %1805 = vmatpush1.bf16.msra.mxu0 %v1269
    %1806 = vmatprep.subr.bf16.mxu0 %v1274
    %1807 = vmatpush1.bf16.msra.mxu0 %v1273
    %1808 = vmatprep.subr.bf16.mxu0 %v1278
    %1809 = vmatpush1.bf16.msra.mxu0 %v1277
    %1810 = vmatprep.subr.bf16.mxu0 %v1282
    %1811 = vmatpush1.bf16.msra.mxu0 %v1281
    %1812 = vmatprep.subr.bf16.mxu0 %v1286
    %1813 = vmatpush1.bf16.msra.mxu0 %v1285
    %1814 = vmatprep.subr.bf16.mxu0 0
    %1815 = vmatpush1.bf16.msra.mxu0 0
    %1816 = vmatprep.subr.bf16.mxu0 0
    %1817 = vmatpush1.bf16.msra.mxu0 0
    %1818 = vmatprep.subr.bf16.mxu0 0
    %1819 = vmatpush1.bf16.msra.mxu0 0
    %1820 = vmatprep.subr.bf16.mxu0 0
    %1821 = vmatpush1.bf16.msra.mxu0 0
    %1822 = vmatprep.subr.bf16.mxu0 0
    %1823 = vmatpush1.bf16.msra.mxu0 0
    %1824 = vmatprep.subr.bf16.mxu0 0
    %1825 = vmatpush1.bf16.msra.mxu0 0
    %1826 = vmatprep.subr.bf16.mxu0 0
    %1827 = vmatpush1.bf16.msra.mxu0 0
    %1828 = vmatprep.subr.bf16.mxu0 0
    %1829 = vmatpush1.bf16.msra.mxu0 0
    %1830 = vmatprep.mubr.bf16.mxu0 0
    %1831 = vmatmul.mubr.bf16.gmra.mrb[0].mxu0 %v382
    %v1832 = vpop.f32.mrb[0].mxu0
    %v1833 = vadd.f32 %v1792, %v1832
    %v1834 = vpop.f32.mrb[0].mxu0
    %v1835 = vadd.f32 %v1794, %v1834
    %v1836 = vpop.f32.mrb[0].mxu0
    %v1837 = vpop.f32.mrb[0].mxu0
    %1838 = vdwg.mxu0
    %v1839 = vmax.f32 %v1669, 0.0
    %v1840 = vmax.f32 %v1671, 0.0
    %v1841 = vmax.f32 %v1833, 0.0
    %v1842 = vmax.f32 %v1835, 0.0
    %v1843 = vpack.c.bf16 %v1839, %v1839
    %v1844 = vpack.c.bf16 %v1840, %v1840
    %v1845 = vpack.c.bf16 %v1841, %v1841
    %v1846 = vpack.c.bf16 %v1842, %v1842
    %v1847 = vld [vmem:[#allocation4] sm:$0xf]
    %v1848 = vld [vmem:[#allocation4 + $0x4] sm:$0xf]
    %v1849 = vld [vmem:[#allocation4 + $0x8] sm:$0xf]
    %v1850 = vld [vmem:[#allocation4 + $0xc] sm:$0xf]
    %v1851 = vld [vmem:[#allocation4 + $0x10] sm:$0xf]
    %v1852 = vld [vmem:[#allocation4 + $0x14] sm:$0xf]
    %v1853 = vld [vmem:[#allocation4 + $0x18] sm:$0xf]
    %v1854 = vld [vmem:[#allocation4 + $0x1c] sm:$0xf]
    %v1855 = vld [vmem:[#allocation4 + $0x20] sm:$0xf]
    %v1856 = vld [vmem:[#allocation4 + $0x24] sm:$0xf]
    %v1857 = vld [vmem:[#allocation4 + $0x28] sm:$0xf]
    %v1858 = vld [vmem:[#allocation4 + $0x2c] sm:$0xf]
    %v1859 = vld [vmem:[#allocation4 + $0x30] sm:$0xf]
    %v1860 = vld [vmem:[#allocation4 + $0x34] sm:$0xf]
    %v1861 = vld [vmem:[#allocation4 + $0x38] sm:$0xf]
    %v1862 = vld [vmem:[#allocation4 + $0x3c] sm:$0xf]
    %v1863 = vld [vmem:[#allocation4 + $0x40] sm:$0xf]
    %v1864 = vld [vmem:[#allocation4 + $0x44] sm:$0xf]
    %v1865 = vld [vmem:[#allocation4 + $0x48] sm:$0xf]
    %v1866 = vld [vmem:[#allocation4 + $0x4c] sm:$0xf]
    %v1867 = vld [vmem:[#allocation4 + $0x50] sm:$0xf]
    %v1868 = vld [vmem:[#allocation4 + $0x54] sm:$0xf]
    %v1869 = vld [vmem:[#allocation4 + $0x58] sm:$0xf]
    %v1870 = vld [vmem:[#allocation4 + $0x5c] sm:$0xf]
    %v1871 = vld [vmem:[#allocation4 + $0x60] sm:$0xf]
    %v1872 = vld [vmem:[#allocation4 + $0x64] sm:$0xf]
    %v1873 = vld [vmem:[#allocation4 + $0x68] sm:$0xf]
    %v1874 = vld [vmem:[#allocation4 + $0x6c] sm:$0xf]
    %v1875 = vld [vmem:[#allocation4 + $0x70] sm:$0xf]
    %v1876 = vld [vmem:[#allocation4 + $0x74] sm:$0xf]
    %v1877 = vld [vmem:[#allocation4 + $0x78] sm:$0xf]
    %v1878 = vld [vmem:[#allocation4 + $0x7c] sm:$0xf]
    %v1879 = vld [vmem:[#allocation4 + $0x80] sm:$0xf]
    %v1880 = vld [vmem:[#allocation4 + $0x84] sm:$0xf]
    %v1881 = vld [vmem:[#allocation4 + $0x88] sm:$0xf]
    %v1882 = vld [vmem:[#allocation4 + $0x8c] sm:$0xf]
    %v1883 = vld [vmem:[#allocation4 + $0x90] sm:$0xf]
    %v1884 = vld [vmem:[#allocation4 + $0x94] sm:$0xf]
    %v1885 = vld [vmem:[#allocation4 + $0x98] sm:$0xf]
    %v1886 = vld [vmem:[#allocation4 + $0x9c] sm:$0xf]
    %v1887 = vld [vmem:[#allocation4 + $0xa0] sm:$0xf]
    %v1888 = vld [vmem:[#allocation4 + $0xa4] sm:$0xf]
    %v1889 = vld [vmem:[#allocation4 + $0xa8] sm:$0xf]
    %v1890 = vld [vmem:[#allocation4 + $0xac] sm:$0xf]
    %v1891 = vld [vmem:[#allocation4 + $0xb0] sm:$0xf]
    %v1892 = vld [vmem:[#allocation4 + $0xb4] sm:$0xf]
    %v1893 = vld [vmem:[#allocation4 + $0xb8] sm:$0xf]
    %v1894 = vld [vmem:[#allocation4 + $0xbc] sm:$0xf]
    %v1895 = vld [vmem:[#allocation4 + $0xc0] sm:$0xf]
    %v1896 = vld [vmem:[#allocation4 + $0xc4] sm:$0xf]
    %v1897 = vld [vmem:[#allocation4 + $0xc8] sm:$0xf]
    %v1898 = vld [vmem:[#allocation4 + $0xcc] sm:$0xf]
    %v1899 = vld [vmem:[#allocation4 + $0xd0] sm:$0xf]
    %v1900 = vld [vmem:[#allocation4 + $0xd4] sm:$0xf]
    %v1901 = vld [vmem:[#allocation4 + $0xd8] sm:$0xf]
    %v1902 = vld [vmem:[#allocation4 + $0xdc] sm:$0xf]
    %v1903 = vld [vmem:[#allocation4 + $0xe0] sm:$0xf]
    %v1904 = vld [vmem:[#allocation4 + $0xe4] sm:$0xf]
    %v1905 = vld [vmem:[#allocation4 + $0xe8] sm:$0xf]
    %v1906 = vld [vmem:[#allocation4 + $0xec] sm:$0xf]
    %v1907 = vld [vmem:[#allocation4 + $0xf0] sm:$0xf]
    %v1908 = vld [vmem:[#allocation4 + $0xf4] sm:$0xf]
    %v1909 = vld [vmem:[#allocation4 + $0xf8] sm:$0xf]
    %v1910 = vld [vmem:[#allocation4 + $0xfc] sm:$0xf]
    %v1911 = vld [vmem:[%s4] sm:$0x1]
    %v1913 = vlaneseq
    %v1914 = vshrl.u32 %v1913, 7
    %v1915 = vsub.s32 0, %v1914
    %v1916 = vrot.slane %v1911, %v1915
    %v1982 = vunpack.c.l.b16 %v1847
    %v1983 = vunpack.c.l.b16 %v1848
    %v1984 = vunpack.c.l.b16 %v1849
    %v1985 = vunpack.c.l.b16 %v1850
    %v1986 = vunpack.c.l.b16 %v1851
    %v1987 = vunpack.c.l.b16 %v1852
    %v1988 = vunpack.c.l.b16 %v1853
    %v1989 = vunpack.c.l.b16 %v1854
    %v1990 = vunpack.c.l.b16 %v1855
    %v1991 = vunpack.c.l.b16 %v1856
    %v1992 = vunpack.c.l.b16 %v1857
    %v1993 = vunpack.c.l.b16 %v1858
    %v1994 = vunpack.c.l.b16 %v1859
    %v1995 = vunpack.c.l.b16 %v1860
    %v1996 = vunpack.c.l.b16 %v1861
    %v1997 = vunpack.c.l.b16 %v1862
    %v1998 = vunpack.c.l.b16 %v1863
    %v1999 = vunpack.c.l.b16 %v1864
    %v2000 = vunpack.c.l.b16 %v1865
    %v2001 = vunpack.c.l.b16 %v1866
    %v2002 = vunpack.c.l.b16 %v1867
    %v2003 = vunpack.c.l.b16 %v1868
    %v2004 = vunpack.c.l.b16 %v1869
    %v2005 = vunpack.c.l.b16 %v1870
    %v2006 = vunpack.c.l.b16 %v1871
    %v2007 = vunpack.c.l.b16 %v1872
    %v2008 = vunpack.c.l.b16 %v1873
    %v2009 = vunpack.c.l.b16 %v1874
    %v2010 = vunpack.c.l.b16 %v1875
    %v2011 = vunpack.c.l.b16 %v1876
    %v2012 = vunpack.c.l.b16 %v1877
    %v2013 = vunpack.c.l.b16 %v1878
    %v2014 = vunpack.c.l.b16 %v1879
    %v2015 = vunpack.c.l.b16 %v1880
    %v2016 = vunpack.c.l.b16 %v1881
    %v2017 = vunpack.c.l.b16 %v1882
    %v2018 = vunpack.c.l.b16 %v1883
    %v2019 = vunpack.c.l.b16 %v1884
    %v2020 = vunpack.c.l.b16 %v1885
    %v2021 = vunpack.c.l.b16 %v1886
    %v2022 = vunpack.c.l.b16 %v1887
    %v2023 = vunpack.c.l.b16 %v1888
    %v2024 = vunpack.c.l.b16 %v1889
    %v2025 = vunpack.c.l.b16 %v1890
    %v2026 = vunpack.c.l.b16 %v1891
    %v2027 = vunpack.c.l.b16 %v1892
    %v2028 = vunpack.c.l.b16 %v1893
    %v2029 = vunpack.c.l.b16 %v1894
    %v2030 = vunpack.c.l.b16 %v1895
    %v2031 = vunpack.c.l.b16 %v1896
    %v2032 = vunpack.c.l.b16 %v1897
    %v2033 = vunpack.c.l.b16 %v1898
    %v2034 = vunpack.c.l.b16 %v1899
    %v2035 = vunpack.c.l.b16 %v1900
    %v2036 = vunpack.c.l.b16 %v1901
    %v2037 = vunpack.c.l.b16 %v1902
    %v2038 = vunpack.c.l.b16 %v1903
    %v2039 = vunpack.c.l.b16 %v1904
    %v2040 = vunpack.c.l.b16 %v1905
    %v2041 = vunpack.c.l.b16 %v1906
    %v2042 = vunpack.c.l.b16 %v1907
    %v2043 = vunpack.c.l.b16 %v1908
    %v2044 = vunpack.c.l.b16 %v1909
    %v2045 = vunpack.c.l.b16 %v1910
    %v2046 = vpack.c.b16 %v1983, %v1982
    %v2047 = vpack.c.b16 %v1985, %v1984
    %v2048 = vpack.c.b16 %v1987, %v1986
    %v2049 = vpack.c.b16 %v1989, %v1988
    %v2050 = vpack.c.b16 %v1991, %v1990
    %v2051 = vpack.c.b16 %v1993, %v1992
    %v2052 = vpack.c.b16 %v1995, %v1994
    %v2053 = vpack.c.b16 %v1997, %v1996
    %v2054 = vpack.c.b16 %v1999, %v1998
    %v2055 = vpack.c.b16 %v2001, %v2000
    %v2056 = vpack.c.b16 %v2003, %v2002
    %v2057 = vpack.c.b16 %v2005, %v2004
    %v2058 = vpack.c.b16 %v2007, %v2006
    %v2059 = vpack.c.b16 %v2009, %v2008
    %v2060 = vpack.c.b16 %v2011, %v2010
    %v2061 = vpack.c.b16 %v2013, %v2012
    %v2062 = vpack.c.b16 %v2015, %v2014
    %v2063 = vpack.c.b16 %v2017, %v2016
    %v2064 = vpack.c.b16 %v2019, %v2018
    %v2065 = vpack.c.b16 %v2021, %v2020
    %v2066 = vpack.c.b16 %v2023, %v2022
    %v2067 = vpack.c.b16 %v2025, %v2024
    %v2068 = vpack.c.b16 %v2027, %v2026
    %v2069 = vpack.c.b16 %v2029, %v2028
    %v2070 = vpack.c.b16 %v2031, %v2030
    %v2071 = vpack.c.b16 %v2033, %v2032
    %v2072 = vpack.c.b16 %v2035, %v2034
    %v2073 = vpack.c.b16 %v2037, %v2036
    %v2074 = vpack.c.b16 %v2039, %v2038
    %v2075 = vpack.c.b16 %v2041, %v2040
    %v2076 = vpack.c.b16 %v2043, %v2042
    %v2077 = vpack.c.b16 %v2045, %v2044
    %2110 = vmatprep.subr.bf16.mxu0 0
    %2111 = vmatpush1.bf16.msra.mxu0 %v2046
    %2112 = vmatprep.subr.bf16.mxu0 0
    %2113 = vmatpush1.bf16.msra.mxu0 %v2047
    %2114 = vmatprep.subr.bf16.mxu0 0
    %2115 = vmatpush1.bf16.msra.mxu0 %v2048
    %2116 = vmatprep.subr.bf16.mxu0 0
    %2117 = vmatpush1.bf16.msra.mxu0 %v2049
    %2118 = vmatprep.subr.bf16.mxu0 0
    %2119 = vmatpush1.bf16.msra.mxu0 %v2050
    %2120 = vmatprep.subr.bf16.mxu0 0
    %2121 = vmatpush1.bf16.msra.mxu0 %v2051
    %2122 = vmatprep.subr.bf16.mxu0 0
    %2123 = vmatpush1.bf16.msra.mxu0 %v2052
    %2124 = vmatprep.subr.bf16.mxu0 0
    %2125 = vmatpush1.bf16.msra.mxu0 %v2053
    %2126 = vmatprep.subr.bf16.mxu0 0
    %2127 = vmatpush1.bf16.msra.mxu0 %v2054
    %2128 = vmatprep.subr.bf16.mxu0 0
    %2129 = vmatpush1.bf16.msra.mxu0 %v2055
    %2130 = vmatprep.subr.bf16.mxu0 0
    %2131 = vmatpush1.bf16.msra.mxu0 %v2056
    %2132 = vmatprep.subr.bf16.mxu0 0
    %2133 = vmatpush1.bf16.msra.mxu0 %v2057
    %2134 = vmatprep.subr.bf16.mxu0 0
    %2135 = vmatpush1.bf16.msra.mxu0 %v2058
    %2136 = vmatprep.subr.bf16.mxu0 0
    %2137 = vmatpush1.bf16.msra.mxu0 %v2059
    %2138 = vmatprep.subr.bf16.mxu0 0
    %2139 = vmatpush1.bf16.msra.mxu0 %v2060
    %2140 = vmatprep.subr.bf16.mxu0 0
    %2141 = vmatpush1.bf16.msra.mxu0 %v2061
    %2142 = vmatprep.mubr.bf16.mxu0 %v1844
    %2143 = vmatmul.mubr.bf16.gmra.mrb[0].mxu0 %v1843
    %v2144 = vpop.f32.mrb[0].mxu0
    %v2145 = vadd.f32 %v1916, %v2144
    %v2146 = vpop.f32.mrb[0].mxu0
    %v2147 = vpop.f32.mrb[0].mxu0
    %v2148 = vpop.f32.mrb[0].mxu0
    %2149 = vdwg.mxu0
    %2150 = vmatprep.subr.bf16.mxu0 0
    %2151 = vmatpush1.bf16.msra.mxu0 %v2062
    %2152 = vmatprep.subr.bf16.mxu0 0
    %2153 = vmatpush1.bf16.msra.mxu0 %v2063
    %2154 = vmatprep.subr.bf16.mxu0 0
    %2155 = vmatpush1.bf16.msra.mxu0 %v2064
    %2156 = vmatprep.subr.bf16.mxu0 0
    %2157 = vmatpush1.bf16.msra.mxu0 %v2065
    %2158 = vmatprep.subr.bf16.mxu0 0
    %2159 = vmatpush1.bf16.msra.mxu0 %v2066
    %2160 = vmatprep.subr.bf16.mxu0 0
    %2161 = vmatpush1.bf16.msra.mxu0 %v2067
    %2162 = vmatprep.subr.bf16.mxu0 0
    %2163 = vmatpush1.bf16.msra.mxu0 %v2068
    %2164 = vmatprep.subr.bf16.mxu0 0
    %2165 = vmatpush1.bf16.msra.mxu0 %v2069
    %2166 = vmatprep.subr.bf16.mxu0 0
    %2167 = vmatpush1.bf16.msra.mxu0 %v2070
    %2168 = vmatprep.subr.bf16.mxu0 0
    %2169 = vmatpush1.bf16.msra.mxu0 %v2071
    %2170 = vmatprep.subr.bf16.mxu0 0
    %2171 = vmatpush1.bf16.msra.mxu0 %v2072
    %2172 = vmatprep.subr.bf16.mxu0 0
    %2173 = vmatpush1.bf16.msra.mxu0 %v2073
    %2174 = vmatprep.subr.bf16.mxu0 0
    %2175 = vmatpush1.bf16.msra.mxu0 %v2074
    %2176 = vmatprep.subr.bf16.mxu0 0
    %2177 = vmatpush1.bf16.msra.mxu0 %v2075
    %2178 = vmatprep.subr.bf16.mxu0 0
    %2179 = vmatpush1.bf16.msra.mxu0 %v2076
    %2180 = vmatprep.subr.bf16.mxu0 0
    %2181 = vmatpush1.bf16.msra.mxu0 %v2077
    %2182 = vmatprep.mubr.bf16.mxu0 %v1846
    %2183 = vmatmul.mubr.bf16.gmra.mrb[0].mxu0 %v1845
    %v2184 = vpop.f32.mrb[0].mxu0
    %v2185 = vadd.f32 %v2145, %v2184
    %v2186 = vpop.f32.mrb[0].mxu0
    %v2187 = vpop.f32.mrb[0].mxu0
    %v2188 = vpop.f32.mrb[0].mxu0
    %2189 = vdwg.mxu0
    %v2190 = vpack.c.bf16 %v2185, %v2185
    %v2191 = vld [vmem:[#allocation6] sm:$0xff]
    %v2192 = vld [vmem:[#allocation6 + $0x8] sm:$0xff]
    %v2193 = vld [vmem:[#allocation6 + $0x10] sm:$0xff]
    %v2194 = vld [vmem:[#allocation6 + $0x18] sm:$0xff]
    %v2195 = vld [vmem:[#allocation6 + $0x20] sm:$0xff]
    %v2196 = vld [vmem:[#allocation6 + $0x28] sm:$0xff]
    %v2197 = vld [vmem:[#allocation6 + $0x30] sm:$0xff]
    %v2198 = vld [vmem:[#allocation6 + $0x38] sm:$0xff]
    %v2199 = vld [vmem:[#allocation6 + $0x40] sm:$0xff]
    %v2200 = vld [vmem:[#allocation6 + $0x48] sm:$0xff]
    %v2201 = vld [vmem:[#allocation6 + $0x50] sm:$0xff]
    %v2202 = vld [vmem:[#allocation6 + $0x58] sm:$0xff]
    %v2203 = vld [vmem:[#allocation6 + $0x60] sm:$0xff]
    %v2204 = vld [vmem:[#allocation6 + $0x68] sm:$0xff]
    %v2205 = vld [vmem:[#allocation6 + $0x70] sm:$0xff]
    %v2206 = vld [vmem:[#allocation6 + $0x78] sm:$0xff]
    %v2207 = vld [vmem:[#allocation6 + $0x80] sm:$0xff]
    %v2208 = vld [vmem:[#allocation6 + $0x88] sm:$0xff]
    %v2209 = vld [vmem:[#allocation6 + $0x90] sm:$0xff]
    %v2210 = vld [vmem:[#allocation6 + $0x98] sm:$0xff]
    %v2211 = vld [vmem:[#allocation6 + $0xa0] sm:$0xff]
    %v2212 = vld [vmem:[#allocation6 + $0xa8] sm:$0xff]
    %v2213 = vld [vmem:[#allocation6 + $0xb0] sm:$0xff]
    %v2214 = vld [vmem:[#allocation6 + $0xb8] sm:$0xff]
    %v2215 = vld [vmem:[#allocation6 + $0xc0] sm:$0xff]
    %v2216 = vld [vmem:[#allocation6 + $0xc8] sm:$0xff]
    %v2217 = vld [vmem:[#allocation6 + $0xd0] sm:$0xff]
    %v2218 = vld [vmem:[#allocation6 + $0xd8] sm:$0xff]
    %v2219 = vld [vmem:[#allocation6 + $0xe0] sm:$0xff]
    %v2220 = vld [vmem:[#allocation6 + $0xe8] sm:$0xff]
    %v2221 = vld [vmem:[#allocation6 + $0xf0] sm:$0xff]
    %v2222 = vld [vmem:[#allocation6 + $0xf8] sm:$0xff]
    %v2223 = vld [vmem:[%s6] sm:$0xf]
    %v2225 = vlaneseq
    %v2226 = vshrl.u32 %v2225, 7
    %v2227 = vsub.s32 0, %v2226
    %v2228 = vrot.slane %v2223, %v2227
    %v2229 = vlaneseq
    %v2230 = vshrl.u32 %v2229, 7
    %v2231 = vsub.s32 1, %v2230
    %v2232 = vrot.slane %v2223, %v2231
    %v2233 = vlaneseq
    %v2234 = vshrl.u32 %v2233, 7
    %v2235 = vsub.s32 2, %v2234
    %v2236 = vrot.slane %v2223, %v2235
    %v2237 = vlaneseq
    %v2238 = vshrl.u32 %v2237, 7
    %v2239 = vsub.s32 3, %v2238
    %v2240 = vrot.slane %v2223, %v2239
    %v2277 = vunpack.c.l.b16 %v2191
    %v2278 = vunpack.c.h.b16 %v2191
    %v2279 = vunpack.c.l.b16 %v2192
    %v2280 = vunpack.c.h.b16 %v2192
    %v2281 = vunpack.c.l.b16 %v2193
    %v2282 = vunpack.c.h.b16 %v2193
    %v2283 = vunpack.c.l.b16 %v2194
    %v2284 = vunpack.c.h.b16 %v2194
    %v2285 = vunpack.c.l.b16 %v2195
    %v2286 = vunpack.c.h.b16 %v2195
    %v2287 = vunpack.c.l.b16 %v2196
    %v2288 = vunpack.c.h.b16 %v2196
    %v2289 = vunpack.c.l.b16 %v2197
    %v2290 = vunpack.c.h.b16 %v2197
    %v2291 = vunpack.c.l.b16 %v2198
    %v2292 = vunpack.c.h.b16 %v2198
    %v2293 = vunpack.c.l.b16 %v2199
    %v2294 = vunpack.c.h.b16 %v2199
    %v2295 = vunpack.c.l.b16 %v2200
    %v2296 = vunpack.c.h.b16 %v2200
    %v2297 = vunpack.c.l.b16 %v2201
    %v2298 = vunpack.c.h.b16 %v2201
    %v2299 = vunpack.c.l.b16 %v2202
    %v2300 = vunpack.c.h.b16 %v2202
    %v2301 = vunpack.c.l.b16 %v2203
    %v2302 = vunpack.c.h.b16 %v2203
    %v2303 = vunpack.c.l.b16 %v2204
    %v2304 = vunpack.c.h.b16 %v2204
    %v2305 = vunpack.c.l.b16 %v2205
    %v2306 = vunpack.c.h.b16 %v2205
    %v2307 = vunpack.c.l.b16 %v2206
    %v2308 = vunpack.c.h.b16 %v2206
    %v2309 = vunpack.c.l.b16 %v2207
    %v2310 = vunpack.c.h.b16 %v2207
    %v2311 = vunpack.c.l.b16 %v2208
    %v2312 = vunpack.c.h.b16 %v2208
    %v2313 = vunpack.c.l.b16 %v2209
    %v2314 = vunpack.c.h.b16 %v2209
    %v2315 = vunpack.c.l.b16 %v2210
    %v2316 = vunpack.c.h.b16 %v2210
    %v2317 = vunpack.c.l.b16 %v2211
    %v2318 = vunpack.c.h.b16 %v2211
    %v2319 = vunpack.c.l.b16 %v2212
    %v2320 = vunpack.c.h.b16 %v2212
    %v2321 = vunpack.c.l.b16 %v2213
    %v2322 = vunpack.c.h.b16 %v2213
    %v2323 = vunpack.c.l.b16 %v2214
    %v2324 = vunpack.c.h.b16 %v2214
    %v2325 = vunpack.c.l.b16 %v2215
    %v2326 = vunpack.c.h.b16 %v2215
    %v2327 = vunpack.c.l.b16 %v2216
    %v2328 = vunpack.c.h.b16 %v2216
    %v2329 = vunpack.c.l.b16 %v2217
    %v2330 = vunpack.c.h.b16 %v2217
    %v2331 = vunpack.c.l.b16 %v2218
    %v2332 = vunpack.c.h.b16 %v2218
    %v2333 = vunpack.c.l.b16 %v2219
    %v2334 = vunpack.c.h.b16 %v2219
    %v2335 = vunpack.c.l.b16 %v2220
    %v2336 = vunpack.c.h.b16 %v2220
    %v2337 = vunpack.c.l.b16 %v2221
    %v2338 = vunpack.c.h.b16 %v2221
    %v2339 = vunpack.c.l.b16 %v2222
    %v2340 = vunpack.c.h.b16 %v2222
    %v2341 = vpack.c.b16 %v2281, %v2277
    %v2342 = vpack.c.b16 %v2282, %v2278
    %v2343 = vpack.c.b16 %v2283, %v2279
    %v2344 = vpack.c.b16 %v2284, %v2280
    %v2345 = vpack.c.b16 %v2289, %v2285
    %v2346 = vpack.c.b16 %v2290, %v2286
    %v2347 = vpack.c.b16 %v2291, %v2287
    %v2348 = vpack.c.b16 %v2292, %v2288
    %v2349 = vpack.c.b16 %v2297, %v2293
    %v2350 = vpack.c.b16 %v2298, %v2294
    %v2351 = vpack.c.b16 %v2299, %v2295
    %v2352 = vpack.c.b16 %v2300, %v2296
    %v2353 = vpack.c.b16 %v2305, %v2301
    %v2354 = vpack.c.b16 %v2306, %v2302
    %v2355 = vpack.c.b16 %v2307, %v2303
    %v2356 = vpack.c.b16 %v2308, %v2304
    %v2357 = vpack.c.b16 %v2313, %v2309
    %v2358 = vpack.c.b16 %v2314, %v2310
    %v2359 = vpack.c.b16 %v2315, %v2311
    %v2360 = vpack.c.b16 %v2316, %v2312
    %v2361 = vpack.c.b16 %v2321, %v2317
    %v2362 = vpack.c.b16 %v2322, %v2318
    %v2363 = vpack.c.b16 %v2323, %v2319
    %v2364 = vpack.c.b16 %v2324, %v2320
    %v2365 = vpack.c.b16 %v2329, %v2325
    %v2366 = vpack.c.b16 %v2330, %v2326
    %v2367 = vpack.c.b16 %v2331, %v2327
    %v2368 = vpack.c.b16 %v2332, %v2328
    %v2369 = vpack.c.b16 %v2337, %v2333
    %v2370 = vpack.c.b16 %v2338, %v2334
    %v2371 = vpack.c.b16 %v2339, %v2335
    %v2372 = vpack.c.b16 %v2340, %v2336
    %2405 = vmatprep.subr.bf16.mxu0 %v2342
    %2406 = vmatpush1.bf16.msra.mxu0 %v2341
    %2407 = vmatprep.subr.bf16.mxu0 %v2346
    %2408 = vmatpush1.bf16.msra.mxu0 %v2345
    %2409 = vmatprep.subr.bf16.mxu0 %v2350
    %2410 = vmatpush1.bf16.msra.mxu0 %v2349
    %2411 = vmatprep.subr.bf16.mxu0 %v2354
    %2412 = vmatpush1.bf16.msra.mxu0 %v2353
    %2413 = vmatprep.subr.bf16.mxu0 %v2358
    %2414 = vmatpush1.bf16.msra.mxu0 %v2357
    %2415 = vmatprep.subr.bf16.mxu0 %v2362
    %2416 = vmatpush1.bf16.msra.mxu0 %v2361
    %2417 = vmatprep.subr.bf16.mxu0 %v2366
    %2418 = vmatpush1.bf16.msra.mxu0 %v2365
    %2419 = vmatprep.subr.bf16.mxu0 %v2370
    %2420 = vmatpush1.bf16.msra.mxu0 %v2369
    %2421 = vmatprep.subr.bf16.mxu0 0
    %2422 = vmatpush1.bf16.msra.mxu0 0
    %2423 = vmatprep.subr.bf16.mxu0 0
    %2424 = vmatpush1.bf16.msra.mxu0 0
    %2425 = vmatprep.subr.bf16.mxu0 0
    %2426 = vmatpush1.bf16.msra.mxu0 0
    %2427 = vmatprep.subr.bf16.mxu0 0
    %2428 = vmatpush1.bf16.msra.mxu0 0
    %2429 = vmatprep.subr.bf16.mxu0 0
    %2430 = vmatpush1.bf16.msra.mxu0 0
    %2431 = vmatprep.subr.bf16.mxu0 0
    %2432 = vmatpush1.bf16.msra.mxu0 0
    %2433 = vmatprep.subr.bf16.mxu0 0
    %2434 = vmatpush1.bf16.msra.mxu0 0
    %2435 = vmatprep.subr.bf16.mxu0 0
    %2436 = vmatpush1.bf16.msra.mxu0 0
    %2437 = vmatprep.mubr.bf16.mxu0 0
    %2438 = vmatmul.mubr.bf16.gmra.mrb[0].mxu0 %v2190
    %v2439 = vpop.f32.mrb[0].mxu0
    %v2440 = vadd.f32 %v2228, %v2439
    %v2441 = vpop.f32.mrb[0].mxu0
    %v2442 = vadd.f32 %v2232, %v2441
    %v2443 = vpop.f32.mrb[0].mxu0
    %v2444 = vpop.f32.mrb[0].mxu0
    %2445 = vdwg.mxu0
    %2446 = vmatprep.subr.bf16.mxu0 %v2344
    %2447 = vmatpush1.bf16.msra.mxu0 %v2343
    %2448 = vmatprep.subr.bf16.mxu0 %v2348
    %2449 = vmatpush1.bf16.msra.mxu0 %v2347
    %2450 = vmatprep.subr.bf16.mxu0 %v2352
    %2451 = vmatpush1.bf16.msra.mxu0 %v2351
    %2452 = vmatprep.subr.bf16.mxu0 %v2356
    %2453 = vmatpush1.bf16.msra.mxu0 %v2355
    %2454 = vmatprep.subr.bf16.mxu0 %v2360
    %2455 = vmatpush1.bf16.msra.mxu0 %v2359
    %2456 = vmatprep.subr.bf16.mxu0 %v2364
    %2457 = vmatpush1.bf16.msra.mxu0 %v2363
    %2458 = vmatprep.subr.bf16.mxu0 %v2368
    %2459 = vmatpush1.bf16.msra.mxu0 %v2367
    %2460 = vmatprep.subr.bf16.mxu0 %v2372
    %2461 = vmatpush1.bf16.msra.mxu0 %v2371
    %2462 = vmatprep.subr.bf16.mxu0 0
    %2463 = vmatpush1.bf16.msra.mxu0 0
    %2464 = vmatprep.subr.bf16.mxu0 0
    %2465 = vmatpush1.bf16.msra.mxu0 0
    %2466 = vmatprep.subr.bf16.mxu0 0
    %2467 = vmatpush1.bf16.msra.mxu0 0
    %2468 = vmatprep.subr.bf16.mxu0 0
    %2469 = vmatpush1.bf16.msra.mxu0 0
    %2470 = vmatprep.subr.bf16.mxu0 0
    %2471 = vmatpush1.bf16.msra.mxu0 0
    %2472 = vmatprep.subr.bf16.mxu0 0
    %2473 = vmatpush1.bf16.msra.mxu0 0
    %2474 = vmatprep.subr.bf16.mxu0 0
    %2475 = vmatpush1.bf16.msra.mxu0 0
    %2476 = vmatprep.subr.bf16.mxu0 0
    %2477 = vmatpush1.bf16.msra.mxu0 0
    %2478 = vmatprep.mubr.bf16.mxu0 0
    %2479 = vmatmul.mubr.bf16.gmra.mrb[0].mxu0 %v2190
    %v2480 = vpop.f32.mrb[0].mxu0
    %v2481 = vadd.f32 %v2236, %v2480
    %v2482 = vpop.f32.mrb[0].mxu0
    %v2483 = vadd.f32 %v2240, %v2482
    %v2484 = vpop.f32.mrb[0].mxu0
    %v2485 = vpop.f32.mrb[0].mxu0
    %2486 = vdwg.mxu0
    %v2487 = vmax.f32 %v2440, 0.0
    %v2488 = vmax.f32 %v2442, 0.0
    %v2489 = vmax.f32 %v2481, 0.0
    %v2490 = vmax.f32 %v2483, 0.0
    %v2491 = vpack.c.bf16 %v2487, %v2487
    %v2492 = vpack.c.bf16 %v2488, %v2488
    %v2493 = vpack.c.bf16 %v2489, %v2489
    %v2494 = vpack.c.bf16 %v2490, %v2490
    %v2495 = vld [vmem:[#allocation7] sm:$0xff]
    %v2496 = vld [vmem:[#allocation7 + $0x8] sm:$0xff]
    %v2497 = vld [vmem:[#allocation7 + $0x10] sm:$0xff]
    %v2498 = vld [vmem:[#allocation7 + $0x18] sm:$0xf]
    %v2499 = vld [vmem:[#allocation7 + $0x1c] sm:$0xff]
    %v2500 = vld [vmem:[#allocation7 + $0x24] sm:$0xff]
    %v2501 = vld [vmem:[#allocation7 + $0x2c] sm:$0xff]
    %v2502 = vld [vmem:[#allocation7 + $0x34] sm:$0xf]
    %v2503 = vld [vmem:[#allocation7 + $0x38] sm:$0xff]
    %v2504 = vld [vmem:[#allocation7 + $0x40] sm:$0xff]
    %v2505 = vld [vmem:[#allocation7 + $0x48] sm:$0xff]
    %v2506 = vld [vmem:[#allocation7 + $0x50] sm:$0xf]
    %v2507 = vld [vmem:[#allocation7 + $0x54] sm:$0xff]
    %v2508 = vld [vmem:[#allocation7 + $0x5c] sm:$0xff]
    %v2509 = vld [vmem:[#allocation7 + $0x64] sm:$0xff]
    %v2510 = vld [vmem:[#allocation7 + $0x6c] sm:$0xf]
    %v2511 = vld [vmem:[#allocation7 + $0x70] sm:$0xff]
    %v2512 = vld [vmem:[#allocation7 + $0x78] sm:$0xff]
    %v2513 = vld [vmem:[#allocation7 + $0x80] sm:$0xff]
    %v2514 = vld [vmem:[#allocation7 + $0x88] sm:$0xf]
    %v2515 = vld [vmem:[#allocation7 + $0x8c] sm:$0xff]
    %v2516 = vld [vmem:[#allocation7 + $0x94] sm:$0xff]
    %v2517 = vld [vmem:[#allocation7 + $0x9c] sm:$0xff]
    %v2518 = vld [vmem:[#allocation7 + $0xa4] sm:$0xf]
    %v2519 = vld [vmem:[#allocation7 + $0xa8] sm:$0xff]
    %v2520 = vld [vmem:[#allocation7 + $0xb0] sm:$0xff]
    %v2521 = vld [vmem:[#allocation7 + $0xb8] sm:$0xff]
    %v2522 = vld [vmem:[#allocation7 + $0xc0] sm:$0xf]
    %v2523 = vld [vmem:[#allocation7 + $0xc4] sm:$0xff]
    %v2524 = vld [vmem:[#allocation7 + $0xcc] sm:$0xff]
    %v2525 = vld [vmem:[#allocation7 + $0xd4] sm:$0xff]
    %v2526 = vld [vmem:[#allocation7 + $0xdc] sm:$0xf]
    %v2527 = vld [vmem:[#allocation7 + $0xe0] sm:$0xff]
    %v2528 = vld [vmem:[#allocation7 + $0xe8] sm:$0xff]
    %v2529 = vld [vmem:[#allocation7 + $0xf0] sm:$0xff]
    %v2530 = vld [vmem:[#allocation7 + $0xf8] sm:$0xf]
    %v2531 = vld [vmem:[#allocation7 + $0xfc] sm:$0xff]
    %v2532 = vld [vmem:[#allocation7 + $0x104] sm:$0xff]
    %v2533 = vld [vmem:[#allocation7 + $0x10c] sm:$0xff]
    %v2534 = vld [vmem:[#allocation7 + $0x114] sm:$0xf]
    %v2535 = vld [vmem:[#allocation7 + $0x118] sm:$0xff]
    %v2536 = vld [vmem:[#allocation7 + $0x120] sm:$0xff]
    %v2537 = vld [vmem:[#allocation7 + $0x128] sm:$0xff]
    %v2538 = vld [vmem:[#allocation7 + $0x130] sm:$0xf]
    %v2539 = vld [vmem:[#allocation7 + $0x134] sm:$0xff]
    %v2540 = vld [vmem:[#allocation7 + $0x13c] sm:$0xff]
    %v2541 = vld [vmem:[#allocation7 + $0x144] sm:$0xff]
    %v2542 = vld [vmem:[#allocation7 + $0x14c] sm:$0xf]
    %v2543 = vld [vmem:[#allocation7 + $0x150] sm:$0xff]
    %v2544 = vld [vmem:[#allocation7 + $0x158] sm:$0xff]
    %v2545 = vld [vmem:[#allocation7 + $0x160] sm:$0xff]
    %v2546 = vld [vmem:[#allocation7 + $0x168] sm:$0xf]
    %v2547 = vld [vmem:[#allocation7 + $0x16c] sm:$0xff]
    %v2548 = vld [vmem:[#allocation7 + $0x174] sm:$0xff]
    %v2549 = vld [vmem:[#allocation7 + $0x17c] sm:$0xff]
    %v2550 = vld [vmem:[#allocation7 + $0x184] sm:$0xf]
    %v2551 = vld [vmem:[#allocation7 + $0x188] sm:$0xff]
    %v2552 = vld [vmem:[#allocation7 + $0x190] sm:$0xff]
    %v2553 = vld [vmem:[#allocation7 + $0x198] sm:$0xff]
    %v2554 = vld [vmem:[#allocation7 + $0x1a0] sm:$0xf]
    %v2555 = vld [vmem:[#allocation7 + $0x1a4] sm:$0xff]
    %v2556 = vld [vmem:[#allocation7 + $0x1ac] sm:$0xff]
    %v2557 = vld [vmem:[#allocation7 + $0x1b4] sm:$0xff]
    %v2558 = vld [vmem:[#allocation7 + $0x1bc] sm:$0xf]
    %v2559 = vld [vmem:[#allocation7 + $0x1c0] sm:$0xff]
    %v2560 = vld [vmem:[#allocation7 + $0x1c8] sm:$0xff]
    %v2561 = vld [vmem:[#allocation7 + $0x1d0] sm:$0xff]
    %v2562 = vld [vmem:[#allocation7 + $0x1d8] sm:$0xf]
    %v2563 = vld [vmem:[#allocation7 + $0x1dc] sm:$0xff]
    %v2564 = vld [vmem:[#allocation7 + $0x1e4] sm:$0xff]
    %v2565 = vld [vmem:[#allocation7 + $0x1ec] sm:$0xff]
    %v2566 = vld [vmem:[#allocation7 + $0x1f4] sm:$0xf]
    %v2567 = vld [vmem:[#allocation7 + $0x1f8] sm:$0xff]
    %v2568 = vld [vmem:[#allocation7 + $0x200] sm:$0xff]
    %v2569 = vld [vmem:[#allocation7 + $0x208] sm:$0xff]
    %v2570 = vld [vmem:[#allocation7 + $0x210] sm:$0xf]
    %v2571 = vld [vmem:[#allocation7 + $0x214] sm:$0xff]
    %v2572 = vld [vmem:[#allocation7 + $0x21c] sm:$0xff]
    %v2573 = vld [vmem:[#allocation7 + $0x224] sm:$0xff]
    %v2574 = vld [vmem:[#allocation7 + $0x22c] sm:$0xf]
    %v2575 = vld [vmem:[#allocation7 + $0x230] sm:$0xff]
    %v2576 = vld [vmem:[#allocation7 + $0x238] sm:$0xff]
    %v2577 = vld [vmem:[#allocation7 + $0x240] sm:$0xff]
    %v2578 = vld [vmem:[#allocation7 + $0x248] sm:$0xf]
    %v2579 = vld [vmem:[#allocation7 + $0x24c] sm:$0xff]
    %v2580 = vld [vmem:[#allocation7 + $0x254] sm:$0xff]
    %v2581 = vld [vmem:[#allocation7 + $0x25c] sm:$0xff]
    %v2582 = vld [vmem:[#allocation7 + $0x264] sm:$0xf]
    %v2583 = vld [vmem:[#allocation7 + $0x268] sm:$0xff]
    %v2584 = vld [vmem:[#allocation7 + $0x270] sm:$0xff]
    %v2585 = vld [vmem:[#allocation7 + $0x278] sm:$0xff]
    %v2586 = vld [vmem:[#allocation7 + $0x280] sm:$0xf]
    %v2587 = vld [vmem:[#allocation7 + $0x284] sm:$0xff]
    %v2588 = vld [vmem:[#allocation7 + $0x28c] sm:$0xff]
    %v2589 = vld [vmem:[#allocation7 + $0x294] sm:$0xff]
    %v2590 = vld [vmem:[#allocation7 + $0x29c] sm:$0xf]
    %v2591 = vld [vmem:[#allocation7 + $0x2a0] sm:$0xff]
    %v2592 = vld [vmem:[#allocation7 + $0x2a8] sm:$0xff]
    %v2593 = vld [vmem:[#allocation7 + $0x2b0] sm:$0xff]
    %v2594 = vld [vmem:[#allocation7 + $0x2b8] sm:$0xf]
    %v2595 = vld [vmem:[#allocation7 + $0x2bc] sm:$0xff]
    %v2596 = vld [vmem:[#allocation7 + $0x2c4] sm:$0xff]
    %v2597 = vld [vmem:[#allocation7 + $0x2cc] sm:$0xff]
    %v2598 = vld [vmem:[#allocation7 + $0x2d4] sm:$0xf]
    %v2599 = vld [vmem:[#allocation7 + $0x2d8] sm:$0xff]
    %v2600 = vld [vmem:[#allocation7 + $0x2e0] sm:$0xff]
    %v2601 = vld [vmem:[#allocation7 + $0x2e8] sm:$0xff]
    %v2602 = vld [vmem:[#allocation7 + $0x2f0] sm:$0xf]
    %v2603 = vld [vmem:[#allocation7 + $0x2f4] sm:$0xff]
    %v2604 = vld [vmem:[#allocation7 + $0x2fc] sm:$0xff]
    %v2605 = vld [vmem:[#allocation7 + $0x304] sm:$0xff]
    %v2606 = vld [vmem:[#allocation7 + $0x30c] sm:$0xf]
    %v2607 = vld [vmem:[#allocation7 + $0x310] sm:$0xff]
    %v2608 = vld [vmem:[#allocation7 + $0x318] sm:$0xff]
    %v2609 = vld [vmem:[#allocation7 + $0x320] sm:$0xff]
    %v2610 = vld [vmem:[#allocation7 + $0x328] sm:$0xf]
    %v2611 = vld [vmem:[#allocation7 + $0x32c] sm:$0xff]
    %v2612 = vld [vmem:[#allocation7 + $0x334] sm:$0xff]
    %v2613 = vld [vmem:[#allocation7 + $0x33c] sm:$0xff]
    %v2614 = vld [vmem:[#allocation7 + $0x344] sm:$0xf]
    %v2615 = vld [vmem:[#allocation7 + $0x348] sm:$0xff]
    %v2616 = vld [vmem:[#allocation7 + $0x350] sm:$0xff]
    %v2617 = vld [vmem:[#allocation7 + $0x358] sm:$0xff]
    %v2618 = vld [vmem:[#allocation7 + $0x360] sm:$0xf]
    %v2619 = vld [vmem:[#allocation7 + $0x364] sm:$0xff]
    %v2620 = vld [vmem:[#allocation7 + $0x36c] sm:$0xff]
    %v2621 = vld [vmem:[#allocation7 + $0x374] sm:$0xff]
    %v2622 = vld [vmem:[#allocation7 + $0x37c] sm:$0xf]
    %v2623 = vld [vmem:[#allocation7 + $0x380] sm:$0xff]
    %v2624 = vld [vmem:[#allocation7 + $0x388] sm:$0xff]
    %v2625 = vld [vmem:[#allocation7 + $0x390] sm:$0xff]
    %v2626 = vld [vmem:[#allocation7 + $0x398] sm:$0xf]
    %v2627 = vld [vmem:[#allocation7 + $0x39c] sm:$0xff]
    %v2628 = vld [vmem:[#allocation7 + $0x3a4] sm:$0xff]
    %v2629 = vld [vmem:[#allocation7 + $0x3ac] sm:$0xff]
    %v2630 = vld [vmem:[#allocation7 + $0x3b4] sm:$0xf]
    %v2631 = vld [vmem:[#allocation7 + $0x3b8] sm:$0xff]
    %v2632 = vld [vmem:[#allocation7 + $0x3c0] sm:$0xff]
    %v2633 = vld [vmem:[#allocation7 + $0x3c8] sm:$0xff]
    %v2634 = vld [vmem:[#allocation7 + $0x3d0] sm:$0xf]
    %v2635 = vld [vmem:[#allocation7 + $0x3d4] sm:$0xff]
    %v2636 = vld [vmem:[#allocation7 + $0x3dc] sm:$0xff]
    %v2637 = vld [vmem:[#allocation7 + $0x3e4] sm:$0xff]
    %v2638 = vld [vmem:[#allocation7 + $0x3ec] sm:$0xf]
    %v2639 = vld [vmem:[#allocation7 + $0x3f0] sm:$0xff]
    %v2640 = vld [vmem:[#allocation7 + $0x3f8] sm:$0xff]
    %v2641 = vld [vmem:[#allocation7 + $0x400] sm:$0xff]
    %v2642 = vld [vmem:[#allocation7 + $0x408] sm:$0xf]
    %v2643 = vld [vmem:[#allocation7 + $0x40c] sm:$0xff]
    %v2644 = vld [vmem:[#allocation7 + $0x414] sm:$0xff]
    %v2645 = vld [vmem:[#allocation7 + $0x41c] sm:$0xff]
    %v2646 = vld [vmem:[#allocation7 + $0x424] sm:$0xf]
    %v2647 = vld [vmem:[#allocation7 + $0x428] sm:$0xff]
    %v2648 = vld [vmem:[#allocation7 + $0x430] sm:$0xff]
    %v2649 = vld [vmem:[#allocation7 + $0x438] sm:$0xff]
    %v2650 = vld [vmem:[#allocation7 + $0x440] sm:$0xf]
    %v2651 = vld [vmem:[#allocation7 + $0x444] sm:$0xff]
    %v2652 = vld [vmem:[#allocation7 + $0x44c] sm:$0xff]
    %v2653 = vld [vmem:[#allocation7 + $0x454] sm:$0xff]
    %v2654 = vld [vmem:[#allocation7 + $0x45c] sm:$0xf]
    %v2655 = vld [vmem:[#allocation7 + $0x460] sm:$0xff]
    %v2656 = vld [vmem:[#allocation7 + $0x468] sm:$0xff]
    %v2657 = vld [vmem:[#allocation7 + $0x470] sm:$0xff]
    %v2658 = vld [vmem:[#allocation7 + $0x478] sm:$0xf]
    %v2659 = vld [vmem:[#allocation7 + $0x47c] sm:$0xff]
    %v2660 = vld [vmem:[#allocation7 + $0x484] sm:$0xff]
    %v2661 = vld [vmem:[#allocation7 + $0x48c] sm:$0xff]
    %v2662 = vld [vmem:[#allocation7 + $0x494] sm:$0xf]
    %v2663 = vld [vmem:[#allocation7 + $0x498] sm:$0xff]
    %v2664 = vld [vmem:[#allocation7 + $0x4a0] sm:$0xff]
    %v2665 = vld [vmem:[#allocation7 + $0x4a8] sm:$0xff]
    %v2666 = vld [vmem:[#allocation7 + $0x4b0] sm:$0xf]
    %v2667 = vld [vmem:[#allocation7 + $0x4b4] sm:$0xff]
    %v2668 = vld [vmem:[#allocation7 + $0x4bc] sm:$0xff]
    %v2669 = vld [vmem:[#allocation7 + $0x4c4] sm:$0xff]
    %v2670 = vld [vmem:[#allocation7 + $0x4cc] sm:$0xf]
    %v2671 = vld [vmem:[#allocation7 + $0x4d0] sm:$0xff]
    %v2672 = vld [vmem:[#allocation7 + $0x4d8] sm:$0xff]
    %v2673 = vld [vmem:[#allocation7 + $0x4e0] sm:$0xff]
    %v2674 = vld [vmem:[#allocation7 + $0x4e8] sm:$0xf]
    %v2675 = vld [vmem:[#allocation7 + $0x4ec] sm:$0xff]
    %v2676 = vld [vmem:[#allocation7 + $0x4f4] sm:$0xff]
    %v2677 = vld [vmem:[#allocation7 + $0x4fc] sm:$0xff]
    %v2678 = vld [vmem:[#allocation7 + $0x504] sm:$0xf]
    %v2679 = vld [vmem:[#allocation7 + $0x508] sm:$0xff]
    %v2680 = vld [vmem:[#allocation7 + $0x510] sm:$0xff]
    %v2681 = vld [vmem:[#allocation7 + $0x518] sm:$0xff]
    %v2682 = vld [vmem:[#allocation7 + $0x520] sm:$0xf]
    %v2683 = vld [vmem:[#allocation7 + $0x524] sm:$0xff]
    %v2684 = vld [vmem:[#allocation7 + $0x52c] sm:$0xff]
    %v2685 = vld [vmem:[#allocation7 + $0x534] sm:$0xff]
    %v2686 = vld [vmem:[#allocation7 + $0x53c] sm:$0xf]
    %v2687 = vld [vmem:[#allocation7 + $0x540] sm:$0xff]
    %v2688 = vld [vmem:[#allocation7 + $0x548] sm:$0xff]
    %v2689 = vld [vmem:[#allocation7 + $0x550] sm:$0xff]
    %v2690 = vld [vmem:[#allocation7 + $0x558] sm:$0xf]
    %v2691 = vld [vmem:[#allocation7 + $0x55c] sm:$0xff]
    %v2692 = vld [vmem:[#allocation7 + $0x564] sm:$0xff]
    %v2693 = vld [vmem:[#allocation7 + $0x56c] sm:$0xff]
    %v2694 = vld [vmem:[#allocation7 + $0x574] sm:$0xf]
    %v2695 = vld [vmem:[#allocation7 + $0x578] sm:$0xff]
    %v2696 = vld [vmem:[#allocation7 + $0x580] sm:$0xff]
    %v2697 = vld [vmem:[#allocation7 + $0x588] sm:$0xff]
    %v2698 = vld [vmem:[#allocation7 + $0x590] sm:$0xf]
    %v2699 = vld [vmem:[#allocation7 + $0x594] sm:$0xff]
    %v2700 = vld [vmem:[#allocation7 + $0x59c] sm:$0xff]
    %v2701 = vld [vmem:[#allocation7 + $0x5a4] sm:$0xff]
    %v2702 = vld [vmem:[#allocation7 + $0x5ac] sm:$0xf]
    %v2703 = vld [vmem:[#allocation7 + $0x5b0] sm:$0xff]
    %v2704 = vld [vmem:[#allocation7 + $0x5b8] sm:$0xff]
    %v2705 = vld [vmem:[#allocation7 + $0x5c0] sm:$0xff]
    %v2706 = vld [vmem:[#allocation7 + $0x5c8] sm:$0xf]
    %v2707 = vld [vmem:[#allocation7 + $0x5cc] sm:$0xff]
    %v2708 = vld [vmem:[#allocation7 + $0x5d4] sm:$0xff]
    %v2709 = vld [vmem:[#allocation7 + $0x5dc] sm:$0xff]
    %v2710 = vld [vmem:[#allocation7 + $0x5e4] sm:$0xf]
    %v2711 = vld [vmem:[#allocation7 + $0x5e8] sm:$0xff]
    %v2712 = vld [vmem:[#allocation7 + $0x5f0] sm:$0xff]
    %v2713 = vld [vmem:[#allocation7 + $0x5f8] sm:$0xff]
    %v2714 = vld [vmem:[#allocation7 + $0x600] sm:$0xf]
    %v2715 = vld [vmem:[#allocation7 + $0x604] sm:$0xff]
    %v2716 = vld [vmem:[#allocation7 + $0x60c] sm:$0xff]
    %v2717 = vld [vmem:[#allocation7 + $0x614] sm:$0xff]
    %v2718 = vld [vmem:[#allocation7 + $0x61c] sm:$0xf]
    %v2719 = vld [vmem:[#allocation7 + $0x620] sm:$0xff]
    %v2720 = vld [vmem:[#allocation7 + $0x628] sm:$0xff]
    %v2721 = vld [vmem:[#allocation7 + $0x630] sm:$0xff]
    %v2722 = vld [vmem:[#allocation7 + $0x638] sm:$0xf]
    %v2723 = vld [vmem:[#allocation7 + $0x63c] sm:$0xff]
    %v2724 = vld [vmem:[#allocation7 + $0x644] sm:$0xff]
    %v2725 = vld [vmem:[#allocation7 + $0x64c] sm:$0xff]
    %v2726 = vld [vmem:[#allocation7 + $0x654] sm:$0xf]
    %v2727 = vld [vmem:[#allocation7 + $0x658] sm:$0xff]
    %v2728 = vld [vmem:[#allocation7 + $0x660] sm:$0xff]
    %v2729 = vld [vmem:[#allocation7 + $0x668] sm:$0xff]
    %v2730 = vld [vmem:[#allocation7 + $0x670] sm:$0xf]
    %v2731 = vld [vmem:[#allocation7 + $0x674] sm:$0xff]
    %v2732 = vld [vmem:[#allocation7 + $0x67c] sm:$0xff]
    %v2733 = vld [vmem:[#allocation7 + $0x684] sm:$0xff]
    %v2734 = vld [vmem:[#allocation7 + $0x68c] sm:$0xf]
    %v2735 = vld [vmem:[#allocation7 + $0x690] sm:$0xff]
    %v2736 = vld [vmem:[#allocation7 + $0x698] sm:$0xff]
    %v2737 = vld [vmem:[#allocation7 + $0x6a0] sm:$0xff]
    %v2738 = vld [vmem:[#allocation7 + $0x6a8] sm:$0xf]
    %v2739 = vld [vmem:[#allocation7 + $0x6ac] sm:$0xff]
    %v2740 = vld [vmem:[#allocation7 + $0x6b4] sm:$0xff]
    %v2741 = vld [vmem:[#allocation7 + $0x6bc] sm:$0xff]
    %v2742 = vld [vmem:[#allocation7 + $0x6c4] sm:$0xf]
    %v2743 = vld [vmem:[#allocation7 + $0x6c8] sm:$0xff]
    %v2744 = vld [vmem:[#allocation7 + $0x6d0] sm:$0xff]
    %v2745 = vld [vmem:[#allocation7 + $0x6d8] sm:$0xff]
    %v2746 = vld [vmem:[#allocation7 + $0x6e0] sm:$0xf]
    %v2747 = vld [vmem:[#allocation7 + $0x6e4] sm:$0xff]
    %v2748 = vld [vmem:[#allocation7 + $0x6ec] sm:$0xff]
    %v2749 = vld [vmem:[#allocation7 + $0x6f4] sm:$0xff]
    %v2750 = vld [vmem:[#allocation7 + $0x6fc] sm:$0xf]
    %v2751 = vld [vmem:[%s8] sm:$0xff]
    %v2753 = vlaneseq
    %v2754 = vshrl.u32 %v2753, 7
    %v2755 = vsub.s32 0, %v2754
    %v2756 = vrot.slane %v2751, %v2755
    %v2757 = vlaneseq
    %v2758 = vshrl.u32 %v2757, 7
    %v2759 = vsub.s32 1, %v2758
    %v2760 = vrot.slane %v2751, %v2759
    %v2761 = vlaneseq
    %v2762 = vshrl.u32 %v2761, 7
    %v2763 = vsub.s32 2, %v2762
    %v2764 = vrot.slane %v2751, %v2763
    %v2765 = vlaneseq
    %v2766 = vshrl.u32 %v2765, 7
    %v2767 = vsub.s32 3, %v2766
    %v2768 = vrot.slane %v2751, %v2767
    %v2769 = vlaneseq
    %v2770 = vshrl.u32 %v2769, 7
    %v2771 = vsub.s32 4, %v2770
    %v2772 = vrot.slane %v2751, %v2771
    %v2773 = vlaneseq
    %v2774 = vshrl.u32 %v2773, 7
    %v2775 = vsub.s32 5, %v2774
    %v2776 = vrot.slane %v2751, %v2775
    %v2777 = vlaneseq
    %v2778 = vshrl.u32 %v2777, 7
    %v2779 = vsub.s32 6, %v2778
    %v2780 = vrot.slane %v2751, %v2779
    %v3044 = vunpack.c.l.b16 %v2495
    %v3045 = vunpack.c.h.b16 %v2495
    %v3046 = vunpack.c.l.b16 %v2496
    %v3047 = vunpack.c.h.b16 %v2496
    %v3048 = vunpack.c.l.b16 %v2497
    %v3049 = vunpack.c.h.b16 %v2497
    %v3050 = vunpack.c.l.b16 %v2498
    %v3051 = vunpack.c.l.b16 %v2499
    %v3052 = vunpack.c.h.b16 %v2499
    %v3053 = vunpack.c.l.b16 %v2500
    %v3054 = vunpack.c.h.b16 %v2500
    %v3055 = vunpack.c.l.b16 %v2501
    %v3056 = vunpack.c.h.b16 %v2501
    %v3057 = vunpack.c.l.b16 %v2502
    %v3058 = vunpack.c.l.b16 %v2503
    %v3059 = vunpack.c.h.b16 %v2503
    %v3060 = vunpack.c.l.b16 %v2504
    %v3061 = vunpack.c.h.b16 %v2504
    %v3062 = vunpack.c.l.b16 %v2505
    %v3063 = vunpack.c.h.b16 %v2505
    %v3064 = vunpack.c.l.b16 %v2506
    %v3065 = vunpack.c.l.b16 %v2507
    %v3066 = vunpack.c.h.b16 %v2507
    %v3067 = vunpack.c.l.b16 %v2508
    %v3068 = vunpack.c.h.b16 %v2508
    %v3069 = vunpack.c.l.b16 %v2509
    %v3070 = vunpack.c.h.b16 %v2509
    %v3071 = vunpack.c.l.b16 %v2510
    %v3072 = vunpack.c.l.b16 %v2511
    %v3073 = vunpack.c.h.b16 %v2511
    %v3074 = vunpack.c.l.b16 %v2512
    %v3075 = vunpack.c.h.b16 %v2512
    %v3076 = vunpack.c.l.b16 %v2513
    %v3077 = vunpack.c.h.b16 %v2513
    %v3078 = vunpack.c.l.b16 %v2514
    %v3079 = vunpack.c.l.b16 %v2515
    %v3080 = vunpack.c.h.b16 %v2515
    %v3081 = vunpack.c.l.b16 %v2516
    %v3082 = vunpack.c.h.b16 %v2516
    %v3083 = vunpack.c.l.b16 %v2517
    %v3084 = vunpack.c.h.b16 %v2517
    %v3085 = vunpack.c.l.b16 %v2518
    %v3086 = vunpack.c.l.b16 %v2519
    %v3087 = vunpack.c.h.b16 %v2519
    %v3088 = vunpack.c.l.b16 %v2520
    %v3089 = vunpack.c.h.b16 %v2520
    %v3090 = vunpack.c.l.b16 %v2521
    %v3091 = vunpack.c.h.b16 %v2521
    %v3092 = vunpack.c.l.b16 %v2522
    %v3093 = vunpack.c.l.b16 %v2523
    %v3094 = vunpack.c.h.b16 %v2523
    %v3095 = vunpack.c.l.b16 %v2524
    %v3096 = vunpack.c.h.b16 %v2524
    %v3097 = vunpack.c.l.b16 %v2525
    %v3098 = vunpack.c.h.b16 %v2525
    %v3099 = vunpack.c.l.b16 %v2526
    %v3100 = vunpack.c.l.b16 %v2527
    %v3101 = vunpack.c.h.b16 %v2527
    %v3102 = vunpack.c.l.b16 %v2528
    %v3103 = vunpack.c.h.b16 %v2528
    %v3104 = vunpack.c.l.b16 %v2529
    %v3105 = vunpack.c.h.b16 %v2529
    %v3106 = vunpack.c.l.b16 %v2530
    %v3107 = vunpack.c.l.b16 %v2531
    %v3108 = vunpack.c.h.b16 %v2531
    %v3109 = vunpack.c.l.b16 %v2532
    %v3110 = vunpack.c.h.b16 %v2532
    %v3111 = vunpack.c.l.b16 %v2533
    %v3112 = vunpack.c.h.b16 %v2533
    %v3113 = vunpack.c.l.b16 %v2534
    %v3114 = vunpack.c.l.b16 %v2535
    %v3115 = vunpack.c.h.b16 %v2535
    %v3116 = vunpack.c.l.b16 %v2536
    %v3117 = vunpack.c.h.b16 %v2536
    %v3118 = vunpack.c.l.b16 %v2537
    %v3119 = vunpack.c.h.b16 %v2537
    %v3120 = vunpack.c.l.b16 %v2538
    %v3121 = vunpack.c.l.b16 %v2539
    %v3122 = vunpack.c.h.b16 %v2539
    %v3123 = vunpack.c.l.b16 %v2540
    %v3124 = vunpack.c.h.b16 %v2540
    %v3125 = vunpack.c.l.b16 %v2541
    %v3126 = vunpack.c.h.b16 %v2541
    %v3127 = vunpack.c.l.b16 %v2542
    %v3128 = vunpack.c.l.b16 %v2543
    %v3129 = vunpack.c.h.b16 %v2543
    %v3130 = vunpack.c.l.b16 %v2544
    %v3131 = vunpack.c.h.b16 %v2544
    %v3132 = vunpack.c.l.b16 %v2545
    %v3133 = vunpack.c.h.b16 %v2545
    %v3134 = vunpack.c.l.b16 %v2546
    %v3135 = vunpack.c.l.b16 %v2547
    %v3136 = vunpack.c.h.b16 %v2547
    %v3137 = vunpack.c.l.b16 %v2548
    %v3138 = vunpack.c.h.b16 %v2548
    %v3139 = vunpack.c.l.b16 %v2549
    %v3140 = vunpack.c.h.b16 %v2549
    %v3141 = vunpack.c.l.b16 %v2550
    %v3142 = vunpack.c.l.b16 %v2551
    %v3143 = vunpack.c.h.b16 %v2551
    %v3144 = vunpack.c.l.b16 %v2552
    %v3145 = vunpack.c.h.b16 %v2552
    %v3146 = vunpack.c.l.b16 %v2553
    %v3147 = vunpack.c.h.b16 %v2553
    %v3148 = vunpack.c.l.b16 %v2554
    %v3149 = vunpack.c.l.b16 %v2555
    %v3150 = vunpack.c.h.b16 %v2555
    %v3151 = vunpack.c.l.b16 %v2556
    %v3152 = vunpack.c.h.b16 %v2556
    %v3153 = vunpack.c.l.b16 %v2557
    %v3154 = vunpack.c.h.b16 %v2557
    %v3155 = vunpack.c.l.b16 %v2558
    %v3156 = vunpack.c.l.b16 %v2559
    %v3157 = vunpack.c.h.b16 %v2559
    %v3158 = vunpack.c.l.b16 %v2560
    %v3159 = vunpack.c.h.b16 %v2560
    %v3160 = vunpack.c.l.b16 %v2561
    %v3161 = vunpack.c.h.b16 %v2561
    %v3162 = vunpack.c.l.b16 %v2562
    %v3163 = vunpack.c.l.b16 %v2563
    %v3164 = vunpack.c.h.b16 %v2563
    %v3165 = vunpack.c.l.b16 %v2564
    %v3166 = vunpack.c.h.b16 %v2564
    %v3167 = vunpack.c.l.b16 %v2565
    %v3168 = vunpack.c.h.b16 %v2565
    %v3169 = vunpack.c.l.b16 %v2566
    %v3170 = vunpack.c.l.b16 %v2567
    %v3171 = vunpack.c.h.b16 %v2567
    %v3172 = vunpack.c.l.b16 %v2568
    %v3173 = vunpack.c.h.b16 %v2568
    %v3174 = vunpack.c.l.b16 %v2569
    %v3175 = vunpack.c.h.b16 %v2569
    %v3176 = vunpack.c.l.b16 %v2570
    %v3177 = vunpack.c.l.b16 %v2571
    %v3178 = vunpack.c.h.b16 %v2571
    %v3179 = vunpack.c.l.b16 %v2572
    %v3180 = vunpack.c.h.b16 %v2572
    %v3181 = vunpack.c.l.b16 %v2573
    %v3182 = vunpack.c.h.b16 %v2573
    %v3183 = vunpack.c.l.b16 %v2574
    %v3184 = vunpack.c.l.b16 %v2575
    %v3185 = vunpack.c.h.b16 %v2575
    %v3186 = vunpack.c.l.b16 %v2576
    %v3187 = vunpack.c.h.b16 %v2576
    %v3188 = vunpack.c.l.b16 %v2577
    %v3189 = vunpack.c.h.b16 %v2577
    %v3190 = vunpack.c.l.b16 %v2578
    %v3191 = vunpack.c.l.b16 %v2579
    %v3192 = vunpack.c.h.b16 %v2579
    %v3193 = vunpack.c.l.b16 %v2580
    %v3194 = vunpack.c.h.b16 %v2580
    %v3195 = vunpack.c.l.b16 %v2581
    %v3196 = vunpack.c.h.b16 %v2581
    %v3197 = vunpack.c.l.b16 %v2582
    %v3198 = vunpack.c.l.b16 %v2583
    %v3199 = vunpack.c.h.b16 %v2583
    %v3200 = vunpack.c.l.b16 %v2584
    %v3201 = vunpack.c.h.b16 %v2584
    %v3202 = vunpack.c.l.b16 %v2585
    %v3203 = vunpack.c.h.b16 %v2585
    %v3204 = vunpack.c.l.b16 %v2586
    %v3205 = vunpack.c.l.b16 %v2587
    %v3206 = vunpack.c.h.b16 %v2587
    %v3207 = vunpack.c.l.b16 %v2588
    %v3208 = vunpack.c.h.b16 %v2588
    %v3209 = vunpack.c.l.b16 %v2589
    %v3210 = vunpack.c.h.b16 %v2589
    %v3211 = vunpack.c.l.b16 %v2590
    %v3212 = vunpack.c.l.b16 %v2591
    %v3213 = vunpack.c.h.b16 %v2591
    %v3214 = vunpack.c.l.b16 %v2592
    %v3215 = vunpack.c.h.b16 %v2592
    %v3216 = vunpack.c.l.b16 %v2593
    %v3217 = vunpack.c.h.b16 %v2593
    %v3218 = vunpack.c.l.b16 %v2594
    %v3219 = vunpack.c.l.b16 %v2595
    %v3220 = vunpack.c.h.b16 %v2595
    %v3221 = vunpack.c.l.b16 %v2596
    %v3222 = vunpack.c.h.b16 %v2596
    %v3223 = vunpack.c.l.b16 %v2597
    %v3224 = vunpack.c.h.b16 %v2597
    %v3225 = vunpack.c.l.b16 %v2598
    %v3226 = vunpack.c.l.b16 %v2599
    %v3227 = vunpack.c.h.b16 %v2599
    %v3228 = vunpack.c.l.b16 %v2600
    %v3229 = vunpack.c.h.b16 %v2600
    %v3230 = vunpack.c.l.b16 %v2601
    %v3231 = vunpack.c.h.b16 %v2601
    %v3232 = vunpack.c.l.b16 %v2602
    %v3233 = vunpack.c.l.b16 %v2603
    %v3234 = vunpack.c.h.b16 %v2603
    %v3235 = vunpack.c.l.b16 %v2604
    %v3236 = vunpack.c.h.b16 %v2604
    %v3237 = vunpack.c.l.b16 %v2605
    %v3238 = vunpack.c.h.b16 %v2605
    %v3239 = vunpack.c.l.b16 %v2606
    %v3240 = vunpack.c.l.b16 %v2607
    %v3241 = vunpack.c.h.b16 %v2607
    %v3242 = vunpack.c.l.b16 %v2608
    %v3243 = vunpack.c.h.b16 %v2608
    %v3244 = vunpack.c.l.b16 %v2609
    %v3245 = vunpack.c.h.b16 %v2609
    %v3246 = vunpack.c.l.b16 %v2610
    %v3247 = vunpack.c.l.b16 %v2611
    %v3248 = vunpack.c.h.b16 %v2611
    %v3249 = vunpack.c.l.b16 %v2612
    %v3250 = vunpack.c.h.b16 %v2612
    %v3251 = vunpack.c.l.b16 %v2613
    %v3252 = vunpack.c.h.b16 %v2613
    %v3253 = vunpack.c.l.b16 %v2614
    %v3254 = vunpack.c.l.b16 %v2615
    %v3255 = vunpack.c.h.b16 %v2615
    %v3256 = vunpack.c.l.b16 %v2616
    %v3257 = vunpack.c.h.b16 %v2616
    %v3258 = vunpack.c.l.b16 %v2617
    %v3259 = vunpack.c.h.b16 %v2617
    %v3260 = vunpack.c.l.b16 %v2618
    %v3261 = vunpack.c.l.b16 %v2619
    %v3262 = vunpack.c.h.b16 %v2619
    %v3263 = vunpack.c.l.b16 %v2620
    %v3264 = vunpack.c.h.b16 %v2620
    %v3265 = vunpack.c.l.b16 %v2621
    %v3266 = vunpack.c.h.b16 %v2621
    %v3267 = vunpack.c.l.b16 %v2622
    %v3268 = vunpack.c.l.b16 %v2623
    %v3269 = vunpack.c.h.b16 %v2623
    %v3270 = vunpack.c.l.b16 %v2624
    %v3271 = vunpack.c.h.b16 %v2624
    %v3272 = vunpack.c.l.b16 %v2625
    %v3273 = vunpack.c.h.b16 %v2625
    %v3274 = vunpack.c.l.b16 %v2626
    %v3275 = vunpack.c.l.b16 %v2627
    %v3276 = vunpack.c.h.b16 %v2627
    %v3277 = vunpack.c.l.b16 %v2628
    %v3278 = vunpack.c.h.b16 %v2628
    %v3279 = vunpack.c.l.b16 %v2629
    %v3280 = vunpack.c.h.b16 %v2629
    %v3281 = vunpack.c.l.b16 %v2630
    %v3282 = vunpack.c.l.b16 %v2631
    %v3283 = vunpack.c.h.b16 %v2631
    %v3284 = vunpack.c.l.b16 %v2632
    %v3285 = vunpack.c.h.b16 %v2632
    %v3286 = vunpack.c.l.b16 %v2633
    %v3287 = vunpack.c.h.b16 %v2633
    %v3288 = vunpack.c.l.b16 %v2634
    %v3289 = vunpack.c.l.b16 %v2635
    %v3290 = vunpack.c.h.b16 %v2635
    %v3291 = vunpack.c.l.b16 %v2636
    %v3292 = vunpack.c.h.b16 %v2636
    %v3293 = vunpack.c.l.b16 %v2637
    %v3294 = vunpack.c.h.b16 %v2637
    %v3295 = vunpack.c.l.b16 %v2638
    %v3296 = vunpack.c.l.b16 %v2639
    %v3297 = vunpack.c.h.b16 %v2639
    %v3298 = vunpack.c.l.b16 %v2640
    %v3299 = vunpack.c.h.b16 %v2640
    %v3300 = vunpack.c.l.b16 %v2641
    %v3301 = vunpack.c.h.b16 %v2641
    %v3302 = vunpack.c.l.b16 %v2642
    %v3303 = vunpack.c.l.b16 %v2643
    %v3304 = vunpack.c.h.b16 %v2643
    %v3305 = vunpack.c.l.b16 %v2644
    %v3306 = vunpack.c.h.b16 %v2644
    %v3307 = vunpack.c.l.b16 %v2645
    %v3308 = vunpack.c.h.b16 %v2645
    %v3309 = vunpack.c.l.b16 %v2646
    %v3310 = vunpack.c.l.b16 %v2647
    %v3311 = vunpack.c.h.b16 %v2647
    %v3312 = vunpack.c.l.b16 %v2648
    %v3313 = vunpack.c.h.b16 %v2648
    %v3314 = vunpack.c.l.b16 %v2649
    %v3315 = vunpack.c.h.b16 %v2649
    %v3316 = vunpack.c.l.b16 %v2650
    %v3317 = vunpack.c.l.b16 %v2651
    %v3318 = vunpack.c.h.b16 %v2651
    %v3319 = vunpack.c.l.b16 %v2652
    %v3320 = vunpack.c.h.b16 %v2652
    %v3321 = vunpack.c.l.b16 %v2653
    %v3322 = vunpack.c.h.b16 %v2653
    %v3323 = vunpack.c.l.b16 %v2654
    %v3324 = vunpack.c.l.b16 %v2655
    %v3325 = vunpack.c.h.b16 %v2655
    %v3326 = vunpack.c.l.b16 %v2656
    %v3327 = vunpack.c.h.b16 %v2656
    %v3328 = vunpack.c.l.b16 %v2657
    %v3329 = vunpack.c.h.b16 %v2657
    %v3330 = vunpack.c.l.b16 %v2658
    %v3331 = vunpack.c.l.b16 %v2659
    %v3332 = vunpack.c.h.b16 %v2659
    %v3333 = vunpack.c.l.b16 %v2660
    %v3334 = vunpack.c.h.b16 %v2660
    %v3335 = vunpack.c.l.b16 %v2661
    %v3336 = vunpack.c.h.b16 %v2661
    %v3337 = vunpack.c.l.b16 %v2662
    %v3338 = vunpack.c.l.b16 %v2663
    %v3339 = vunpack.c.h.b16 %v2663
    %v3340 = vunpack.c.l.b16 %v2664
    %v3341 = vunpack.c.h.b16 %v2664
    %v3342 = vunpack.c.l.b16 %v2665
    %v3343 = vunpack.c.h.b16 %v2665
    %v3344 = vunpack.c.l.b16 %v2666
    %v3345 = vunpack.c.l.b16 %v2667
    %v3346 = vunpack.c.h.b16 %v2667
    %v3347 = vunpack.c.l.b16 %v2668
    %v3348 = vunpack.c.h.b16 %v2668
    %v3349 = vunpack.c.l.b16 %v2669
    %v3350 = vunpack.c.h.b16 %v2669
    %v3351 = vunpack.c.l.b16 %v2670
    %v3352 = vunpack.c.l.b16 %v2671
    %v3353 = vunpack.c.h.b16 %v2671
    %v3354 = vunpack.c.l.b16 %v2672
    %v3355 = vunpack.c.h.b16 %v2672
    %v3356 = vunpack.c.l.b16 %v2673
    %v3357 = vunpack.c.h.b16 %v2673
    %v3358 = vunpack.c.l.b16 %v2674
    %v3359 = vunpack.c.l.b16 %v2675
    %v3360 = vunpack.c.h.b16 %v2675
    %v3361 = vunpack.c.l.b16 %v2676
    %v3362 = vunpack.c.h.b16 %v2676
    %v3363 = vunpack.c.l.b16 %v2677
    %v3364 = vunpack.c.h.b16 %v2677
    %v3365 = vunpack.c.l.b16 %v2678
    %v3366 = vunpack.c.l.b16 %v2679
    %v3367 = vunpack.c.h.b16 %v2679
    %v3368 = vunpack.c.l.b16 %v2680
    %v3369 = vunpack.c.h.b16 %v2680
    %v3370 = vunpack.c.l.b16 %v2681
    %v3371 = vunpack.c.h.b16 %v2681
    %v3372 = vunpack.c.l.b16 %v2682
    %v3373 = vunpack.c.l.b16 %v2683
    %v3374 = vunpack.c.h.b16 %v2683
    %v3375 = vunpack.c.l.b16 %v2684
    %v3376 = vunpack.c.h.b16 %v2684
    %v3377 = vunpack.c.l.b16 %v2685
    %v3378 = vunpack.c.h.b16 %v2685
    %v3379 = vunpack.c.l.b16 %v2686
    %v3380 = vunpack.c.l.b16 %v2687
    %v3381 = vunpack.c.h.b16 %v2687
    %v3382 = vunpack.c.l.b16 %v2688
    %v3383 = vunpack.c.h.b16 %v2688
    %v3384 = vunpack.c.l.b16 %v2689
    %v3385 = vunpack.c.h.b16 %v2689
    %v3386 = vunpack.c.l.b16 %v2690
    %v3387 = vunpack.c.l.b16 %v2691
    %v3388 = vunpack.c.h.b16 %v2691
    %v3389 = vunpack.c.l.b16 %v2692
    %v3390 = vunpack.c.h.b16 %v2692
    %v3391 = vunpack.c.l.b16 %v2693
    %v3392 = vunpack.c.h.b16 %v2693
    %v3393 = vunpack.c.l.b16 %v2694
    %v3394 = vunpack.c.l.b16 %v2695
    %v3395 = vunpack.c.h.b16 %v2695
    %v3396 = vunpack.c.l.b16 %v2696
    %v3397 = vunpack.c.h.b16 %v2696
    %v3398 = vunpack.c.l.b16 %v2697
    %v3399 = vunpack.c.h.b16 %v2697
    %v3400 = vunpack.c.l.b16 %v2698
    %v3401 = vunpack.c.l.b16 %v2699
    %v3402 = vunpack.c.h.b16 %v2699
    %v3403 = vunpack.c.l.b16 %v2700
    %v3404 = vunpack.c.h.b16 %v2700
    %v3405 = vunpack.c.l.b16 %v2701
    %v3406 = vunpack.c.h.b16 %v2701
    %v3407 = vunpack.c.l.b16 %v2702
    %v3408 = vunpack.c.l.b16 %v2703
    %v3409 = vunpack.c.h.b16 %v2703
    %v3410 = vunpack.c.l.b16 %v2704
    %v3411 = vunpack.c.h.b16 %v2704
    %v3412 = vunpack.c.l.b16 %v2705
    %v3413 = vunpack.c.h.b16 %v2705
    %v3414 = vunpack.c.l.b16 %v2706
    %v3415 = vunpack.c.l.b16 %v2707
    %v3416 = vunpack.c.h.b16 %v2707
    %v3417 = vunpack.c.l.b16 %v2708
    %v3418 = vunpack.c.h.b16 %v2708
    %v3419 = vunpack.c.l.b16 %v2709
    %v3420 = vunpack.c.h.b16 %v2709
    %v3421 = vunpack.c.l.b16 %v2710
    %v3422 = vunpack.c.l.b16 %v2711
    %v3423 = vunpack.c.h.b16 %v2711
    %v3424 = vunpack.c.l.b16 %v2712
    %v3425 = vunpack.c.h.b16 %v2712
    %v3426 = vunpack.c.l.b16 %v2713
    %v3427 = vunpack.c.h.b16 %v2713
    %v3428 = vunpack.c.l.b16 %v2714
    %v3429 = vunpack.c.l.b16 %v2715
    %v3430 = vunpack.c.h.b16 %v2715
    %v3431 = vunpack.c.l.b16 %v2716
    %v3432 = vunpack.c.h.b16 %v2716
    %v3433 = vunpack.c.l.b16 %v2717
    %v3434 = vunpack.c.h.b16 %v2717
    %v3435 = vunpack.c.l.b16 %v2718
    %v3436 = vunpack.c.l.b16 %v2719
    %v3437 = vunpack.c.h.b16 %v2719
    %v3438 = vunpack.c.l.b16 %v2720
    %v3439 = vunpack.c.h.b16 %v2720
    %v3440 = vunpack.c.l.b16 %v2721
    %v3441 = vunpack.c.h.b16 %v2721
    %v3442 = vunpack.c.l.b16 %v2722
    %v3443 = vunpack.c.l.b16 %v2723
    %v3444 = vunpack.c.h.b16 %v2723
    %v3445 = vunpack.c.l.b16 %v2724
    %v3446 = vunpack.c.h.b16 %v2724
    %v3447 = vunpack.c.l.b16 %v2725
    %v3448 = vunpack.c.h.b16 %v2725
    %v3449 = vunpack.c.l.b16 %v2726
    %v3450 = vunpack.c.l.b16 %v2727
    %v3451 = vunpack.c.h.b16 %v2727
    %v3452 = vunpack.c.l.b16 %v2728
    %v3453 = vunpack.c.h.b16 %v2728
    %v3454 = vunpack.c.l.b16 %v2729
    %v3455 = vunpack.c.h.b16 %v2729
    %v3456 = vunpack.c.l.b16 %v2730
    %v3457 = vunpack.c.l.b16 %v2731
    %v3458 = vunpack.c.h.b16 %v2731
    %v3459 = vunpack.c.l.b16 %v2732
    %v3460 = vunpack.c.h.b16 %v2732
    %v3461 = vunpack.c.l.b16 %v2733
    %v3462 = vunpack.c.h.b16 %v2733
    %v3463 = vunpack.c.l.b16 %v2734
    %v3464 = vunpack.c.l.b16 %v2735
    %v3465 = vunpack.c.h.b16 %v2735
    %v3466 = vunpack.c.l.b16 %v2736
    %v3467 = vunpack.c.h.b16 %v2736
    %v3468 = vunpack.c.l.b16 %v2737
    %v3469 = vunpack.c.h.b16 %v2737
    %v3470 = vunpack.c.l.b16 %v2738
    %v3471 = vunpack.c.l.b16 %v2739
    %v3472 = vunpack.c.h.b16 %v2739
    %v3473 = vunpack.c.l.b16 %v2740
    %v3474 = vunpack.c.h.b16 %v2740
    %v3475 = vunpack.c.l.b16 %v2741
    %v3476 = vunpack.c.h.b16 %v2741
    %v3477 = vunpack.c.l.b16 %v2742
    %v3478 = vunpack.c.l.b16 %v2743
    %v3479 = vunpack.c.h.b16 %v2743
    %v3480 = vunpack.c.l.b16 %v2744
    %v3481 = vunpack.c.h.b16 %v2744
    %v3482 = vunpack.c.l.b16 %v2745
    %v3483 = vunpack.c.h.b16 %v2745
    %v3484 = vunpack.c.l.b16 %v2746
    %v3485 = vunpack.c.l.b16 %v2747
    %v3486 = vunpack.c.h.b16 %v2747
    %v3487 = vunpack.c.l.b16 %v2748
    %v3488 = vunpack.c.h.b16 %v2748
    %v3489 = vunpack.c.l.b16 %v2749
    %v3490 = vunpack.c.h.b16 %v2749
    %v3491 = vunpack.c.l.b16 %v2750
    %v3492 = vpack.c.b16 %v3051, %v3044
    %v3493 = vpack.c.b16 %v3052, %v3045
    %v3494 = vpack.c.b16 %v3053, %v3046
    %v3495 = vpack.c.b16 %v3054, %v3047
    %v3496 = vpack.c.b16 %v3055, %v3048
    %v3497 = vpack.c.b16 %v3056, %v3049
    %v3498 = vpack.c.b16 %v3057, %v3050
    %v3499 = vpack.c.b16 %v3065, %v3058
    %v3500 = vpack.c.b16 %v3066, %v3059
    %v3501 = vpack.c.b16 %v3067, %v3060
    %v3502 = vpack.c.b16 %v3068, %v3061
    %v3503 = vpack.c.b16 %v3069, %v3062
    %v3504 = vpack.c.b16 %v3070, %v3063
    %v3505 = vpack.c.b16 %v3071, %v3064
    %v3506 = vpack.c.b16 %v3079, %v3072
    %v3507 = vpack.c.b16 %v3080, %v3073
    %v3508 = vpack.c.b16 %v3081, %v3074
    %v3509 = vpack.c.b16 %v3082, %v3075
    %v3510 = vpack.c.b16 %v3083, %v3076
    %v3511 = vpack.c.b16 %v3084, %v3077
    %v3512 = vpack.c.b16 %v3085, %v3078
    %v3513 = vpack.c.b16 %v3093, %v3086
    %v3514 = vpack.c.b16 %v3094, %v3087
    %v3515 = vpack.c.b16 %v3095, %v3088
    %v3516 = vpack.c.b16 %v3096, %v3089
    %v3517 = vpack.c.b16 %v3097, %v3090
    %v3518 = vpack.c.b16 %v3098, %v3091
    %v3519 = vpack.c.b16 %v3099, %v3092
    %v3520 = vpack.c.b16 %v3107, %v3100
    %v3521 = vpack.c.b16 %v3108, %v3101
    %v3522 = vpack.c.b16 %v3109, %v3102
    %v3523 = vpack.c.b16 %v3110, %v3103
    %v3524 = vpack.c.b16 %v3111, %v3104
    %v3525 = vpack.c.b16 %v3112, %v3105
    %v3526 = vpack.c.b16 %v3113, %v3106
    %v3527 = vpack.c.b16 %v3121, %v3114
    %v3528 = vpack.c.b16 %v3122, %v3115
    %v3529 = vpack.c.b16 %v3123, %v3116
    %v3530 = vpack.c.b16 %v3124, %v3117
    %v3531 = vpack.c.b16 %v3125, %v3118
    %v3532 = vpack.c.b16 %v3126, %v3119
    %v3533 = vpack.c.b16 %v3127, %v3120
    %v3534 = vpack.c.b16 %v3135, %v3128
    %v3535 = vpack.c.b16 %v3136, %v3129
    %v3536 = vpack.c.b16 %v3137, %v3130
    %v3537 = vpack.c.b16 %v3138, %v3131
    %v3538 = vpack.c.b16 %v3139, %v3132
    %v3539 = vpack.c.b16 %v3140, %v3133
    %v3540 = vpack.c.b16 %v3141, %v3134
    %v3541 = vpack.c.b16 %v3149, %v3142
    %v3542 = vpack.c.b16 %v3150, %v3143
    %v3543 = vpack.c.b16 %v3151, %v3144
    %v3544 = vpack.c.b16 %v3152, %v3145
    %v3545 = vpack.c.b16 %v3153, %v3146
    %v3546 = vpack.c.b16 %v3154, %v3147
    %v3547 = vpack.c.b16 %v3155, %v3148
    %v3548 = vpack.c.b16 %v3163, %v3156
    %v3549 = vpack.c.b16 %v3164, %v3157
    %v3550 = vpack.c.b16 %v3165, %v3158
    %v3551 = vpack.c.b16 %v3166, %v3159
    %v3552 = vpack.c.b16 %v3167, %v3160
    %v3553 = vpack.c.b16 %v3168, %v3161
    %v3554 = vpack.c.b16 %v3169, %v3162
    %v3555 = vpack.c.b16 %v3177, %v3170
    %v3556 = vpack.c.b16 %v3178, %v3171
    %v3557 = vpack.c.b16 %v3179, %v3172
    %v3558 = vpack.c.b16 %v3180, %v3173
    %v3559 = vpack.c.b16 %v3181, %v3174
    %v3560 = vpack.c.b16 %v3182, %v3175
    %v3561 = vpack.c.b16 %v3183, %v3176
    %v3562 = vpack.c.b16 %v3191, %v3184
    %v3563 = vpack.c.b16 %v3192, %v3185
    %v3564 = vpack.c.b16 %v3193, %v3186
    %v3565 = vpack.c.b16 %v3194, %v3187
    %v3566 = vpack.c.b16 %v3195, %v3188
    %v3567 = vpack.c.b16 %v3196, %v3189
    %v3568 = vpack.c.b16 %v3197, %v3190
    %v3569 = vpack.c.b16 %v3205, %v3198
    %v3570 = vpack.c.b16 %v3206, %v3199
    %v3571 = vpack.c.b16 %v3207, %v3200
    %v3572 = vpack.c.b16 %v3208, %v3201
    %v3573 = vpack.c.b16 %v3209, %v3202
    %v3574 = vpack.c.b16 %v3210, %v3203
    %v3575 = vpack.c.b16 %v3211, %v3204
    %v3576 = vpack.c.b16 %v3219, %v3212
    %v3577 = vpack.c.b16 %v3220, %v3213
    %v3578 = vpack.c.b16 %v3221, %v3214
    %v3579 = vpack.c.b16 %v3222, %v3215
    %v3580 = vpack.c.b16 %v3223, %v3216
    %v3581 = vpack.c.b16 %v3224, %v3217
    %v3582 = vpack.c.b16 %v3225, %v3218
    %v3583 = vpack.c.b16 %v3233, %v3226
    %v3584 = vpack.c.b16 %v3234, %v3227
    %v3585 = vpack.c.b16 %v3235, %v3228
    %v3586 = vpack.c.b16 %v3236, %v3229
    %v3587 = vpack.c.b16 %v3237, %v3230
    %v3588 = vpack.c.b16 %v3238, %v3231
    %v3589 = vpack.c.b16 %v3239, %v3232
    %v3590 = vpack.c.b16 %v3247, %v3240
    %v3591 = vpack.c.b16 %v3248, %v3241
    %v3592 = vpack.c.b16 %v3249, %v3242
    %v3593 = vpack.c.b16 %v3250, %v3243
    %v3594 = vpack.c.b16 %v3251, %v3244
    %v3595 = vpack.c.b16 %v3252, %v3245
    %v3596 = vpack.c.b16 %v3253, %v3246
    %v3597 = vpack.c.b16 %v3261, %v3254
    %v3598 = vpack.c.b16 %v3262, %v3255
    %v3599 = vpack.c.b16 %v3263, %v3256
    %v3600 = vpack.c.b16 %v3264, %v3257
    %v3601 = vpack.c.b16 %v3265, %v3258
    %v3602 = vpack.c.b16 %v3266, %v3259
    %v3603 = vpack.c.b16 %v3267, %v3260
    %v3604 = vpack.c.b16 %v3275, %v3268
    %v3605 = vpack.c.b16 %v3276, %v3269
    %v3606 = vpack.c.b16 %v3277, %v3270
    %v3607 = vpack.c.b16 %v3278, %v3271
    %v3608 = vpack.c.b16 %v3279, %v3272
    %v3609 = vpack.c.b16 %v3280, %v3273
    %v3610 = vpack.c.b16 %v3281, %v3274
    %v3611 = vpack.c.b16 %v3289, %v3282
    %v3612 = vpack.c.b16 %v3290, %v3283
    %v3613 = vpack.c.b16 %v3291, %v3284
    %v3614 = vpack.c.b16 %v3292, %v3285
    %v3615 = vpack.c.b16 %v3293, %v3286
    %v3616 = vpack.c.b16 %v3294, %v3287
    %v3617 = vpack.c.b16 %v3295, %v3288
    %v3618 = vpack.c.b16 %v3303, %v3296
    %v3619 = vpack.c.b16 %v3304, %v3297
    %v3620 = vpack.c.b16 %v3305, %v3298
    %v3621 = vpack.c.b16 %v3306, %v3299
    %v3622 = vpack.c.b16 %v3307, %v3300
    %v3623 = vpack.c.b16 %v3308, %v3301
    %v3624 = vpack.c.b16 %v3309, %v3302
    %v3625 = vpack.c.b16 %v3317, %v3310
    %v3626 = vpack.c.b16 %v3318, %v3311
    %v3627 = vpack.c.b16 %v3319, %v3312
    %v3628 = vpack.c.b16 %v3320, %v3313
    %v3629 = vpack.c.b16 %v3321, %v3314
    %v3630 = vpack.c.b16 %v3322, %v3315
    %v3631 = vpack.c.b16 %v3323, %v3316
    %v3632 = vpack.c.b16 %v3331, %v3324
    %v3633 = vpack.c.b16 %v3332, %v3325
    %v3634 = vpack.c.b16 %v3333, %v3326
    %v3635 = vpack.c.b16 %v3334, %v3327
    %v3636 = vpack.c.b16 %v3335, %v3328
    %v3637 = vpack.c.b16 %v3336, %v3329
    %v3638 = vpack.c.b16 %v3337, %v3330
    %v3639 = vpack.c.b16 %v3345, %v3338
    %v3640 = vpack.c.b16 %v3346, %v3339
    %v3641 = vpack.c.b16 %v3347, %v3340
    %v3642 = vpack.c.b16 %v3348, %v3341
    %v3643 = vpack.c.b16 %v3349, %v3342
    %v3644 = vpack.c.b16 %v3350, %v3343
    %v3645 = vpack.c.b16 %v3351, %v3344
    %v3646 = vpack.c.b16 %v3359, %v3352
    %v3647 = vpack.c.b16 %v3360, %v3353
    %v3648 = vpack.c.b16 %v3361, %v3354
    %v3649 = vpack.c.b16 %v3362, %v3355
    %v3650 = vpack.c.b16 %v3363, %v3356
    %v3651 = vpack.c.b16 %v3364, %v3357
    %v3652 = vpack.c.b16 %v3365, %v3358
    %v3653 = vpack.c.b16 %v3373, %v3366
    %v3654 = vpack.c.b16 %v3374, %v3367
    %v3655 = vpack.c.b16 %v3375, %v3368
    %v3656 = vpack.c.b16 %v3376, %v3369
    %v3657 = vpack.c.b16 %v3377, %v3370
    %v3658 = vpack.c.b16 %v3378, %v3371
    %v3659 = vpack.c.b16 %v3379, %v3372
    %v3660 = vpack.c.b16 %v3387, %v3380
    %v3661 = vpack.c.b16 %v3388, %v3381
    %v3662 = vpack.c.b16 %v3389, %v3382
    %v3663 = vpack.c.b16 %v3390, %v3383
    %v3664 = vpack.c.b16 %v3391, %v3384
    %v3665 = vpack.c.b16 %v3392, %v3385
    %v3666 = vpack.c.b16 %v3393, %v3386
    %v3667 = vpack.c.b16 %v3401, %v3394
    %v3668 = vpack.c.b16 %v3402, %v3395
    %v3669 = vpack.c.b16 %v3403, %v3396
    %v3670 = vpack.c.b16 %v3404, %v3397
    %v3671 = vpack.c.b16 %v3405, %v3398
    %v3672 = vpack.c.b16 %v3406, %v3399
    %v3673 = vpack.c.b16 %v3407, %v3400
    %v3674 = vpack.c.b16 %v3415, %v3408
    %v3675 = vpack.c.b16 %v3416, %v3409
    %v3676 = vpack.c.b16 %v3417, %v3410
    %v3677 = vpack.c.b16 %v3418, %v3411
    %v3678 = vpack.c.b16 %v3419, %v3412
    %v3679 = vpack.c.b16 %v3420, %v3413
    %v3680 = vpack.c.b16 %v3421, %v3414
    %v3681 = vpack.c.b16 %v3429, %v3422
    %v3682 = vpack.c.b16 %v3430, %v3423
    %v3683 = vpack.c.b16 %v3431, %v3424
    %v3684 = vpack.c.b16 %v3432, %v3425
    %v3685 = vpack.c.b16 %v3433, %v3426
    %v3686 = vpack.c.b16 %v3434, %v3427
    %v3687 = vpack.c.b16 %v3435, %v3428
    %v3688 = vpack.c.b16 %v3443, %v3436
    %v3689 = vpack.c.b16 %v3444, %v3437
    %v3690 = vpack.c.b16 %v3445, %v3438
    %v3691 = vpack.c.b16 %v3446, %v3439
    %v3692 = vpack.c.b16 %v3447, %v3440
    %v3693 = vpack.c.b16 %v3448, %v3441
    %v3694 = vpack.c.b16 %v3449, %v3442
    %v3695 = vpack.c.b16 %v3457, %v3450
    %v3696 = vpack.c.b16 %v3458, %v3451
    %v3697 = vpack.c.b16 %v3459, %v3452
    %v3698 = vpack.c.b16 %v3460, %v3453
    %v3699 = vpack.c.b16 %v3461, %v3454
    %v3700 = vpack.c.b16 %v3462, %v3455
    %v3701 = vpack.c.b16 %v3463, %v3456
    %v3702 = vpack.c.b16 %v3471, %v3464
    %v3703 = vpack.c.b16 %v3472, %v3465
    %v3704 = vpack.c.b16 %v3473, %v3466
    %v3705 = vpack.c.b16 %v3474, %v3467
    %v3706 = vpack.c.b16 %v3475, %v3468
    %v3707 = vpack.c.b16 %v3476, %v3469
    %v3708 = vpack.c.b16 %v3477, %v3470
    %v3709 = vpack.c.b16 %v3485, %v3478
    %v3710 = vpack.c.b16 %v3486, %v3479
    %v3711 = vpack.c.b16 %v3487, %v3480
    %v3712 = vpack.c.b16 %v3488, %v3481
    %v3713 = vpack.c.b16 %v3489, %v3482
    %v3714 = vpack.c.b16 %v3490, %v3483
    %v3715 = vpack.c.b16 %v3491, %v3484
    %3940 = vmatprep.subr.bf16.mxu0 %v3493
    %3941 = vmatpush1.bf16.msra.mxu0 %v3492
    %3942 = vmatprep.subr.bf16.mxu0 %v3500
    %3943 = vmatpush1.bf16.msra.mxu0 %v3499
    %3944 = vmatprep.subr.bf16.mxu0 %v3507
    %3945 = vmatpush1.bf16.msra.mxu0 %v3506
    %3946 = vmatprep.subr.bf16.mxu0 %v3514
    %3947 = vmatpush1.bf16.msra.mxu0 %v3513
    %3948 = vmatprep.subr.bf16.mxu0 %v3521
    %3949 = vmatpush1.bf16.msra.mxu0 %v3520
    %3950 = vmatprep.subr.bf16.mxu0 %v3528
    %3951 = vmatpush1.bf16.msra.mxu0 %v3527
    %3952 = vmatprep.subr.bf16.mxu0 %v3535
    %3953 = vmatpush1.bf16.msra.mxu0 %v3534
    %3954 = vmatprep.subr.bf16.mxu0 %v3542
    %3955 = vmatpush1.bf16.msra.mxu0 %v3541
    %3956 = vmatprep.subr.bf16.mxu0 %v3549
    %3957 = vmatpush1.bf16.msra.mxu0 %v3548
    %3958 = vmatprep.subr.bf16.mxu0 %v3556
    %3959 = vmatpush1.bf16.msra.mxu0 %v3555
    %3960 = vmatprep.subr.bf16.mxu0 %v3563
    %3961 = vmatpush1.bf16.msra.mxu0 %v3562
    %3962 = vmatprep.subr.bf16.mxu0 %v3570
    %3963 = vmatpush1.bf16.msra.mxu0 %v3569
    %3964 = vmatprep.subr.bf16.mxu0 %v3577
    %3965 = vmatpush1.bf16.msra.mxu0 %v3576
    %3966 = vmatprep.subr.bf16.mxu0 %v3584
    %3967 = vmatpush1.bf16.msra.mxu0 %v3583
    %3968 = vmatprep.subr.bf16.mxu0 %v3591
    %3969 = vmatpush1.bf16.msra.mxu0 %v3590
    %3970 = vmatprep.subr.bf16.mxu0 %v3598
    %3971 = vmatpush1.bf16.msra.mxu0 %v3597
    %3972 = vmatprep.mubr.bf16.mxu0 %v2492
    %3973 = vmatmul.mubr.bf16.gmra.mrb[0].mxu0 %v2491
    %v3974 = vpop.f32.mrb[0].mxu0
    %v3975 = vadd.f32 %v2756, %v3974
    %v3976 = vpop.f32.mrb[0].mxu0
    %v3977 = vadd.f32 %v2760, %v3976
    %v3978 = vpop.f32.mrb[0].mxu0
    %v3979 = vpop.f32.mrb[0].mxu0
    %3980 = vdwg.mxu0
    %3981 = vmatprep.subr.bf16.mxu0 %v3605
    %3982 = vmatpush1.bf16.msra.mxu0 %v3604
    %3983 = vmatprep.subr.bf16.mxu0 %v3612
    %3984 = vmatpush1.bf16.msra.mxu0 %v3611
    %3985 = vmatprep.subr.bf16.mxu0 %v3619
    %3986 = vmatpush1.bf16.msra.mxu0 %v3618
    %3987 = vmatprep.subr.bf16.mxu0 %v3626
    %3988 = vmatpush1.bf16.msra.mxu0 %v3625
    %3989 = vmatprep.subr.bf16.mxu0 %v3633
    %3990 = vmatpush1.bf16.msra.mxu0 %v3632
    %3991 = vmatprep.subr.bf16.mxu0 %v3640
    %3992 = vmatpush1.bf16.msra.mxu0 %v3639
    %3993 = vmatprep.subr.bf16.mxu0 %v3647
    %3994 = vmatpush1.bf16.msra.mxu0 %v3646
    %3995 = vmatprep.subr.bf16.mxu0 %v3654
    %3996 = vmatpush1.bf16.msra.mxu0 %v3653
    %3997 = vmatprep.subr.bf16.mxu0 %v3661
    %3998 = vmatpush1.bf16.msra.mxu0 %v3660
    %3999 = vmatprep.subr.bf16.mxu0 %v3668
    %4000 = vmatpush1.bf16.msra.mxu0 %v3667
    %4001 = vmatprep.subr.bf16.mxu0 %v3675
    %4002 = vmatpush1.bf16.msra.mxu0 %v3674
    %4003 = vmatprep.subr.bf16.mxu0 %v3682
    %4004 = vmatpush1.bf16.msra.mxu0 %v3681
    %4005 = vmatprep.subr.bf16.mxu0 %v3689
    %4006 = vmatpush1.bf16.msra.mxu0 %v3688
    %4007 = vmatprep.subr.bf16.mxu0 %v3696
    %4008 = vmatpush1.bf16.msra.mxu0 %v3695
    %4009 = vmatprep.subr.bf16.mxu0 %v3703
    %4010 = vmatpush1.bf16.msra.mxu0 %v3702
    %4011 = vmatprep.subr.bf16.mxu0 %v3710
    %4012 = vmatpush1.bf16.msra.mxu0 %v3709
    %4013 = vmatprep.mubr.bf16.mxu0 %v2494
    %4014 = vmatmul.mubr.bf16.gmra.mrb[0].mxu0 %v2493
    %v4015 = vpop.f32.mrb[0].mxu0
    %v4016 = vadd.f32 %v3975, %v4015
    %v4017 = vpop.f32.mrb[0].mxu0
    %v4018 = vadd.f32 %v3977, %v4017
    %v4019 = vpop.f32.mrb[0].mxu0
    %v4020 = vpop.f32.mrb[0].mxu0
    %4021 = vdwg.mxu0
    %4022 = vmatprep.subr.bf16.mxu0 %v3495
    %4023 = vmatpush1.bf16.msra.mxu0 %v3494
    %4024 = vmatprep.subr.bf16.mxu0 %v3502
    %4025 = vmatpush1.bf16.msra.mxu0 %v3501
    %4026 = vmatprep.subr.bf16.mxu0 %v3509
    %4027 = vmatpush1.bf16.msra.mxu0 %v3508
    %4028 = vmatprep.subr.bf16.mxu0 %v3516
    %4029 = vmatpush1.bf16.msra.mxu0 %v3515
    %4030 = vmatprep.subr.bf16.mxu0 %v3523
    %4031 = vmatpush1.bf16.msra.mxu0 %v3522
    %4032 = vmatprep.subr.bf16.mxu0 %v3530
    %4033 = vmatpush1.bf16.msra.mxu0 %v3529
    %4034 = vmatprep.subr.bf16.mxu0 %v3537
    %4035 = vmatpush1.bf16.msra.mxu0 %v3536
    %4036 = vmatprep.subr.bf16.mxu0 %v3544
    %4037 = vmatpush1.bf16.msra.mxu0 %v3543
    %4038 = vmatprep.subr.bf16.mxu0 %v3551
    %4039 = vmatpush1.bf16.msra.mxu0 %v3550
    %4040 = vmatprep.subr.bf16.mxu0 %v3558
    %4041 = vmatpush1.bf16.msra.mxu0 %v3557
    %4042 = vmatprep.subr.bf16.mxu0 %v3565
    %4043 = vmatpush1.bf16.msra.mxu0 %v3564
    %4044 = vmatprep.subr.bf16.mxu0 %v3572
    %4045 = vmatpush1.bf16.msra.mxu0 %v3571
    %4046 = vmatprep.subr.bf16.mxu0 %v3579
    %4047 = vmatpush1.bf16.msra.mxu0 %v3578
    %4048 = vmatprep.subr.bf16.mxu0 %v3586
    %4049 = vmatpush1.bf16.msra.mxu0 %v3585
    %4050 = vmatprep.subr.bf16.mxu0 %v3593
    %4051 = vmatpush1.bf16.msra.mxu0 %v3592
    %4052 = vmatprep.subr.bf16.mxu0 %v3600
    %4053 = vmatpush1.bf16.msra.mxu0 %v3599
    %4054 = vmatprep.mubr.bf16.mxu0 %v2492
    %4055 = vmatmul.mubr.bf16.gmra.mrb[0].mxu0 %v2491
    %v4056 = vpop.f32.mrb[0].mxu0
    %v4057 = vadd.f32 %v2764, %v4056
    %v4058 = vpop.f32.mrb[0].mxu0
    %v4059 = vadd.f32 %v2768, %v4058
    %v4060 = vpop.f32.mrb[0].mxu0
    %v4061 = vpop.f32.mrb[0].mxu0
    %4062 = vdwg.mxu0
    %4063 = vmatprep.subr.bf16.mxu0 %v3607
    %4064 = vmatpush1.bf16.msra.mxu0 %v3606
    %4065 = vmatprep.subr.bf16.mxu0 %v3614
    %4066 = vmatpush1.bf16.msra.mxu0 %v3613
    %4067 = vmatprep.subr.bf16.mxu0 %v3621
    %4068 = vmatpush1.bf16.msra.mxu0 %v3620
    %4069 = vmatprep.subr.bf16.mxu0 %v3628
    %4070 = vmatpush1.bf16.msra.mxu0 %v3627
    %4071 = vmatprep.subr.bf16.mxu0 %v3635
    %4072 = vmatpush1.bf16.msra.mxu0 %v3634
    %4073 = vmatprep.subr.bf16.mxu0 %v3642
    %4074 = vmatpush1.bf16.msra.mxu0 %v3641
    %4075 = vmatprep.subr.bf16.mxu0 %v3649
    %4076 = vmatpush1.bf16.msra.mxu0 %v3648
    %4077 = vmatprep.subr.bf16.mxu0 %v3656
    %4078 = vmatpush1.bf16.msra.mxu0 %v3655
    %4079 = vmatprep.subr.bf16.mxu0 %v3663
    %4080 = vmatpush1.bf16.msra.mxu0 %v3662
    %4081 = vmatprep.subr.bf16.mxu0 %v3670
    %4082 = vmatpush1.bf16.msra.mxu0 %v3669
    %4083 = vmatprep.subr.bf16.mxu0 %v3677
    %4084 = vmatpush1.bf16.msra.mxu0 %v3676
    %4085 = vmatprep.subr.bf16.mxu0 %v3684
    %4086 = vmatpush1.bf16.msra.mxu0 %v3683
    %4087 = vmatprep.subr.bf16.mxu0 %v3691
    %4088 = vmatpush1.bf16.msra.mxu0 %v3690
    %4089 = vmatprep.subr.bf16.mxu0 %v3698
    %4090 = vmatpush1.bf16.msra.mxu0 %v3697
    %4091 = vmatprep.subr.bf16.mxu0 %v3705
    %4092 = vmatpush1.bf16.msra.mxu0 %v3704
    %4093 = vmatprep.subr.bf16.mxu0 %v3712
    %4094 = vmatpush1.bf16.msra.mxu0 %v3711
    %4095 = vmatprep.mubr.bf16.mxu0 %v2494
    %4096 = vmatmul.mubr.bf16.gmra.mrb[0].mxu0 %v2493
    %v4097 = vpop.f32.mrb[0].mxu0
    %v4098 = vadd.f32 %v4057, %v4097
    %v4099 = vpop.f32.mrb[0].mxu0
    %v4100 = vadd.f32 %v4059, %v4099
    %v4101 = vpop.f32.mrb[0].mxu0
    %v4102 = vpop.f32.mrb[0].mxu0
    %4103 = vdwg.mxu0
    %4104 = vmatprep.subr.bf16.mxu0 %v3497
    %4105 = vmatpush1.bf16.msra.mxu0 %v3496
    %4106 = vmatprep.subr.bf16.mxu0 %v3504
    %4107 = vmatpush1.bf16.msra.mxu0 %v3503
    %4108 = vmatprep.subr.bf16.mxu0 %v3511
    %4109 = vmatpush1.bf16.msra.mxu0 %v3510
    %4110 = vmatprep.subr.bf16.mxu0 %v3518
    %4111 = vmatpush1.bf16.msra.mxu0 %v3517
    %4112 = vmatprep.subr.bf16.mxu0 %v3525
    %4113 = vmatpush1.bf16.msra.mxu0 %v3524
    %4114 = vmatprep.subr.bf16.mxu0 %v3532
    %4115 = vmatpush1.bf16.msra.mxu0 %v3531
    %4116 = vmatprep.subr.bf16.mxu0 %v3539
    %4117 = vmatpush1.bf16.msra.mxu0 %v3538
    %4118 = vmatprep.subr.bf16.mxu0 %v3546
    %4119 = vmatpush1.bf16.msra.mxu0 %v3545
    %4120 = vmatprep.subr.bf16.mxu0 %v3553
    %4121 = vmatpush1.bf16.msra.mxu0 %v3552
    %4122 = vmatprep.subr.bf16.mxu0 %v3560
    %4123 = vmatpush1.bf16.msra.mxu0 %v3559
    %4124 = vmatprep.subr.bf16.mxu0 %v3567
    %4125 = vmatpush1.bf16.msra.mxu0 %v3566
    %4126 = vmatprep.subr.bf16.mxu0 %v3574
    %4127 = vmatpush1.bf16.msra.mxu0 %v3573
    %4128 = vmatprep.subr.bf16.mxu0 %v3581
    %4129 = vmatpush1.bf16.msra.mxu0 %v3580
    %4130 = vmatprep.subr.bf16.mxu0 %v3588
    %4131 = vmatpush1.bf16.msra.mxu0 %v3587
    %4132 = vmatprep.subr.bf16.mxu0 %v3595
    %4133 = vmatpush1.bf16.msra.mxu0 %v3594
    %4134 = vmatprep.subr.bf16.mxu0 %v3602
    %4135 = vmatpush1.bf16.msra.mxu0 %v3601
    %4136 = vmatprep.mubr.bf16.mxu0 %v2492
    %4137 = vmatmul.mubr.bf16.gmra.mrb[0].mxu0 %v2491
    %v4138 = vpop.f32.mrb[0].mxu0
    %v4139 = vadd.f32 %v2772, %v4138
    %v4140 = vpop.f32.mrb[0].mxu0
    %v4141 = vadd.f32 %v2776, %v4140
    %v4142 = vpop.f32.mrb[0].mxu0
    %v4143 = vpop.f32.mrb[0].mxu0
    %4144 = vdwg.mxu0
    %4145 = vmatprep.subr.bf16.mxu0 %v3609
    %4146 = vmatpush1.bf16.msra.mxu0 %v3608
    %4147 = vmatprep.subr.bf16.mxu0 %v3616
    %4148 = vmatpush1.bf16.msra.mxu0 %v3615
    %4149 = vmatprep.subr.bf16.mxu0 %v3623
    %4150 = vmatpush1.bf16.msra.mxu0 %v3622
    %4151 = vmatprep.subr.bf16.mxu0 %v3630
    %4152 = vmatpush1.bf16.msra.mxu0 %v3629
    %4153 = vmatprep.subr.bf16.mxu0 %v3637
    %4154 = vmatpush1.bf16.msra.mxu0 %v3636
    %4155 = vmatprep.subr.bf16.mxu0 %v3644
    %4156 = vmatpush1.bf16.msra.mxu0 %v3643
    %4157 = vmatprep.subr.bf16.mxu0 %v3651
    %4158 = vmatpush1.bf16.msra.mxu0 %v3650
    %4159 = vmatprep.subr.bf16.mxu0 %v3658
    %4160 = vmatpush1.bf16.msra.mxu0 %v3657
    %4161 = vmatprep.subr.bf16.mxu0 %v3665
    %4162 = vmatpush1.bf16.msra.mxu0 %v3664
    %4163 = vmatprep.subr.bf16.mxu0 %v3672
    %4164 = vmatpush1.bf16.msra.mxu0 %v3671
    %4165 = vmatprep.subr.bf16.mxu0 %v3679
    %4166 = vmatpush1.bf16.msra.mxu0 %v3678
    %4167 = vmatprep.subr.bf16.mxu0 %v3686
    %4168 = vmatpush1.bf16.msra.mxu0 %v3685
    %4169 = vmatprep.subr.bf16.mxu0 %v3693
    %4170 = vmatpush1.bf16.msra.mxu0 %v3692
    %4171 = vmatprep.subr.bf16.mxu0 %v3700
    %4172 = vmatpush1.bf16.msra.mxu0 %v3699
    %4173 = vmatprep.subr.bf16.mxu0 %v3707
    %4174 = vmatpush1.bf16.msra.mxu0 %v3706
    %4175 = vmatprep.subr.bf16.mxu0 %v3714
    %4176 = vmatpush1.bf16.msra.mxu0 %v3713
    %4177 = vmatprep.mubr.bf16.mxu0 %v2494
    %4178 = vmatmul.mubr.bf16.gmra.mrb[0].mxu0 %v2493
    %v4179 = vpop.f32.mrb[0].mxu0
    %v4180 = vadd.f32 %v4139, %v4179
    %v4181 = vpop.f32.mrb[0].mxu0
    %v4182 = vadd.f32 %v4141, %v4181
    %v4183 = vpop.f32.mrb[0].mxu0
    %v4184 = vpop.f32.mrb[0].mxu0
    %4185 = vdwg.mxu0
    %4186 = vmatprep.subr.bf16.mxu0 0
    %4187 = vmatpush1.bf16.msra.mxu0 %v3498
    %4188 = vmatprep.subr.bf16.mxu0 0
    %4189 = vmatpush1.bf16.msra.mxu0 %v3505
    %4190 = vmatprep.subr.bf16.mxu0 0
    %4191 = vmatpush1.bf16.msra.mxu0 %v3512
    %4192 = vmatprep.subr.bf16.mxu0 0
    %4193 = vmatpush1.bf16.msra.mxu0 %v3519
    %4194 = vmatprep.subr.bf16.mxu0 0
    %4195 = vmatpush1.bf16.msra.mxu0 %v3526
    %4196 = vmatprep.subr.bf16.mxu0 0
    %4197 = vmatpush1.bf16.msra.mxu0 %v3533
    %4198 = vmatprep.subr.bf16.mxu0 0
    %4199 = vmatpush1.bf16.msra.mxu0 %v3540
    %4200 = vmatprep.subr.bf16.mxu0 0
    %4201 = vmatpush1.bf16.msra.mxu0 %v3547
    %4202 = vmatprep.subr.bf16.mxu0 0
    %4203 = vmatpush1.bf16.msra.mxu0 %v3554
    %4204 = vmatprep.subr.bf16.mxu0 0
    %4205 = vmatpush1.bf16.msra.mxu0 %v3561
    %4206 = vmatprep.subr.bf16.mxu0 0
    %4207 = vmatpush1.bf16.msra.mxu0 %v3568
    %4208 = vmatprep.subr.bf16.mxu0 0
    %4209 = vmatpush1.bf16.msra.mxu0 %v3575
    %4210 = vmatprep.subr.bf16.mxu0 0
    %4211 = vmatpush1.bf16.msra.mxu0 %v3582
    %4212 = vmatprep.subr.bf16.mxu0 0
    %4213 = vmatpush1.bf16.msra.mxu0 %v3589
    %4214 = vmatprep.subr.bf16.mxu0 0
    %4215 = vmatpush1.bf16.msra.mxu0 %v3596
    %4216 = vmatprep.subr.bf16.mxu0 0
    %4217 = vmatpush1.bf16.msra.mxu0 %v3603
    %4218 = vmatprep.mubr.bf16.mxu0 %v2492
    %4219 = vmatmul.mubr.bf16.gmra.mrb[0].mxu0 %v2491
    %v4220 = vpop.f32.mrb[0].mxu0
    %v4221 = vadd.f32 %v2780, %v4220
    %v4222 = vpop.f32.mrb[0].mxu0
    %v4223 = vpop.f32.mrb[0].mxu0
    %v4224 = vpop.f32.mrb[0].mxu0
    %4225 = vdwg.mxu0
    %4226 = vmatprep.subr.bf16.mxu0 0
    %4227 = vmatpush1.bf16.msra.mxu0 %v3610
    %4228 = vmatprep.subr.bf16.mxu0 0
    %4229 = vmatpush1.bf16.msra.mxu0 %v3617
    %4230 = vmatprep.subr.bf16.mxu0 0
    %4231 = vmatpush1.bf16.msra.mxu0 %v3624
    %4232 = vmatprep.subr.bf16.mxu0 0
    %4233 = vmatpush1.bf16.msra.mxu0 %v3631
    %4234 = vmatprep.subr.bf16.mxu0 0
    %4235 = vmatpush1.bf16.msra.mxu0 %v3638
    %4236 = vmatprep.subr.bf16.mxu0 0
    %4237 = vmatpush1.bf16.msra.mxu0 %v3645
    %4238 = vmatprep.subr.bf16.mxu0 0
    %4239 = vmatpush1.bf16.msra.mxu0 %v3652
    %4240 = vmatprep.subr.bf16.mxu0 0
    %4241 = vmatpush1.bf16.msra.mxu0 %v3659
    %4242 = vmatprep.subr.bf16.mxu0 0
    %4243 = vmatpush1.bf16.msra.mxu0 %v3666
    %4244 = vmatprep.subr.bf16.mxu0 0
    %4245 = vmatpush1.bf16.msra.mxu0 %v3673
    %4246 = vmatprep.subr.bf16.mxu0 0
    %4247 = vmatpush1.bf16.msra.mxu0 %v3680
    %4248 = vmatprep.subr.bf16.mxu0 0
    %4249 = vmatpush1.bf16.msra.mxu0 %v3687
    %4250 = vmatprep.subr.bf16.mxu0 0
    %4251 = vmatpush1.bf16.msra.mxu0 %v3694
    %4252 = vmatprep.subr.bf16.mxu0 0
    %4253 = vmatpush1.bf16.msra.mxu0 %v3701
    %4254 = vmatprep.subr.bf16.mxu0 0
    %4255 = vmatpush1.bf16.msra.mxu0 %v3708
    %4256 = vmatprep.subr.bf16.mxu0 0
    %4257 = vmatpush1.bf16.msra.mxu0 %v3715
    %4258 = vmatprep.mubr.bf16.mxu0 %v2494
    %4259 = vmatmul.mubr.bf16.gmra.mrb[0].mxu0 %v2493
    %v4260 = vpop.f32.mrb[0].mxu0
    %v4261 = vadd.f32 %v4221, %v4260
    %v4262 = vpop.f32.mrb[0].mxu0
    %v4263 = vpop.f32.mrb[0].mxu0
    %v4264 = vpop.f32.mrb[0].mxu0
    %4265 = vdwg.mxu0
    %v4266 = vxor.u32 %v4016, 2147483648
    %v4267 = vxor.u32 %v4018, 2147483648
    %v4268 = vxor.u32 %v4098, 2147483648
    %v4269 = vxor.u32 %v4100, 2147483648
    %v4270 = vxor.u32 %v4180, 2147483648
    %v4271 = vxor.u32 %v4182, 2147483648
    %v4272 = vxor.u32 %v4261, 2147483648
    %v4273 = vmul.f32 %v4266, 1.442695
    %v4274 = vpow.pop %v4273
    %v4275 = vmul.f32 %v4267, 1.442695
    %v4276 = vpow.pop %v4275
    %v4277 = vmul.f32 %v4268, 1.442695
    %v4278 = vpow.pop %v4277
    %v4279 = vmul.f32 %v4269, 1.442695
    %v4280 = vpow.pop %v4279
    %v4281 = vmul.f32 %v4270, 1.442695
    %v4282 = vpow.pop %v4281
    %v4283 = vmul.f32 %v4271, 1.442695
    %v4284 = vpow.pop %v4283
    %v4285 = vmul.f32 %v4272, 1.442695
    %v4286 = vpow.pop %v4285
    %v4287 = vadd.f32 %v4274, 1.0
    %v4288 = vadd.f32 %v4276, 1.0
    %v4289 = vadd.f32 %v4278, 1.0
    %v4290 = vadd.f32 %v4280, 1.0
    %v4291 = vadd.f32 %v4282, 1.0
    %v4292 = vadd.f32 %v4284, 1.0
    %v4293 = vadd.f32 %v4286, 1.0
    %v4294 = vrcp.pop %v4287
    %v4295 = vmul.f32 1.0, %v4294
    %v4296 = vrcp.pop %v4288
    %v4297 = vmul.f32 1.0, %v4296
    %v4298 = vrcp.pop %v4289
    %v4299 = vmul.f32 1.0, %v4298
    %v4300 = vrcp.pop %v4290
    %v4301 = vmul.f32 1.0, %v4300
    %v4302 = vrcp.pop %v4291
    %v4303 = vmul.f32 1.0, %v4302
    %v4304 = vrcp.pop %v4292
    %v4305 = vmul.f32 1.0, %v4304
    %v4306 = vrcp.pop %v4293
    %v4307 = vmul.f32 1.0, %v4306
    %v4315 = vcombine.low %v4295, %v4297
    %v4316 = vcombine.low %v4299, %v4301
    %v4318 = vunpack.c.l.s4 1983009808
    %v4319 = vunpack.c.0.s8 %v4318
    %v4320 = vlaneseq
    %v4321 = vshrl.u32 %v4320, 7
    %v4322 = vsub.s32 %v4319, %v4321
    %v4323 = vrot.slane %v4315, %v4322
    %v4325 = vunpack.c.l.s4 1983009808
    %v4326 = vunpack.c.0.s8 %v4325
    %v4327 = vlaneseq
    %v4328 = vshrl.u32 %v4327, 7
    %v4329 = vsub.s32 %v4326, %v4328
    %v4330 = vrot.slane %v4316, %v4329
    %v4331 = vcombine.low %v4323, %v4330
    %v4332 = vcombine.low %v4303, %v4305
    %v4334 = vunpack.c.l.s4 1983009808
    %v4335 = vunpack.c.0.s8 %v4334
    %v4336 = vlaneseq
    %v4337 = vshrl.u32 %v4336, 7
    %v4338 = vsub.s32 %v4335, %v4337
    %v4339 = vrot.slane %v4332, %v4338
    %v4341 = vunpack.c.l.s4 1983009808
    %v4342 = vunpack.c.0.s8 %v4341
    %v4343 = vlaneseq
    %v4344 = vshrl.u32 %v4343, 7
    %v4345 = vsub.s32 %v4342, %v4344
    %v4346 = vrot.slane %v4307, %v4345
    %v4347 = vcombine.low %v4339, %v4346
    %4350 = vst [vmem:[%s9] sm:$0xff] %v4331
    %4351 = vst [vmem:[%s9 + $0x8] sm:$0x3f] %v4347
    // Predicated region
    $region54: #{linear_ae_forward.1} parent=1 // pred_check
      _
    $region55: #{linear_ae_forward.1} parent=1 // pred_check_branch
      %4353 = sbr.rel (0) target = $region57
    $region56: #{linear_ae_forward.1} parent=1 // pred_region
      _
    $region57: #{linear_ae_forward.1} parent=1 // pred_fallthru
      _
    // Predicated region
    $region58: #{linear_ae_forward.1} parent=1 // pred_check
      _
    $region59: #{linear_ae_forward.1} parent=1 // pred_check_branch
      %4355 = sbr.rel (0) target = $region61
    $region60: #{linear_ae_forward.1} parent=1 // pred_region
      _
    $region61: #{linear_ae_forward.1} parent=1 // pred_fallthru
      _
    %4356 = vsyncpa [#allocation3], 1
    %4357 = vsyncpa [#allocation5], 1
    %4358 = vsyncpa [#allocation8], 1

</llo_original>
